<compile_context>
chip_gen: v7x
topology: tpu7x:2x2x1
jax: 0.10.0
libtpu: 0.0.40
codegen_flags: <defaults>
</compile_context>

<pallas_src>
import functools

import jax
import jax.numpy as jnp
from jax import lax
from jax.experimental import pallas as pl
from jax.experimental.pallas import tpu as pltpu

_EPS = 1e-5          # BatchNorm eps (PyTorch default)
_CPAD = 64           # conv activations carried with 64 lanes (max conv width)
_HPAD = 128          # fc hidden padded to one full f32 vreg lane width
_TAPS = 3            # kernel size of conv2..conv5
_VMEM = pl.BlockSpec(memory_space=pltpu.MemorySpace.VMEM)


# ----------------------------------------------------------------------------
# In-kernel helpers
# ----------------------------------------------------------------------------
def _batchnorm_relu(ys, count, gamma, beta):
    """Training-mode BatchNorm1d + ReLU over row blocks that share statistics.

    ys: list of (rows_i, C) f32 blocks (every row is a valid (n, l) position).
    count: static float = total number of positions (batch * l_out).
    Two-pass (mean, then centered sum of squares), biased variance.
    """
    s = ys[0].sum(axis=0, keepdims=True)
    for y in ys[1:]:
        s = s + y.sum(axis=0, keepdims=True)
    mean = s * (1.0 / count)
    ds = [y - mean for y in ys]
    sq = (ds[0] * ds[0]).sum(axis=0, keepdims=True)
    for d in ds[1:]:
        sq = sq + (d * d).sum(axis=0, keepdims=True)
    var = sq * (1.0 / count)
    scale = gamma * lax.rsqrt(var + _EPS)
    return [jnp.maximum(d * scale + beta, 0.0) for d in ds]


def _pool_select_local(lp, lout):
    """(lp, lout-1) 0/1 matrix: pooled row t <- adjacent-max row 2t."""
    p = lax.broadcasted_iota(jnp.int32, (lp, lout - 1), 0)
    s = lax.broadcasted_iota(jnp.int32, (lp, lout - 1), 1)
    return jnp.where(s == 2 * p, 1.0, 0.0)


def _pool_select_stacked(batch, lp, lout):
    """Row-selection matrix for batch-stacked MaxPool1d(2).

    Pooled global row p = n*lp + t selects source row n*lout + 2t of the
    adjacent-max array.  Built with adds/compares only (no vector int div).
    """
    rows_m = batch * lout - 1
    p = lax.broadcasted_iota(jnp.int32, (batch * lp, rows_m), 0)
    s = lax.broadcasted_iota(jnp.int32, (batch * lp, rows_m), 1)
    sel = jnp.zeros((batch * lp, rows_m), jnp.float32)
    for n in range(batch):
        in_band = (p >= n * lp) & (p < (n + 1) * lp)
        hit = s == 2 * p + n * (lout - 2 * lp)
        sel = jnp.where(in_band & hit, 1.0, sel)
    return sel


def _maxpool2(z, sel):
    """MaxPool1d(2): adjacent-row max (VPU) + one 0/1 selection matmul (MXU)."""
    r = z.shape[0]
    m = jnp.maximum(z[0:r - 1, :], z[1:r, :])      # m[i] = max(z[i], z[i+1])
    return jnp.dot(sel, m, preferred_element_type=jnp.float32)


# ----------------------------------------------------------------------------
# Fused Pallas kernel: entire MSCNN2 forward
# ----------------------------------------------------------------------------
def _mscnn2_kernel(batch, cfg, x_ref, w_ref, gb_ref, fcw_ref, fcb_ref, out_ref):
    """cfg: tuple of (kd, lout, lp) per conv layer (static python).

    x_ref  : (batch*lout1, kd1) conv1 im2col, batch-stacked (built in wrapper)
    w_ref  : (5, kd_max, 64)  packed conv weights (zero padded)
    gb_ref : (5, 128)         [gamma | beta] per BN layer (zero padded)
    fcw_ref: (64 + 128, 128)  fc1.T in rows 0:64, fc2.T in rows 64:192
    fcb_ref: (2, 128)         [fc1_b ; fc2_b] (zero padded)
    out_ref: (batch, 128)     packed output: [features(64) | logits(64 pad)]
    """
    n_layers = len(cfg)
    gb = gb_ref[...]

    # ---- conv1 + BN + ReLU + pool: whole batch in one stacked matmul --------
    kd0, lout0, lp0 = cfg[0]
    w0 = w_ref[0][0:kd0, :]
    y0 = jnp.dot(x_ref[...], w0, preferred_element_type=jnp.float32)
    (z0,) = _batchnorm_relu([y0], float(batch * lout0),
                            gb[0:1, 0:_CPAD], gb[0:1, _CPAD:2 * _CPAD])
    pooled = _maxpool2(z0, _pool_select_stacked(batch, lp0, lout0))

    # Per-sample activations from here on (keeps every concat lane-only /
    # 64-aligned; no sublane concatenation is needed inside the kernel).
    acts = [pooled[n * lp0:(n + 1) * lp0, :] for n in range(batch)]

    # ---- conv2..conv5: one tap-fused matmul per sample, shared BN stats -----
    for li in range(1, n_layers):
        kd, lout, lp = cfg[li]
        wl = w_ref[li]
        if kd != wl.shape[0]:
            wl = wl[0:kd, :]
        ys = []
        for a in acts:
            # in-VMEM im2col: three 64-lane pieces concatenated along lanes
            cols = jnp.concatenate([a[j:j + lout, :] for j in range(_TAPS)],
                                   axis=-1)
            ys.append(jnp.dot(cols, wl, preferred_element_type=jnp.float32))
        zs = _batchnorm_relu(ys, float(batch * lout),
                             gb[li:li + 1, 0:_CPAD],
                             gb[li:li + 1, _CPAD:2 * _CPAD])
        sel = _pool_select_local(lp, lout)
        acts = [_maxpool2(z, sel) for z in zs]

    # ---- flatten + fc1 -> ReLU -> fc2; one lane-dense packed row per sample -
    fc1w = fcw_ref[0:_CPAD, :]                      # (64, 128)
    fc2w = fcw_ref[_CPAD:_CPAD + _HPAD, 0:_CPAD]    # (128, 64)
    fcb = fcb_ref[...]
    b1 = fcb[0:1, :]
    b2 = fcb[1:2, 0:_CPAD]
    for n in range(batch):
        f = acts[n]                                 # (1, 64) flattened features
        h = jnp.maximum(
            jnp.dot(f, fc1w, preferred_element_type=jnp.float32) + b1, 0.0)
        o = jnp.dot(h, fc2w, preferred_element_type=jnp.float32) + b2
        out_ref[n:n + 1, :] = jnp.concatenate([f, o], axis=-1)


# ----------------------------------------------------------------------------
# Wrapper: parameter packing + pallas_call plumbing
# ----------------------------------------------------------------------------
def mscnn2_forward(params, x_ncl):
    """x_ncl: (N, in_channel, 1024) PyTorch NCL input.

    Returns (features_map (N, 64, 1), out (N, out_channel)) like MSCNN2.forward
    (training-mode BatchNorm statistics; running stats are not updated).
    """
    x = jnp.transpose(x_ncl, (0, 2, 1)).astype(jnp.float32)     # (N, L, Cin)
    N, L, Cin = x.shape
    K0, S0 = 64, 8
    assert L % S0 == 0 and L >= K0
    lout0 = (L - K0) // S0 + 1

    # conv1 im2col (gather-free): stride-8 block view + 8 shifted slices,
    # already batch-stacked so the kernel's first matmul covers the whole batch.
    xb = x.reshape(N, L // S0, S0 * Cin)
    cols = jnp.concatenate([xb[:, j:j + lout0, :] for j in range(K0 // S0)],
                           axis=-1)
    x_cols = cols.reshape(N * lout0, K0 * Cin)

    # ---- pack conv weights / BN params.  Conv bias is dropped on purpose:
    #      training-mode BN subtracts the per-channel mean, so the bias cancels
    #      exactly and passing it would be wasted work + extra DMAs. ----------
    n_layers = 5
    kd_max = max(K0 * Cin, _TAPS * _CPAD)
    w_pack = jnp.zeros((n_layers, kd_max, _CPAD), jnp.float32)
    gb_pack = jnp.zeros((n_layers, 2 * _CPAD), jnp.float32)
    cfg = []
    length = lout0
    cout = None
    for i in range(n_layers):
        w, _bias_unused, gamma, beta = params[f"conv{i + 1}"]
        cout, cin_w, k = w.shape
        assert cout <= _CPAD
        wt = jnp.transpose(w, (2, 1, 0))            # (K, Cin, Cout)
        if i == 0:
            kd = k * cin_w
            w_pack = w_pack.at[i, 0:kd, 0:cout].set(wt.reshape(kd, cout))
            lout = lout0
        else:
            assert k == _TAPS
            kd = _TAPS * _CPAD
            for j in range(k):                      # 64-lane aligned tap groups
                w_pack = w_pack.at[i, j * _CPAD:j * _CPAD + cin_w, 0:cout].set(wt[j])
            lout = length - k + 1
        lp = lout // 2
        cfg.append((kd, lout, lp))
        gb_pack = gb_pack.at[i, 0:cout].set(gamma)
        gb_pack = gb_pack.at[i, _CPAD:_CPAD + cout].set(beta)
        length = lp

    assert length == 1, "flatten layout assumes the final feature length is 1"
    feat_dim = length * cout
    hidden, fin = params["fc1_w"].shape
    out_dim = params["fc2_w"].shape[0]
    assert fin == feat_dim and hidden <= _HPAD and out_dim <= _CPAD

    fcw_pack = jnp.zeros((_CPAD + _HPAD, _HPAD), jnp.float32)
    fcw_pack = fcw_pack.at[0:feat_dim, 0:hidden].set(params["fc1_w"].T)
    fcw_pack = fcw_pack.at[_CPAD:_CPAD + hidden, 0:out_dim].set(params["fc2_w"].T)
    fcb_pack = jnp.zeros((2, _HPAD), jnp.float32)
    fcb_pack = fcb_pack.at[0, 0:hidden].set(params["fc1_b"])
    fcb_pack = fcb_pack.at[1, 0:out_dim].set(params["fc2_b"])

    kernel = functools.partial(_mscnn2_kernel, N, tuple(cfg))
    out_pack = pl.pallas_call(
        kernel,
        out_shape=jax.ShapeDtypeStruct((N, _HPAD), jnp.float32),
        in_specs=[_VMEM] * 5,
        out_specs=_VMEM,
    )(x_cols, w_pack, gb_pack, fcw_pack, fcb_pack)

    features_map = out_pack[:, 0:feat_dim].reshape(N, cout, length)  # (N, 64, 1)
    out = out_pack[:, _CPAD:_CPAD + out_dim]                         # (N, out)
    return features_map, out


# ----------------------------------------------------------------------------
# Deterministic parameter init (shapes match MSCNN2.__init__; synthetic values)
# ----------------------------------------------------------------------------
def init_params(key, in_channel=1, out_channel=15):
    conv_shapes = [(16, in_channel, 64), (32, 16, 3), (64, 32, 3), (64, 64, 3),
                   (64, 64, 3)]
    keys = jax.random.split(key, 12)
    ki = 0
    params = {}
    for i, (co, ci, k) in enumerate(conv_shapes):
        fan_in = ci * k
        w = jax.random.normal(keys[ki], (co, ci, k), jnp.float32) / jnp.sqrt(fan_in)
        ki += 1
        # conv bias kept for shape fidelity but never used (exactly cancelled
        # by training-mode BatchNorm).
        b = jax.random.normal(keys[ki], (co,), jnp.float32) * 0.01
        ki += 1
        gamma = jnp.ones((co,), jnp.float32)
        beta = jnp.zeros((co,), jnp.float32)
        params[f"conv{i + 1}"] = (w, b, gamma, beta)

    flattened = 64  # 1024-length dummy input -> final (64, 1) feature map
    params["fc1_w"] = jax.random.normal(keys[ki], (100, flattened),
                                        jnp.float32) / jnp.sqrt(flattened)
    ki += 1
    params["fc1_b"] = jnp.zeros((100,), jnp.float32)
    params["fc2_w"] = jax.random.normal(keys[ki], (out_channel, 100),
                                        jnp.float32) / jnp.sqrt(100.0)
    ki += 1
    params["fc2_b"] = jnp.zeros((out_channel,), jnp.float32)
    return params


# ----------------------------------------------------------------------------
if __name__ == "__main__":
    key = jax.random.PRNGKey(0)
    pkey, xkey = jax.random.split(key)
    params = init_params(pkey, in_channel=1, out_channel=15)

    # Sequence length must be 1024: the module bakes flattened_size=64 from a
    # 1024-length dummy input in __init__.
    x = jax.random.normal(xkey, (2, 1, 1024), jnp.float32)

    fwd = jax.jit(mscnn2_forward)
    features_map, out = fwd(params, x)
    jax.block_until_ready((features_map, out))

    assert features_map.shape == (2, 64, 1), features_map.shape
    assert out.shape == (2, 15), out.shape
    assert features_map.dtype == jnp.float32 and out.dtype == jnp.float32
    assert bool(jnp.all(jnp.isfinite(features_map)))
    assert bool(jnp.all(jnp.isfinite(out)))

    print("KERNEL_OK")
</pallas_src>

<mosaic_0001>
module attributes {stable_mosaic.version = 11 : i64} {
  func.func @_mscnn2_kernel(%arg0: memref<242x64xf32, #tpu.memory_space<vmem>>, %arg1: memref<5x192x64xf32, #tpu.memory_space<vmem>>, %arg2: memref<5x128xf32, #tpu.memory_space<vmem>>, %arg3: memref<192x128xf32, #tpu.memory_space<vmem>>, %arg4: memref<2x128xf32, #tpu.memory_space<vmem>>, %arg5: memref<2x128xf32, #tpu.memory_space<vmem>>) attributes {dimension_semantics = [], scalar_prefetch = 0 : i64, scratch_operands = 0 : i64, tpu.core_type = #tpu.core_type<tc>} {
    %c0 = arith.constant 0 : index
    %c0_0 = arith.constant 0 : index
    %0 = vector.load %arg2[%c0, %c0_0] : memref<5x128xf32, #tpu.memory_space<vmem>>, vector<5x128xf32>
    %c0_1 = arith.constant 0 : index
    %c0_2 = arith.constant 0 : index
    %c0_3 = arith.constant 0 : index
    %1 = vector.load %arg1[%c0_1, %c0_2, %c0_3] : memref<5x192x64xf32, #tpu.memory_space<vmem>>, vector<1x192x64xf32>
    %2 = vector.shape_cast %1 : vector<1x192x64xf32> to vector<192x64xf32>
    %3 = vector.extract_strided_slice %2 {offsets = [0, 0], sizes = [64, 64], strides = [1, 1]} : vector<192x64xf32> to vector<64x64xf32>
    %c0_4 = arith.constant 0 : index
    %c0_5 = arith.constant 0 : index
    %4 = vector.load %arg0[%c0_4, %c0_5] : memref<242x64xf32, #tpu.memory_space<vmem>>, vector<242x64xf32>
    %cst = arith.constant dense<0.000000e+00> : vector<242x64xf32>
    %5 = tpu.matmul %4, %3, %cst {dimension_numbers = #tpu.dot_dimension_numbers<[1], [0], [0], [1], [0, 0, 1, 1], [], []>} : vector<242x64xf32>, vector<64x64xf32>, vector<242x64xf32> -> vector<242x64xf32>
    %6 = vector.extract_strided_slice %0 {offsets = [0, 0], sizes = [1, 64], strides = [1, 1]} : vector<5x128xf32> to vector<1x64xf32>
    %7 = vector.extract_strided_slice %0 {offsets = [0, 64], sizes = [1, 64], strides = [1, 1]} : vector<5x128xf32> to vector<1x64xf32>
    %cst_6 = arith.constant dense<0.000000e+00> : vector<64xf32>
    %8 = vector.multi_reduction <add>, %5, %cst_6 [0] : vector<242x64xf32> to vector<64xf32>
    %9 = vector.shape_cast %8 : vector<64xf32> to vector<1x64xf32>
    %cst_7 = arith.constant 0.00413223123 : f32
    %10 = vector.broadcast %cst_7 : f32 to vector<1x64xf32>
    %11 = arith.mulf %9, %10 : vector<1x64xf32>
    %12 = vector.broadcast %11 : vector<1x64xf32> to vector<242x64xf32>
    %13 = arith.subf %5, %12 : vector<242x64xf32>
    %14 = arith.mulf %13, %13 : vector<242x64xf32>
    %cst_8 = arith.constant dense<0.000000e+00> : vector<64xf32>
    %15 = vector.multi_reduction <add>, %14, %cst_8 [0] : vector<242x64xf32> to vector<64xf32>
    %16 = vector.shape_cast %15 : vector<64xf32> to vector<1x64xf32>
    %cst_9 = arith.constant 0.00413223123 : f32
    %17 = vector.broadcast %cst_9 : f32 to vector<1x64xf32>
    %18 = arith.mulf %16, %17 : vector<1x64xf32>
    %cst_10 = arith.constant 9.99999974E-6 : f32
    %19 = vector.broadcast %cst_10 : f32 to vector<1x64xf32>
    %20 = arith.addf %18, %19 : vector<1x64xf32>
    %21 = math.rsqrt %20 : vector<1x64xf32>
    %22 = arith.mulf %6, %21 : vector<1x64xf32>
    %23 = vector.broadcast %22 : vector<1x64xf32> to vector<242x64xf32>
    %24 = arith.mulf %13, %23 : vector<242x64xf32>
    %25 = vector.broadcast %7 : vector<1x64xf32> to vector<242x64xf32>
    %26 = arith.addf %24, %25 : vector<242x64xf32>
    %cst_11 = arith.constant 0.000000e+00 : f32
    %27 = vector.broadcast %cst_11 : f32 to vector<242x64xf32>
    %28 = arith.maximumf %26, %27 : vector<242x64xf32>
    %29 = tpu.iota {dimensions = array<i32: 0>} : vector<120x241xi32>
    %30 = tpu.iota {dimensions = array<i32: 1>} : vector<120x241xi32>
    %cst_12 = arith.constant 0.000000e+00 : f32
    %31 = vector.broadcast %cst_12 : f32 to vector<120x241xf32>
    %c0_i32 = arith.constant 0 : i32
    %32 = vector.broadcast %c0_i32 : i32 to vector<120x241xi32>
    %33 = arith.cmpi sge, %29, %32 : vector<120x241xi32>
    %c60_i32 = arith.constant 60 : i32
    %34 = vector.broadcast %c60_i32 : i32 to vector<120x241xi32>
    %35 = arith.cmpi slt, %29, %34 : vector<120x241xi32>
    %36 = arith.andi %33, %35 : vector<120x241xi1>
    %c2_i32 = arith.constant 2 : i32
    %37 = vector.broadcast %c2_i32 : i32 to vector<120x241xi32>
    %38 = arith.muli %37, %29 : vector<120x241xi32>
    %c0_i32_13 = arith.constant 0 : i32
    %39 = vector.broadcast %c0_i32_13 : i32 to vector<120x241xi32>
    %40 = arith.addi %38, %39 : vector<120x241xi32>
    %41 = arith.cmpi eq, %30, %40 : vector<120x241xi32>
    %42 = arith.andi %36, %41 : vector<120x241xi1>
    %cst_14 = arith.constant 1.000000e+00 : f32
    %43 = vector.broadcast %cst_14 : f32 to vector<120x241xf32>
    %44 = arith.select %42, %43, %31 : vector<120x241xi1>, vector<120x241xf32>
    %c60_i32_15 = arith.constant 60 : i32
    %45 = vector.broadcast %c60_i32_15 : i32 to vector<120x241xi32>
    %46 = arith.cmpi sge, %29, %45 : vector<120x241xi32>
    %c120_i32 = arith.constant 120 : i32
    %47 = vector.broadcast %c120_i32 : i32 to vector<120x241xi32>
    %48 = arith.cmpi slt, %29, %47 : vector<120x241xi32>
    %49 = arith.andi %46, %48 : vector<120x241xi1>
    %c2_i32_16 = arith.constant 2 : i32
    %50 = vector.broadcast %c2_i32_16 : i32 to vector<120x241xi32>
    %51 = arith.muli %50, %29 : vector<120x241xi32>
    %c1_i32 = arith.constant 1 : i32
    %52 = vector.broadcast %c1_i32 : i32 to vector<120x241xi32>
    %53 = arith.addi %51, %52 : vector<120x241xi32>
    %54 = arith.cmpi eq, %30, %53 : vector<120x241xi32>
    %55 = arith.andi %49, %54 : vector<120x241xi1>
    %cst_17 = arith.constant 1.000000e+00 : f32
    %56 = vector.broadcast %cst_17 : f32 to vector<120x241xf32>
    %57 = arith.select %55, %56, %44 : vector<120x241xi1>, vector<120x241xf32>
    %58 = vector.extract_strided_slice %28 {offsets = [0, 0], sizes = [241, 64], strides = [1, 1]} : vector<242x64xf32> to vector<241x64xf32>
    %59 = vector.extract_strided_slice %28 {offsets = [1, 0], sizes = [241, 64], strides = [1, 1]} : vector<242x64xf32> to vector<241x64xf32>
    %60 = arith.maximumf %58, %59 : vector<241x64xf32>
    %cst_18 = arith.constant dense<0.000000e+00> : vector<120x64xf32>
    %61 = tpu.matmul %57, %60, %cst_18 {dimension_numbers = #tpu.dot_dimension_numbers<[1], [0], [0], [1], [0, 0, 1, 1], [], []>} : vector<120x241xf32>, vector<241x64xf32>, vector<120x64xf32> -> vector<120x64xf32>
    %62 = vector.extract_strided_slice %61 {offsets = [0, 0], sizes = [60, 64], strides = [1, 1]} : vector<120x64xf32> to vector<60x64xf32>
    %63 = vector.extract_strided_slice %61 {offsets = [60, 0], sizes = [60, 64], strides = [1, 1]} : vector<120x64xf32> to vector<60x64xf32>
    %c1 = arith.constant 1 : index
    %c0_19 = arith.constant 0 : index
    %c0_20 = arith.constant 0 : index
    %64 = vector.load %arg1[%c1, %c0_19, %c0_20] : memref<5x192x64xf32, #tpu.memory_space<vmem>>, vector<1x192x64xf32>
    %65 = vector.shape_cast %64 : vector<1x192x64xf32> to vector<192x64xf32>
    %66 = vector.extract_strided_slice %62 {offsets = [0, 0], sizes = [58, 64], strides = [1, 1]} : vector<60x64xf32> to vector<58x64xf32>
    %67 = vector.extract_strided_slice %62 {offsets = [1, 0], sizes = [58, 64], strides = [1, 1]} : vector<60x64xf32> to vector<58x64xf32>
    %68 = vector.extract_strided_slice %62 {offsets = [2, 0], sizes = [58, 64], strides = [1, 1]} : vector<60x64xf32> to vector<58x64xf32>
    %69 = tpu.concatenate %66, %67, %68 in 1 : vector<58x64xf32>, vector<58x64xf32>, vector<58x64xf32> -> vector<58x192xf32>
    %cst_21 = arith.constant dense<0.000000e+00> : vector<58x64xf32>
    %70 = tpu.matmul %69, %65, %cst_21 {dimension_numbers = #tpu.dot_dimension_numbers<[1], [0], [0], [1], [0, 0, 1, 1], [], []>} : vector<58x192xf32>, vector<192x64xf32>, vector<58x64xf32> -> vector<58x64xf32>
    %71 = vector.extract_strided_slice %63 {offsets = [0, 0], sizes = [58, 64], strides = [1, 1]} : vector<60x64xf32> to vector<58x64xf32>
    %72 = vector.extract_strided_slice %63 {offsets = [1, 0], sizes = [58, 64], strides = [1, 1]} : vector<60x64xf32> to vector<58x64xf32>
    %73 = vector.extract_strided_slice %63 {offsets = [2, 0], sizes = [58, 64], strides = [1, 1]} : vector<60x64xf32> to vector<58x64xf32>
    %74 = tpu.concatenate %71, %72, %73 in 1 : vector<58x64xf32>, vector<58x64xf32>, vector<58x64xf32> -> vector<58x192xf32>
    %cst_22 = arith.constant dense<0.000000e+00> : vector<58x64xf32>
    %75 = tpu.matmul %74, %65, %cst_22 {dimension_numbers = #tpu.dot_dimension_numbers<[1], [0], [0], [1], [0, 0, 1, 1], [], []>} : vector<58x192xf32>, vector<192x64xf32>, vector<58x64xf32> -> vector<58x64xf32>
    %76 = vector.extract_strided_slice %0 {offsets = [1, 0], sizes = [1, 64], strides = [1, 1]} : vector<5x128xf32> to vector<1x64xf32>
    %77 = vector.extract_strided_slice %0 {offsets = [1, 64], sizes = [1, 64], strides = [1, 1]} : vector<5x128xf32> to vector<1x64xf32>
    %cst_23 = arith.constant dense<0.000000e+00> : vector<64xf32>
    %78 = vector.multi_reduction <add>, %70, %cst_23 [0] : vector<58x64xf32> to vector<64xf32>
    %79 = vector.shape_cast %78 : vector<64xf32> to vector<1x64xf32>
    %cst_24 = arith.constant dense<0.000000e+00> : vector<64xf32>
    %80 = vector.multi_reduction <add>, %75, %cst_24 [0] : vector<58x64xf32> to vector<64xf32>
    %81 = vector.shape_cast %80 : vector<64xf32> to vector<1x64xf32>
    %82 = arith.addf %79, %81 : vector<1x64xf32>
    %cst_25 = arith.constant 8.620690e-03 : f32
    %83 = vector.broadcast %cst_25 : f32 to vector<1x64xf32>
    %84 = arith.mulf %82, %83 : vector<1x64xf32>
    %85 = vector.broadcast %84 : vector<1x64xf32> to vector<58x64xf32>
    %86 = arith.subf %70, %85 : vector<58x64xf32>
    %87 = vector.broadcast %84 : vector<1x64xf32> to vector<58x64xf32>
    %88 = arith.subf %75, %87 : vector<58x64xf32>
    %89 = arith.mulf %86, %86 : vector<58x64xf32>
    %cst_26 = arith.constant dense<0.000000e+00> : vector<64xf32>
    %90 = vector.multi_reduction <add>, %89, %cst_26 [0] : vector<58x64xf32> to vector<64xf32>
    %91 = vector.shape_cast %90 : vector<64xf32> to vector<1x64xf32>
    %92 = arith.mulf %88, %88 : vector<58x64xf32>
    %cst_27 = arith.constant dense<0.000000e+00> : vector<64xf32>
    %93 = vector.multi_reduction <add>, %92, %cst_27 [0] : vector<58x64xf32> to vector<64xf32>
    %94 = vector.shape_cast %93 : vector<64xf32> to vector<1x64xf32>
    %95 = arith.addf %91, %94 : vector<1x64xf32>
    %cst_28 = arith.constant 8.620690e-03 : f32
    %96 = vector.broadcast %cst_28 : f32 to vector<1x64xf32>
    %97 = arith.mulf %95, %96 : vector<1x64xf32>
    %cst_29 = arith.constant 9.99999974E-6 : f32
    %98 = vector.broadcast %cst_29 : f32 to vector<1x64xf32>
    %99 = arith.addf %97, %98 : vector<1x64xf32>
    %100 = math.rsqrt %99 : vector<1x64xf32>
    %101 = arith.mulf %76, %100 : vector<1x64xf32>
    %102 = vector.broadcast %101 : vector<1x64xf32> to vector<58x64xf32>
    %103 = arith.mulf %86, %102 : vector<58x64xf32>
    %104 = vector.broadcast %77 : vector<1x64xf32> to vector<58x64xf32>
    %105 = arith.addf %103, %104 : vector<58x64xf32>
    %cst_30 = arith.constant 0.000000e+00 : f32
    %106 = vector.broadcast %cst_30 : f32 to vector<58x64xf32>
    %107 = arith.maximumf %105, %106 : vector<58x64xf32>
    %108 = vector.broadcast %101 : vector<1x64xf32> to vector<58x64xf32>
    %109 = arith.mulf %88, %108 : vector<58x64xf32>
    %110 = vector.broadcast %77 : vector<1x64xf32> to vector<58x64xf32>
    %111 = arith.addf %109, %110 : vector<58x64xf32>
    %cst_31 = arith.constant 0.000000e+00 : f32
    %112 = vector.broadcast %cst_31 : f32 to vector<58x64xf32>
    %113 = arith.maximumf %111, %112 : vector<58x64xf32>
    %114 = tpu.iota {dimensions = array<i32: 0>} : vector<29x57xi32>
    %115 = tpu.iota {dimensions = array<i32: 1>} : vector<29x57xi32>
    %c2_i32_32 = arith.constant 2 : i32
    %116 = vector.broadcast %c2_i32_32 : i32 to vector<29x57xi32>
    %117 = arith.muli %116, %114 : vector<29x57xi32>
    %118 = arith.cmpi eq, %115, %117 : vector<29x57xi32>
    %cst_33 = arith.constant 1.000000e+00 : f32
    %cst_34 = arith.constant 0.000000e+00 : f32
    %119 = vector.broadcast %cst_33 : f32 to vector<29x57xf32>
    %120 = vector.broadcast %cst_34 : f32 to vector<29x57xf32>
    %121 = arith.select %118, %119, %120 : vector<29x57xi1>, vector<29x57xf32>
    %122 = vector.extract_strided_slice %107 {offsets = [0, 0], sizes = [57, 64], strides = [1, 1]} : vector<58x64xf32> to vector<57x64xf32>
    %123 = vector.extract_strided_slice %107 {offsets = [1, 0], sizes = [57, 64], strides = [1, 1]} : vector<58x64xf32> to vector<57x64xf32>
    %124 = arith.maximumf %122, %123 : vector<57x64xf32>
    %cst_35 = arith.constant dense<0.000000e+00> : vector<29x64xf32>
    %125 = tpu.matmul %121, %124, %cst_35 {dimension_numbers = #tpu.dot_dimension_numbers<[1], [0], [0], [1], [0, 0, 1, 1], [], []>} : vector<29x57xf32>, vector<57x64xf32>, vector<29x64xf32> -> vector<29x64xf32>
    %126 = vector.extract_strided_slice %113 {offsets = [0, 0], sizes = [57, 64], strides = [1, 1]} : vector<58x64xf32> to vector<57x64xf32>
    %127 = vector.extract_strided_slice %113 {offsets = [1, 0], sizes = [57, 64], strides = [1, 1]} : vector<58x64xf32> to vector<57x64xf32>
    %128 = arith.maximumf %126, %127 : vector<57x64xf32>
    %cst_36 = arith.constant dense<0.000000e+00> : vector<29x64xf32>
    %129 = tpu.matmul %121, %128, %cst_36 {dimension_numbers = #tpu.dot_dimension_numbers<[1], [0], [0], [1], [0, 0, 1, 1], [], []>} : vector<29x57xf32>, vector<57x64xf32>, vector<29x64xf32> -> vector<29x64xf32>
    %c2 = arith.constant 2 : index
    %c0_37 = arith.constant 0 : index
    %c0_38 = arith.constant 0 : index
    %130 = vector.load %arg1[%c2, %c0_37, %c0_38] : memref<5x192x64xf32, #tpu.memory_space<vmem>>, vector<1x192x64xf32>
    %131 = vector.shape_cast %130 : vector<1x192x64xf32> to vector<192x64xf32>
    %132 = vector.extract_strided_slice %125 {offsets = [0, 0], sizes = [27, 64], strides = [1, 1]} : vector<29x64xf32> to vector<27x64xf32>
    %133 = vector.extract_strided_slice %125 {offsets = [1, 0], sizes = [27, 64], strides = [1, 1]} : vector<29x64xf32> to vector<27x64xf32>
    %134 = vector.extract_strided_slice %125 {offsets = [2, 0], sizes = [27, 64], strides = [1, 1]} : vector<29x64xf32> to vector<27x64xf32>
    %135 = tpu.concatenate %132, %133, %134 in 1 : vector<27x64xf32>, vector<27x64xf32>, vector<27x64xf32> -> vector<27x192xf32>
    %cst_39 = arith.constant dense<0.000000e+00> : vector<27x64xf32>
    %136 = tpu.matmul %135, %131, %cst_39 {dimension_numbers = #tpu.dot_dimension_numbers<[1], [0], [0], [1], [0, 0, 1, 1], [], []>} : vector<27x192xf32>, vector<192x64xf32>, vector<27x64xf32> -> vector<27x64xf32>
    %137 = vector.extract_strided_slice %129 {offsets = [0, 0], sizes = [27, 64], strides = [1, 1]} : vector<29x64xf32> to vector<27x64xf32>
    %138 = vector.extract_strided_slice %129 {offsets = [1, 0], sizes = [27, 64], strides = [1, 1]} : vector<29x64xf32> to vector<27x64xf32>
    %139 = vector.extract_strided_slice %129 {offsets = [2, 0], sizes = [27, 64], strides = [1, 1]} : vector<29x64xf32> to vector<27x64xf32>
    %140 = tpu.concatenate %137, %138, %139 in 1 : vector<27x64xf32>, vector<27x64xf32>, vector<27x64xf32> -> vector<27x192xf32>
    %cst_40 = arith.constant dense<0.000000e+00> : vector<27x64xf32>
    %141 = tpu.matmul %140, %131, %cst_40 {dimension_numbers = #tpu.dot_dimension_numbers<[1], [0], [0], [1], [0, 0, 1, 1], [], []>} : vector<27x192xf32>, vector<192x64xf32>, vector<27x64xf32> -> vector<27x64xf32>
    %142 = vector.extract_strided_slice %0 {offsets = [2, 0], sizes = [1, 64], strides = [1, 1]} : vector<5x128xf32> to vector<1x64xf32>
    %143 = vector.extract_strided_slice %0 {offsets = [2, 64], sizes = [1, 64], strides = [1, 1]} : vector<5x128xf32> to vector<1x64xf32>
    %cst_41 = arith.constant dense<0.000000e+00> : vector<64xf32>
    %144 = vector.multi_reduction <add>, %136, %cst_41 [0] : vector<27x64xf32> to vector<64xf32>
    %145 = vector.shape_cast %144 : vector<64xf32> to vector<1x64xf32>
    %cst_42 = arith.constant dense<0.000000e+00> : vector<64xf32>
    %146 = vector.multi_reduction <add>, %141, %cst_42 [0] : vector<27x64xf32> to vector<64xf32>
    %147 = vector.shape_cast %146 : vector<64xf32> to vector<1x64xf32>
    %148 = arith.addf %145, %147 : vector<1x64xf32>
    %cst_43 = arith.constant 0.0185185187 : f32
    %149 = vector.broadcast %cst_43 : f32 to vector<1x64xf32>
    %150 = arith.mulf %148, %149 : vector<1x64xf32>
    %151 = vector.broadcast %150 : vector<1x64xf32> to vector<27x64xf32>
    %152 = arith.subf %136, %151 : vector<27x64xf32>
    %153 = vector.broadcast %150 : vector<1x64xf32> to vector<27x64xf32>
    %154 = arith.subf %141, %153 : vector<27x64xf32>
    %155 = arith.mulf %152, %152 : vector<27x64xf32>
    %cst_44 = arith.constant dense<0.000000e+00> : vector<64xf32>
    %156 = vector.multi_reduction <add>, %155, %cst_44 [0] : vector<27x64xf32> to vector<64xf32>
    %157 = vector.shape_cast %156 : vector<64xf32> to vector<1x64xf32>
    %158 = arith.mulf %154, %154 : vector<27x64xf32>
    %cst_45 = arith.constant dense<0.000000e+00> : vector<64xf32>
    %159 = vector.multi_reduction <add>, %158, %cst_45 [0] : vector<27x64xf32> to vector<64xf32>
    %160 = vector.shape_cast %159 : vector<64xf32> to vector<1x64xf32>
    %161 = arith.addf %157, %160 : vector<1x64xf32>
    %cst_46 = arith.constant 0.0185185187 : f32
    %162 = vector.broadcast %cst_46 : f32 to vector<1x64xf32>
    %163 = arith.mulf %161, %162 : vector<1x64xf32>
    %cst_47 = arith.constant 9.99999974E-6 : f32
    %164 = vector.broadcast %cst_47 : f32 to vector<1x64xf32>
    %165 = arith.addf %163, %164 : vector<1x64xf32>
    %166 = math.rsqrt %165 : vector<1x64xf32>
    %167 = arith.mulf %142, %166 : vector<1x64xf32>
    %168 = vector.broadcast %167 : vector<1x64xf32> to vector<27x64xf32>
    %169 = arith.mulf %152, %168 : vector<27x64xf32>
    %170 = vector.broadcast %143 : vector<1x64xf32> to vector<27x64xf32>
    %171 = arith.addf %169, %170 : vector<27x64xf32>
    %cst_48 = arith.constant 0.000000e+00 : f32
    %172 = vector.broadcast %cst_48 : f32 to vector<27x64xf32>
    %173 = arith.maximumf %171, %172 : vector<27x64xf32>
    %174 = vector.broadcast %167 : vector<1x64xf32> to vector<27x64xf32>
    %175 = arith.mulf %154, %174 : vector<27x64xf32>
    %176 = vector.broadcast %143 : vector<1x64xf32> to vector<27x64xf32>
    %177 = arith.addf %175, %176 : vector<27x64xf32>
    %cst_49 = arith.constant 0.000000e+00 : f32
    %178 = vector.broadcast %cst_49 : f32 to vector<27x64xf32>
    %179 = arith.maximumf %177, %178 : vector<27x64xf32>
    %180 = tpu.iota {dimensions = array<i32: 0>} : vector<13x26xi32>
    %181 = tpu.iota {dimensions = array<i32: 1>} : vector<13x26xi32>
    %c2_i32_50 = arith.constant 2 : i32
    %182 = vector.broadcast %c2_i32_50 : i32 to vector<13x26xi32>
    %183 = arith.muli %182, %180 : vector<13x26xi32>
    %184 = arith.cmpi eq, %181, %183 : vector<13x26xi32>
    %cst_51 = arith.constant 1.000000e+00 : f32
    %cst_52 = arith.constant 0.000000e+00 : f32
    %185 = vector.broadcast %cst_51 : f32 to vector<13x26xf32>
    %186 = vector.broadcast %cst_52 : f32 to vector<13x26xf32>
    %187 = arith.select %184, %185, %186 : vector<13x26xi1>, vector<13x26xf32>
    %188 = vector.extract_strided_slice %173 {offsets = [0, 0], sizes = [26, 64], strides = [1, 1]} : vector<27x64xf32> to vector<26x64xf32>
    %189 = vector.extract_strided_slice %173 {offsets = [1, 0], sizes = [26, 64], strides = [1, 1]} : vector<27x64xf32> to vector<26x64xf32>
    %190 = arith.maximumf %188, %189 : vector<26x64xf32>
    %cst_53 = arith.constant dense<0.000000e+00> : vector<13x64xf32>
    %191 = tpu.matmul %187, %190, %cst_53 {dimension_numbers = #tpu.dot_dimension_numbers<[1], [0], [0], [1], [0, 0, 1, 1], [], []>} : vector<13x26xf32>, vector<26x64xf32>, vector<13x64xf32> -> vector<13x64xf32>
    %192 = vector.extract_strided_slice %179 {offsets = [0, 0], sizes = [26, 64], strides = [1, 1]} : vector<27x64xf32> to vector<26x64xf32>
    %193 = vector.extract_strided_slice %179 {offsets = [1, 0], sizes = [26, 64], strides = [1, 1]} : vector<27x64xf32> to vector<26x64xf32>
    %194 = arith.maximumf %192, %193 : vector<26x64xf32>
    %cst_54 = arith.constant dense<0.000000e+00> : vector<13x64xf32>
    %195 = tpu.matmul %187, %194, %cst_54 {dimension_numbers = #tpu.dot_dimension_numbers<[1], [0], [0], [1], [0, 0, 1, 1], [], []>} : vector<13x26xf32>, vector<26x64xf32>, vector<13x64xf32> -> vector<13x64xf32>
    %c3 = arith.constant 3 : index
    %c0_55 = arith.constant 0 : index
    %c0_56 = arith.constant 0 : index
    %196 = vector.load %arg1[%c3, %c0_55, %c0_56] : memref<5x192x64xf32, #tpu.memory_space<vmem>>, vector<1x192x64xf32>
    %197 = vector.shape_cast %196 : vector<1x192x64xf32> to vector<192x64xf32>
    %198 = vector.extract_strided_slice %191 {offsets = [0, 0], sizes = [11, 64], strides = [1, 1]} : vector<13x64xf32> to vector<11x64xf32>
    %199 = vector.extract_strided_slice %191 {offsets = [1, 0], sizes = [11, 64], strides = [1, 1]} : vector<13x64xf32> to vector<11x64xf32>
    %200 = vector.extract_strided_slice %191 {offsets = [2, 0], sizes = [11, 64], strides = [1, 1]} : vector<13x64xf32> to vector<11x64xf32>
    %201 = tpu.concatenate %198, %199, %200 in 1 : vector<11x64xf32>, vector<11x64xf32>, vector<11x64xf32> -> vector<11x192xf32>
    %cst_57 = arith.constant dense<0.000000e+00> : vector<11x64xf32>
    %202 = tpu.matmul %201, %197, %cst_57 {dimension_numbers = #tpu.dot_dimension_numbers<[1], [0], [0], [1], [0, 0, 1, 1], [], []>} : vector<11x192xf32>, vector<192x64xf32>, vector<11x64xf32> -> vector<11x64xf32>
    %203 = vector.extract_strided_slice %195 {offsets = [0, 0], sizes = [11, 64], strides = [1, 1]} : vector<13x64xf32> to vector<11x64xf32>
    %204 = vector.extract_strided_slice %195 {offsets = [1, 0], sizes = [11, 64], strides = [1, 1]} : vector<13x64xf32> to vector<11x64xf32>
    %205 = vector.extract_strided_slice %195 {offsets = [2, 0], sizes = [11, 64], strides = [1, 1]} : vector<13x64xf32> to vector<11x64xf32>
    %206 = tpu.concatenate %203, %204, %205 in 1 : vector<11x64xf32>, vector<11x64xf32>, vector<11x64xf32> -> vector<11x192xf32>
    %cst_58 = arith.constant dense<0.000000e+00> : vector<11x64xf32>
    %207 = tpu.matmul %206, %197, %cst_58 {dimension_numbers = #tpu.dot_dimension_numbers<[1], [0], [0], [1], [0, 0, 1, 1], [], []>} : vector<11x192xf32>, vector<192x64xf32>, vector<11x64xf32> -> vector<11x64xf32>
    %208 = vector.extract_strided_slice %0 {offsets = [3, 0], sizes = [1, 64], strides = [1, 1]} : vector<5x128xf32> to vector<1x64xf32>
    %209 = vector.extract_strided_slice %0 {offsets = [3, 64], sizes = [1, 64], strides = [1, 1]} : vector<5x128xf32> to vector<1x64xf32>
    %cst_59 = arith.constant dense<0.000000e+00> : vector<64xf32>
    %210 = vector.multi_reduction <add>, %202, %cst_59 [0] : vector<11x64xf32> to vector<64xf32>
    %211 = vector.shape_cast %210 : vector<64xf32> to vector<1x64xf32>
    %cst_60 = arith.constant dense<0.000000e+00> : vector<64xf32>
    %212 = vector.multi_reduction <add>, %207, %cst_60 [0] : vector<11x64xf32> to vector<64xf32>
    %213 = vector.shape_cast %212 : vector<64xf32> to vector<1x64xf32>
    %214 = arith.addf %211, %213 : vector<1x64xf32>
    %cst_61 = arith.constant 0.0454545468 : f32
    %215 = vector.broadcast %cst_61 : f32 to vector<1x64xf32>
    %216 = arith.mulf %214, %215 : vector<1x64xf32>
    %217 = vector.broadcast %216 : vector<1x64xf32> to vector<11x64xf32>
    %218 = arith.subf %202, %217 : vector<11x64xf32>
    %219 = vector.broadcast %216 : vector<1x64xf32> to vector<11x64xf32>
    %220 = arith.subf %207, %219 : vector<11x64xf32>
    %221 = arith.mulf %218, %218 : vector<11x64xf32>
    %cst_62 = arith.constant dense<0.000000e+00> : vector<64xf32>
    %222 = vector.multi_reduction <add>, %221, %cst_62 [0] : vector<11x64xf32> to vector<64xf32>
    %223 = vector.shape_cast %222 : vector<64xf32> to vector<1x64xf32>
    %224 = arith.mulf %220, %220 : vector<11x64xf32>
    %cst_63 = arith.constant dense<0.000000e+00> : vector<64xf32>
    %225 = vector.multi_reduction <add>, %224, %cst_63 [0] : vector<11x64xf32> to vector<64xf32>
    %226 = vector.shape_cast %225 : vector<64xf32> to vector<1x64xf32>
    %227 = arith.addf %223, %226 : vector<1x64xf32>
    %cst_64 = arith.constant 0.0454545468 : f32
    %228 = vector.broadcast %cst_64 : f32 to vector<1x64xf32>
    %229 = arith.mulf %227, %228 : vector<1x64xf32>
    %cst_65 = arith.constant 9.99999974E-6 : f32
    %230 = vector.broadcast %cst_65 : f32 to vector<1x64xf32>
    %231 = arith.addf %229, %230 : vector<1x64xf32>
    %232 = math.rsqrt %231 : vector<1x64xf32>
    %233 = arith.mulf %208, %232 : vector<1x64xf32>
    %234 = vector.broadcast %233 : vector<1x64xf32> to vector<11x64xf32>
    %235 = arith.mulf %218, %234 : vector<11x64xf32>
    %236 = vector.broadcast %209 : vector<1x64xf32> to vector<11x64xf32>
    %237 = arith.addf %235, %236 : vector<11x64xf32>
    %cst_66 = arith.constant 0.000000e+00 : f32
    %238 = vector.broadcast %cst_66 : f32 to vector<11x64xf32>
    %239 = arith.maximumf %237, %238 : vector<11x64xf32>
    %240 = vector.broadcast %233 : vector<1x64xf32> to vector<11x64xf32>
    %241 = arith.mulf %220, %240 : vector<11x64xf32>
    %242 = vector.broadcast %209 : vector<1x64xf32> to vector<11x64xf32>
    %243 = arith.addf %241, %242 : vector<11x64xf32>
    %cst_67 = arith.constant 0.000000e+00 : f32
    %244 = vector.broadcast %cst_67 : f32 to vector<11x64xf32>
    %245 = arith.maximumf %243, %244 : vector<11x64xf32>
    %246 = tpu.iota {dimensions = array<i32: 0>} : vector<5x10xi32>
    %247 = tpu.iota {dimensions = array<i32: 1>} : vector<5x10xi32>
    %c2_i32_68 = arith.constant 2 : i32
    %248 = vector.broadcast %c2_i32_68 : i32 to vector<5x10xi32>
    %249 = arith.muli %248, %246 : vector<5x10xi32>
    %250 = arith.cmpi eq, %247, %249 : vector<5x10xi32>
    %cst_69 = arith.constant 1.000000e+00 : f32
    %cst_70 = arith.constant 0.000000e+00 : f32
    %251 = vector.broadcast %cst_69 : f32 to vector<5x10xf32>
    %252 = vector.broadcast %cst_70 : f32 to vector<5x10xf32>
    %253 = arith.select %250, %251, %252 : vector<5x10xi1>, vector<5x10xf32>
    %254 = vector.extract_strided_slice %239 {offsets = [0, 0], sizes = [10, 64], strides = [1, 1]} : vector<11x64xf32> to vector<10x64xf32>
    %255 = vector.extract_strided_slice %239 {offsets = [1, 0], sizes = [10, 64], strides = [1, 1]} : vector<11x64xf32> to vector<10x64xf32>
    %256 = arith.maximumf %254, %255 : vector<10x64xf32>
    %cst_71 = arith.constant dense<0.000000e+00> : vector<5x64xf32>
    %257 = tpu.matmul %253, %256, %cst_71 {dimension_numbers = #tpu.dot_dimension_numbers<[1], [0], [0], [1], [0, 0, 1, 1], [], []>} : vector<5x10xf32>, vector<10x64xf32>, vector<5x64xf32> -> vector<5x64xf32>
    %258 = vector.extract_strided_slice %245 {offsets = [0, 0], sizes = [10, 64], strides = [1, 1]} : vector<11x64xf32> to vector<10x64xf32>
    %259 = vector.extract_strided_slice %245 {offsets = [1, 0], sizes = [10, 64], strides = [1, 1]} : vector<11x64xf32> to vector<10x64xf32>
    %260 = arith.maximumf %258, %259 : vector<10x64xf32>
    %cst_72 = arith.constant dense<0.000000e+00> : vector<5x64xf32>
    %261 = tpu.matmul %253, %260, %cst_72 {dimension_numbers = #tpu.dot_dimension_numbers<[1], [0], [0], [1], [0, 0, 1, 1], [], []>} : vector<5x10xf32>, vector<10x64xf32>, vector<5x64xf32> -> vector<5x64xf32>
    %c4 = arith.constant 4 : index
    %c0_73 = arith.constant 0 : index
    %c0_74 = arith.constant 0 : index
    %262 = vector.load %arg1[%c4, %c0_73, %c0_74] : memref<5x192x64xf32, #tpu.memory_space<vmem>>, vector<1x192x64xf32>
    %263 = vector.shape_cast %262 : vector<1x192x64xf32> to vector<192x64xf32>
    %264 = vector.extract_strided_slice %257 {offsets = [0, 0], sizes = [3, 64], strides = [1, 1]} : vector<5x64xf32> to vector<3x64xf32>
    %265 = vector.extract_strided_slice %257 {offsets = [1, 0], sizes = [3, 64], strides = [1, 1]} : vector<5x64xf32> to vector<3x64xf32>
    %266 = vector.extract_strided_slice %257 {offsets = [2, 0], sizes = [3, 64], strides = [1, 1]} : vector<5x64xf32> to vector<3x64xf32>
    %267 = tpu.concatenate %264, %265, %266 in 1 : vector<3x64xf32>, vector<3x64xf32>, vector<3x64xf32> -> vector<3x192xf32>
    %cst_75 = arith.constant dense<0.000000e+00> : vector<3x64xf32>
    %268 = tpu.matmul %267, %263, %cst_75 {dimension_numbers = #tpu.dot_dimension_numbers<[1], [0], [0], [1], [0, 0, 1, 1], [], []>} : vector<3x192xf32>, vector<192x64xf32>, vector<3x64xf32> -> vector<3x64xf32>
    %269 = vector.extract_strided_slice %261 {offsets = [0, 0], sizes = [3, 64], strides = [1, 1]} : vector<5x64xf32> to vector<3x64xf32>
    %270 = vector.extract_strided_slice %261 {offsets = [1, 0], sizes = [3, 64], strides = [1, 1]} : vector<5x64xf32> to vector<3x64xf32>
    %271 = vector.extract_strided_slice %261 {offsets = [2, 0], sizes = [3, 64], strides = [1, 1]} : vector<5x64xf32> to vector<3x64xf32>
    %272 = tpu.concatenate %269, %270, %271 in 1 : vector<3x64xf32>, vector<3x64xf32>, vector<3x64xf32> -> vector<3x192xf32>
    %cst_76 = arith.constant dense<0.000000e+00> : vector<3x64xf32>
    %273 = tpu.matmul %272, %263, %cst_76 {dimension_numbers = #tpu.dot_dimension_numbers<[1], [0], [0], [1], [0, 0, 1, 1], [], []>} : vector<3x192xf32>, vector<192x64xf32>, vector<3x64xf32> -> vector<3x64xf32>
    %274 = vector.extract_strided_slice %0 {offsets = [4, 0], sizes = [1, 64], strides = [1, 1]} : vector<5x128xf32> to vector<1x64xf32>
    %275 = vector.extract_strided_slice %0 {offsets = [4, 64], sizes = [1, 64], strides = [1, 1]} : vector<5x128xf32> to vector<1x64xf32>
    %cst_77 = arith.constant dense<0.000000e+00> : vector<64xf32>
    %276 = vector.multi_reduction <add>, %268, %cst_77 [0] : vector<3x64xf32> to vector<64xf32>
    %277 = vector.shape_cast %276 : vector<64xf32> to vector<1x64xf32>
    %cst_78 = arith.constant dense<0.000000e+00> : vector<64xf32>
    %278 = vector.multi_reduction <add>, %273, %cst_78 [0] : vector<3x64xf32> to vector<64xf32>
    %279 = vector.shape_cast %278 : vector<64xf32> to vector<1x64xf32>
    %280 = arith.addf %277, %279 : vector<1x64xf32>
    %cst_79 = arith.constant 0.166666672 : f32
    %281 = vector.broadcast %cst_79 : f32 to vector<1x64xf32>
    %282 = arith.mulf %280, %281 : vector<1x64xf32>
    %283 = vector.broadcast %282 : vector<1x64xf32> to vector<3x64xf32>
    %284 = arith.subf %268, %283 : vector<3x64xf32>
    %285 = vector.broadcast %282 : vector<1x64xf32> to vector<3x64xf32>
    %286 = arith.subf %273, %285 : vector<3x64xf32>
    %287 = arith.mulf %284, %284 : vector<3x64xf32>
    %cst_80 = arith.constant dense<0.000000e+00> : vector<64xf32>
    %288 = vector.multi_reduction <add>, %287, %cst_80 [0] : vector<3x64xf32> to vector<64xf32>
    %289 = vector.shape_cast %288 : vector<64xf32> to vector<1x64xf32>
    %290 = arith.mulf %286, %286 : vector<3x64xf32>
    %cst_81 = arith.constant dense<0.000000e+00> : vector<64xf32>
    %291 = vector.multi_reduction <add>, %290, %cst_81 [0] : vector<3x64xf32> to vector<64xf32>
    %292 = vector.shape_cast %291 : vector<64xf32> to vector<1x64xf32>
    %293 = arith.addf %289, %292 : vector<1x64xf32>
    %cst_82 = arith.constant 0.166666672 : f32
    %294 = vector.broadcast %cst_82 : f32 to vector<1x64xf32>
    %295 = arith.mulf %293, %294 : vector<1x64xf32>
    %cst_83 = arith.constant 9.99999974E-6 : f32
    %296 = vector.broadcast %cst_83 : f32 to vector<1x64xf32>
    %297 = arith.addf %295, %296 : vector<1x64xf32>
    %298 = math.rsqrt %297 : vector<1x64xf32>
    %299 = arith.mulf %274, %298 : vector<1x64xf32>
    %300 = vector.broadcast %299 : vector<1x64xf32> to vector<3x64xf32>
    %301 = arith.mulf %284, %300 : vector<3x64xf32>
    %302 = vector.broadcast %275 : vector<1x64xf32> to vector<3x64xf32>
    %303 = arith.addf %301, %302 : vector<3x64xf32>
    %cst_84 = arith.constant 0.000000e+00 : f32
    %304 = vector.broadcast %cst_84 : f32 to vector<3x64xf32>
    %305 = arith.maximumf %303, %304 : vector<3x64xf32>
    %306 = vector.broadcast %299 : vector<1x64xf32> to vector<3x64xf32>
    %307 = arith.mulf %286, %306 : vector<3x64xf32>
    %308 = vector.broadcast %275 : vector<1x64xf32> to vector<3x64xf32>
    %309 = arith.addf %307, %308 : vector<3x64xf32>
    %cst_85 = arith.constant 0.000000e+00 : f32
    %310 = vector.broadcast %cst_85 : f32 to vector<3x64xf32>
    %311 = arith.maximumf %309, %310 : vector<3x64xf32>
    %312 = tpu.iota {dimensions = array<i32: 0>} : vector<1x2xi32>
    %313 = tpu.iota {dimensions = array<i32: 1>} : vector<1x2xi32>
    %c2_i32_86 = arith.constant 2 : i32
    %314 = vector.broadcast %c2_i32_86 : i32 to vector<1x2xi32>
    %315 = arith.muli %314, %312 : vector<1x2xi32>
    %316 = arith.cmpi eq, %313, %315 : vector<1x2xi32>
    %cst_87 = arith.constant 1.000000e+00 : f32
    %cst_88 = arith.constant 0.000000e+00 : f32
    %317 = vector.broadcast %cst_87 : f32 to vector<1x2xf32>
    %318 = vector.broadcast %cst_88 : f32 to vector<1x2xf32>
    %319 = arith.select %316, %317, %318 : vector<1x2xi1>, vector<1x2xf32>
    %320 = vector.extract_strided_slice %305 {offsets = [0, 0], sizes = [2, 64], strides = [1, 1]} : vector<3x64xf32> to vector<2x64xf32>
    %321 = vector.extract_strided_slice %305 {offsets = [1, 0], sizes = [2, 64], strides = [1, 1]} : vector<3x64xf32> to vector<2x64xf32>
    %322 = arith.maximumf %320, %321 : vector<2x64xf32>
    %cst_89 = arith.constant dense<0.000000e+00> : vector<1x64xf32>
    %323 = tpu.matmul %319, %322, %cst_89 {dimension_numbers = #tpu.dot_dimension_numbers<[1], [0], [0], [1], [0, 0, 1, 1], [], []>} : vector<1x2xf32>, vector<2x64xf32>, vector<1x64xf32> -> vector<1x64xf32>
    %324 = vector.extract_strided_slice %311 {offsets = [0, 0], sizes = [2, 64], strides = [1, 1]} : vector<3x64xf32> to vector<2x64xf32>
    %325 = vector.extract_strided_slice %311 {offsets = [1, 0], sizes = [2, 64], strides = [1, 1]} : vector<3x64xf32> to vector<2x64xf32>
    %326 = arith.maximumf %324, %325 : vector<2x64xf32>
    %cst_90 = arith.constant dense<0.000000e+00> : vector<1x64xf32>
    %327 = tpu.matmul %319, %326, %cst_90 {dimension_numbers = #tpu.dot_dimension_numbers<[1], [0], [0], [1], [0, 0, 1, 1], [], []>} : vector<1x2xf32>, vector<2x64xf32>, vector<1x64xf32> -> vector<1x64xf32>
    %c0_91 = arith.constant 0 : index
    %c0_92 = arith.constant 0 : index
    %328 = vector.load %arg3[%c0_91, %c0_92] : memref<192x128xf32, #tpu.memory_space<vmem>>, vector<64x128xf32>
    %c64 = arith.constant 64 : index
    %c0_93 = arith.constant 0 : index
    %329 = vector.load %arg3[%c64, %c0_93] : memref<192x128xf32, #tpu.memory_space<vmem>>, vector<128x64xf32>
    %c0_94 = arith.constant 0 : index
    %c0_95 = arith.constant 0 : index
    %330 = vector.load %arg4[%c0_94, %c0_95] : memref<2x128xf32, #tpu.memory_space<vmem>>, vector<2x128xf32>
    %331 = vector.extract_strided_slice %330 {offsets = [0, 0], sizes = [1, 128], strides = [1, 1]} : vector<2x128xf32> to vector<1x128xf32>
    %332 = vector.extract_strided_slice %330 {offsets = [1, 0], sizes = [1, 64], strides = [1, 1]} : vector<2x128xf32> to vector<1x64xf32>
    %cst_96 = arith.constant dense<0.000000e+00> : vector<1x128xf32>
    %333 = tpu.matmul %323, %328, %cst_96 {dimension_numbers = #tpu.dot_dimension_numbers<[1], [0], [0], [1], [0, 0, 1, 1], [], []>} : vector<1x64xf32>, vector<64x128xf32>, vector<1x128xf32> -> vector<1x128xf32>
    %334 = arith.addf %333, %331 : vector<1x128xf32>
    %cst_97 = arith.constant 0.000000e+00 : f32
    %335 = vector.broadcast %cst_97 : f32 to vector<1x128xf32>
    %336 = arith.maximumf %334, %335 : vector<1x128xf32>
    %cst_98 = arith.constant dense<0.000000e+00> : vector<1x64xf32>
    %337 = tpu.matmul %336, %329, %cst_98 {dimension_numbers = #tpu.dot_dimension_numbers<[1], [0], [0], [1], [0, 0, 1, 1], [], []>} : vector<1x128xf32>, vector<128x64xf32>, vector<1x64xf32> -> vector<1x64xf32>
    %338 = arith.addf %337, %332 : vector<1x64xf32>
    %339 = tpu.concatenate %323, %338 in 1 : vector<1x64xf32>, vector<1x64xf32> -> vector<1x128xf32>
    %c0_99 = arith.constant 0 : index
    %c0_100 = arith.constant 0 : index
    %340 = vector.load %arg5[%c0_99, %c0_100] : memref<2x128xf32, #tpu.memory_space<vmem>>, vector<1x128xf32>
    tpu.vector_store %arg5[%c0_99, %c0_100], %339 {strides = array<i32>} : memref<2x128xf32, #tpu.memory_space<vmem>>, vector<1x128xf32>,
    %cst_101 = arith.constant dense<0.000000e+00> : vector<1x128xf32>
    %341 = tpu.matmul %327, %328, %cst_101 {dimension_numbers = #tpu.dot_dimension_numbers<[1], [0], [0], [1], [0, 0, 1, 1], [], []>} : vector<1x64xf32>, vector<64x128xf32>, vector<1x128xf32> -> vector<1x128xf32>
    %342 = arith.addf %341, %331 : vector<1x128xf32>
    %cst_102 = arith.constant 0.000000e+00 : f32
    %343 = vector.broadcast %cst_102 : f32 to vector<1x128xf32>
    %344 = arith.maximumf %342, %343 : vector<1x128xf32>
    %cst_103 = arith.constant dense<0.000000e+00> : vector<1x64xf32>
    %345 = tpu.matmul %344, %329, %cst_103 {dimension_numbers = #tpu.dot_dimension_numbers<[1], [0], [0], [1], [0, 0, 1, 1], [], []>} : vector<1x128xf32>, vector<128x64xf32>, vector<1x64xf32> -> vector<1x64xf32>
    %346 = arith.addf %345, %332 : vector<1x64xf32>
    %347 = tpu.concatenate %327, %346 in 1 : vector<1x64xf32>, vector<1x64xf32> -> vector<1x128xf32>
    %c1_104 = arith.constant 1 : index
    %c0_105 = arith.constant 0 : index
    %348 = vector.load %arg5[%c1_104, %c0_105] : memref<2x128xf32, #tpu.memory_space<vmem>>, vector<1x128xf32>
    tpu.vector_store %arg5[%c1_104, %c0_105], %347 {strides = array<i32>} : memref<2x128xf32, #tpu.memory_space<vmem>>, vector<1x128xf32>,
    return
  }
}

</mosaic_0001>

<llo_original>
// kernel: mscnn2_forward.1
$region0: #{mscnn2_forward.1}
  #allocation0 [shape = 'u32[]', space=smem, size = 0x4, offset = 0x4, fixed_abs, tag = 'smem constant byte address 0x4 - core index']
  #allocation1 [shape = 'u32[144,128]{1,0:T(1,128)}', space=vmem, size = 0x12000, scoped, tag = 'internal scratch']
  %s0 = inlined_call_operand.vmem [shape: f32[242,64], index: 0, kind: input, shape index: {}]
  %s1 = inlined_call_operand.vmem [shape: f32[5,192,64], index: 1, kind: input, shape index: {}]
  %s2 = inlined_call_operand.vmem [shape: f32[5,128], index: 2, kind: input, shape index: {}]
  %s3 = inlined_call_operand.vmem [shape: f32[192,128], index: 3, kind: input, shape index: {}]
  %s4 = inlined_call_operand.vmem [shape: f32[2,128], index: 4, kind: input, shape index: {}]
  %s5 = inlined_call_operand.vmem [shape: f32[2,128], index: 5, kind: output, shape index: {}]
  %s6 = sld [smem:[#allocation0]]
  $region30: #{mscnn2_forward.1} parent=0
    _
  %s8 = ssub.s32 1, %s6
  %s9 = scalar_select 0, %s8, %s6
  // Predicated region
  $region2: #{mscnn2_forward.1} parent=0 // pred_check
    _
  $region3: #{mscnn2_forward.1} parent=0 // pred_check_branch
    %11 = sbr.rel (0) target = $region5
  $region4: #{mscnn2_forward.1} parent=0 // pred_region
    _
  $region5: #{mscnn2_forward.1} parent=0 // pred_fallthru
    _
  // Predicated region
  $region6: #{mscnn2_forward.1} parent=0 // pred_check
    _
  $region7: #{mscnn2_forward.1} parent=0 // pred_check_branch
    %13 = sbr.rel (0) target = $region9
  $region8: #{mscnn2_forward.1} parent=0 // pred_region
    _
  $region9: #{mscnn2_forward.1} parent=0 // pred_fallthru
    _
  // Predicated region
  $region10: #{mscnn2_forward.1} parent=0 // pred_check
    _
  $region11: #{mscnn2_forward.1} parent=0 // pred_check_branch
    %15 = sbr.rel (0) target = $region13
  $region12: #{mscnn2_forward.1} parent=0 // pred_region
    _
  $region13: #{mscnn2_forward.1} parent=0 // pred_fallthru
    _
  // Predicated region
  $region14: #{mscnn2_forward.1} parent=0 // pred_check
    _
  $region15: #{mscnn2_forward.1} parent=0 // pred_check_branch
    %17 = sbr.rel (0) target = $region17
  $region16: #{mscnn2_forward.1} parent=0 // pred_region
    _
  $region17: #{mscnn2_forward.1} parent=0 // pred_fallthru
    _
  // Predicated region
  $region18: #{mscnn2_forward.1} parent=0 // pred_check
    _
  $region19: #{mscnn2_forward.1} parent=0 // pred_check_branch
    %19 = sbr.rel (0) target = $region21
  $region20: #{mscnn2_forward.1} parent=0 // pred_region
    _
  $region21: #{mscnn2_forward.1} parent=0 // pred_fallthru
    _
  %v20 = vld [vmem:[%s2] sm:$0x1f]
  %v21 = vld [vmem:[%s1] sm:$0xff]
  %v22 = vld [vmem:[%s1 + $0x8] sm:$0xff]
  %v23 = vld [vmem:[%s1 + $0x10] sm:$0xff]
  %v24 = vld [vmem:[%s1 + $0x18] sm:$0xff]
  %v25 = vld [vmem:[%s1 + $0x20] sm:$0xff]
  %v26 = vld [vmem:[%s1 + $0x28] sm:$0xff]
  %v27 = vld [vmem:[%s1 + $0x30] sm:$0xff]
  %v28 = vld [vmem:[%s1 + $0x38] sm:$0xff]
  %v29 = vld [vmem:[%s0] sm:$0xff]
  %v30 = vld [vmem:[%s0 + $0x8] sm:$0xff]
  %v31 = vld [vmem:[%s0 + $0x10] sm:$0xff]
  %v32 = vld [vmem:[%s0 + $0x18] sm:$0xff]
  %v33 = vld [vmem:[%s0 + $0x20] sm:$0xff]
  %v34 = vld [vmem:[%s0 + $0x28] sm:$0xff]
  %v35 = vld [vmem:[%s0 + $0x30] sm:$0xff]
  %v36 = vld [vmem:[%s0 + $0x38] sm:$0xff]
  %v37 = vld [vmem:[%s0 + $0x40] sm:$0xff]
  %v38 = vld [vmem:[%s0 + $0x48] sm:$0xff]
  %v39 = vld [vmem:[%s0 + $0x50] sm:$0xff]
  %v40 = vld [vmem:[%s0 + $0x58] sm:$0xff]
  %v41 = vld [vmem:[%s0 + $0x60] sm:$0xff]
  %v42 = vld [vmem:[%s0 + $0x68] sm:$0xff]
  %v43 = vld [vmem:[%s0 + $0x70] sm:$0xff]
  %v44 = vld [vmem:[%s0 + $0x78] sm:$0xff]
  %v45 = vld [vmem:[%s0 + $0x80] sm:$0xff]
  %v46 = vld [vmem:[%s0 + $0x88] sm:$0xff]
  %v47 = vld [vmem:[%s0 + $0x90] sm:$0xff]
  %v48 = vld [vmem:[%s0 + $0x98] sm:$0xff]
  %v49 = vld [vmem:[%s0 + $0xa0] sm:$0xff]
  %v50 = vld [vmem:[%s0 + $0xa8] sm:$0xff]
  %v51 = vld [vmem:[%s0 + $0xb0] sm:$0xff]
  %v52 = vld [vmem:[%s0 + $0xb8] sm:$0xff]
  %v53 = vld [vmem:[%s0 + $0xc0] sm:$0xff]
  %v54 = vld [vmem:[%s0 + $0xc8] sm:$0xff]
  %v55 = vld [vmem:[%s0 + $0xd0] sm:$0xff]
  %v56 = vld [vmem:[%s0 + $0xd8] sm:$0xff]
  %v57 = vld [vmem:[%s0 + $0xe0] sm:$0xff]
  %v58 = vld [vmem:[%s0 + $0xe8] sm:$0xff]
  %v59 = vld [vmem:[%s0 + $0xf0] sm:$0x3]
  %vm60 = vcmask 523264
  %v62 = vsel %vm60, %v29, 0
  %v65 = vsel %vm60, %v30, 0
  %v68 = vsel %vm60, %v31, 0
  %v71 = vsel %vm60, %v32, 0
  %v74 = vsel %vm60, %v33, 0
  %v77 = vsel %vm60, %v34, 0
  %v80 = vsel %vm60, %v35, 0
  %v83 = vsel %vm60, %v36, 0
  %v86 = vsel %vm60, %v37, 0
  %v89 = vsel %vm60, %v38, 0
  %v92 = vsel %vm60, %v39, 0
  %v95 = vsel %vm60, %v40, 0
  %v98 = vsel %vm60, %v41, 0
  %v101 = vsel %vm60, %v42, 0
  %v104 = vsel %vm60, %v43, 0
  %v107 = vsel %vm60, %v44, 0
  %v110 = vsel %vm60, %v45, 0
  %v113 = vsel %vm60, %v46, 0
  %v116 = vsel %vm60, %v47, 0
  %v119 = vsel %vm60, %v48, 0
  %v122 = vsel %vm60, %v49, 0
  %v125 = vsel %vm60, %v50, 0
  %v128 = vsel %vm60, %v51, 0
  %v131 = vsel %vm60, %v52, 0
  %v134 = vsel %vm60, %v53, 0
  %v137 = vsel %vm60, %v54, 0
  %v140 = vsel %vm60, %v55, 0
  %v143 = vsel %vm60, %v56, 0
  %v146 = vsel %vm60, %v57, 0
  %v149 = vsel %vm60, %v58, 0
  %v152 = vsel %vm60, %v59, 0
  %154 = vmatprep.subr.mxu0 0.0
  %155 = vmatpush1.msra.mxu0 %v21
  %156 = vmatprep.subr.mxu0 0.0
  %157 = vmatpush1.msra.mxu0 %v22
  %158 = vmatprep.subr.mxu0 0.0
  %159 = vmatpush1.msra.mxu0 %v23
  %160 = vmatprep.subr.mxu0 0.0
  %161 = vmatpush1.msra.mxu0 %v24
  %162 = vmatprep.subr.mxu0 0.0
  %163 = vmatpush1.msra.mxu0 %v25
  %164 = vmatprep.subr.mxu0 0.0
  %165 = vmatpush1.msra.mxu0 %v26
  %166 = vmatprep.subr.mxu0 0.0
  %167 = vmatpush1.msra.mxu0 %v27
  %168 = vmatprep.subr.mxu0 0.0
  %169 = vmatpush1.msra.mxu0 %v28
  %170 = vmatprep.subr.mxu0 0.0
  %171 = vmatpush1.msra.mxu0 0.0
  %172 = vmatprep.subr.mxu0 0.0
  %173 = vmatpush1.msra.mxu0 0.0
  %174 = vmatprep.subr.mxu0 0.0
  %175 = vmatpush1.msra.mxu0 0.0
  %176 = vmatprep.subr.mxu0 0.0
  %177 = vmatpush1.msra.mxu0 0.0
  %178 = vmatprep.subr.mxu0 0.0
  %179 = vmatpush1.msra.mxu0 0.0
  %180 = vmatprep.subr.mxu0 0.0
  %181 = vmatpush1.msra.mxu0 0.0
  %182 = vmatprep.subr.mxu0 0.0
  %183 = vmatpush1.msra.mxu0 0.0
  %184 = vmatprep.subr.mxu0 0.0
  %185 = vmatpush1.msra.mxu0 0.0
  %186 = vmatprep.subr.mxu0 0.0
  %187 = vmatpush1.msra.mxu0 0.0
  %188 = vmatprep.subr.mxu0 0.0
  %189 = vmatpush1.msra.mxu0 0.0
  %190 = vmatprep.subr.mxu0 0.0
  %191 = vmatpush1.msra.mxu0 0.0
  %192 = vmatprep.subr.mxu0 0.0
  %193 = vmatpush1.msra.mxu0 0.0
  %194 = vmatprep.subr.mxu0 0.0
  %195 = vmatpush1.msra.mxu0 0.0
  %196 = vmatprep.subr.mxu0 0.0
  %197 = vmatpush1.msra.mxu0 0.0
  %198 = vmatprep.subr.mxu0 0.0
  %199 = vmatpush1.msra.mxu0 0.0
  %200 = vmatprep.subr.mxu0 0.0
  %201 = vmatpush1.msra.mxu0 0.0
  %202 = vmatprep.subr.mxu0 0.0
  %203 = vmatpush1.msra.mxu0 0.0
  %204 = vmatprep.subr.mxu0 0.0
  %205 = vmatpush1.msra.mxu0 0.0
  %206 = vmatprep.subr.mxu0 0.0
  %207 = vmatpush1.msra.mxu0 0.0
  %208 = vmatprep.subr.mxu0 0.0
  %209 = vmatpush1.msra.mxu0 0.0
  %210 = vmatprep.subr.mxu0 0.0
  %211 = vmatpush1.msra.mxu0 0.0
  %212 = vmatprep.subr.mxu0 0.0
  %213 = vmatpush1.msra.mxu0 0.0
  %214 = vmatprep.subr.mxu0 0.0
  %215 = vmatpush1.msra.mxu0 0.0
  %216 = vmatprep.subr.mxu0 0.0
  %217 = vmatpush1.msra.mxu0 0.0
  %218 = vmatprep.mubr.f32.mxu0 0.0
  %219 = vmatmul.mubr.f32.gmra.mrb[0].mxu0 %v62
  %v220 = vpop.f32.mrb[0].mxu0
  %v221 = vadd.f32 0.0, %v220
  %v222 = vpop.f32.mrb[0].mxu0
  %223 = vmatprep.mubr.f32.mxu0 0.0
  %224 = vmatmul.mubr.f32.gmra.mrb[0].mxu0 %v65
  %v225 = vpop.f32.mrb[0].mxu0
  %v226 = vadd.f32 0.0, %v225
  %v227 = vpop.f32.mrb[0].mxu0
  %228 = vmatprep.mubr.f32.mxu0 0.0
  %229 = vmatmul.mubr.f32.gmra.mrb[0].mxu0 %v68
  %v230 = vpop.f32.mrb[0].mxu0
  %v231 = vadd.f32 0.0, %v230
  %v232 = vpop.f32.mrb[0].mxu0
  %233 = vmatprep.mubr.f32.mxu0 0.0
  %234 = vmatmul.mubr.f32.gmra.mrb[0].mxu0 %v71
  %v235 = vpop.f32.mrb[0].mxu0
  %v236 = vadd.f32 0.0, %v235
  %v237 = vpop.f32.mrb[0].mxu0
  %238 = vmatprep.mubr.f32.mxu0 0.0
  %239 = vmatmul.mubr.f32.gmra.mrb[0].mxu0 %v74
  %v240 = vpop.f32.mrb[0].mxu0
  %v241 = vadd.f32 0.0, %v240
  %v242 = vpop.f32.mrb[0].mxu0
  %243 = vmatprep.mubr.f32.mxu0 0.0
  %244 = vmatmul.mubr.f32.gmra.mrb[0].mxu0 %v77
  %v245 = vpop.f32.mrb[0].mxu0
  %v246 = vadd.f32 0.0, %v245
  %v247 = vpop.f32.mrb[0].mxu0
  %248 = vmatprep.mubr.f32.mxu0 0.0
  %249 = vmatmul.mubr.f32.gmra.mrb[0].mxu0 %v80
  %v250 = vpop.f32.mrb[0].mxu0
  %v251 = vadd.f32 0.0, %v250
  %v252 = vpop.f32.mrb[0].mxu0
  %253 = vmatprep.mubr.f32.mxu0 0.0
  %254 = vmatmul.mubr.f32.gmra.mrb[0].mxu0 %v83
  %v255 = vpop.f32.mrb[0].mxu0
  %v256 = vadd.f32 0.0, %v255
  %v257 = vpop.f32.mrb[0].mxu0
  %258 = vmatprep.mubr.f32.mxu0 0.0
  %259 = vmatmul.mubr.f32.gmra.mrb[0].mxu0 %v86
  %v260 = vpop.f32.mrb[0].mxu0
  %v261 = vadd.f32 0.0, %v260
  %v262 = vpop.f32.mrb[0].mxu0
  %263 = vmatprep.mubr.f32.mxu0 0.0
  %264 = vmatmul.mubr.f32.gmra.mrb[0].mxu0 %v89
  %v265 = vpop.f32.mrb[0].mxu0
  %v266 = vadd.f32 0.0, %v265
  %v267 = vpop.f32.mrb[0].mxu0
  %268 = vmatprep.mubr.f32.mxu0 0.0
  %269 = vmatmul.mubr.f32.gmra.mrb[0].mxu0 %v92
  %v270 = vpop.f32.mrb[0].mxu0
  %v271 = vadd.f32 0.0, %v270
  %v272 = vpop.f32.mrb[0].mxu0
  %273 = vmatprep.mubr.f32.mxu0 0.0
  %274 = vmatmul.mubr.f32.gmra.mrb[0].mxu0 %v95
  %v275 = vpop.f32.mrb[0].mxu0
  %v276 = vadd.f32 0.0, %v275
  %v277 = vpop.f32.mrb[0].mxu0
  %278 = vmatprep.mubr.f32.mxu0 0.0
  %279 = vmatmul.mubr.f32.gmra.mrb[0].mxu0 %v98
  %v280 = vpop.f32.mrb[0].mxu0
  %v281 = vadd.f32 0.0, %v280
  %v282 = vpop.f32.mrb[0].mxu0
  %283 = vmatprep.mubr.f32.mxu0 0.0
  %284 = vmatmul.mubr.f32.gmra.mrb[0].mxu0 %v101
  %v285 = vpop.f32.mrb[0].mxu0
  %v286 = vadd.f32 0.0, %v285
  %v287 = vpop.f32.mrb[0].mxu0
  %288 = vmatprep.mubr.f32.mxu0 0.0
  %289 = vmatmul.mubr.f32.gmra.mrb[0].mxu0 %v104
  %v290 = vpop.f32.mrb[0].mxu0
  %v291 = vadd.f32 0.0, %v290
  %v292 = vpop.f32.mrb[0].mxu0
  %293 = vmatprep.mubr.f32.mxu0 0.0
  %294 = vmatmul.mubr.f32.gmra.mrb[0].mxu0 %v107
  %v295 = vpop.f32.mrb[0].mxu0
  %v296 = vadd.f32 0.0, %v295
  %v297 = vpop.f32.mrb[0].mxu0
  %298 = vmatprep.mubr.f32.mxu0 0.0
  %299 = vmatmul.mubr.f32.gmra.mrb[0].mxu0 %v110
  %v300 = vpop.f32.mrb[0].mxu0
  %v301 = vadd.f32 0.0, %v300
  %v302 = vpop.f32.mrb[0].mxu0
  %303 = vmatprep.mubr.f32.mxu0 0.0
  %304 = vmatmul.mubr.f32.gmra.mrb[0].mxu0 %v113
  %v305 = vpop.f32.mrb[0].mxu0
  %v306 = vadd.f32 0.0, %v305
  %v307 = vpop.f32.mrb[0].mxu0
  %308 = vmatprep.mubr.f32.mxu0 0.0
  %309 = vmatmul.mubr.f32.gmra.mrb[0].mxu0 %v116
  %v310 = vpop.f32.mrb[0].mxu0
  %v311 = vadd.f32 0.0, %v310
  %v312 = vpop.f32.mrb[0].mxu0
  %313 = vmatprep.mubr.f32.mxu0 0.0
  %314 = vmatmul.mubr.f32.gmra.mrb[0].mxu0 %v119
  %v315 = vpop.f32.mrb[0].mxu0
  %v316 = vadd.f32 0.0, %v315
  %v317 = vpop.f32.mrb[0].mxu0
  %318 = vmatprep.mubr.f32.mxu0 0.0
  %319 = vmatmul.mubr.f32.gmra.mrb[0].mxu0 %v122
  %v320 = vpop.f32.mrb[0].mxu0
  %v321 = vadd.f32 0.0, %v320
  %v322 = vpop.f32.mrb[0].mxu0
  %323 = vmatprep.mubr.f32.mxu0 0.0
  %324 = vmatmul.mubr.f32.gmra.mrb[0].mxu0 %v125
  %v325 = vpop.f32.mrb[0].mxu0
  %v326 = vadd.f32 0.0, %v325
  %v327 = vpop.f32.mrb[0].mxu0
  %328 = vmatprep.mubr.f32.mxu0 0.0
  %329 = vmatmul.mubr.f32.gmra.mrb[0].mxu0 %v128
  %v330 = vpop.f32.mrb[0].mxu0
  %v331 = vadd.f32 0.0, %v330
  %v332 = vpop.f32.mrb[0].mxu0
  %333 = vmatprep.mubr.f32.mxu0 0.0
  %334 = vmatmul.mubr.f32.gmra.mrb[0].mxu0 %v131
  %v335 = vpop.f32.mrb[0].mxu0
  %v336 = vadd.f32 0.0, %v335
  %v337 = vpop.f32.mrb[0].mxu0
  %338 = vmatprep.mubr.f32.mxu0 0.0
  %339 = vmatmul.mubr.f32.gmra.mrb[0].mxu0 %v134
  %v340 = vpop.f32.mrb[0].mxu0
  %v341 = vadd.f32 0.0, %v340
  %v342 = vpop.f32.mrb[0].mxu0
  %343 = vmatprep.mubr.f32.mxu0 0.0
  %344 = vmatmul.mubr.f32.gmra.mrb[0].mxu0 %v137
  %v345 = vpop.f32.mrb[0].mxu0
  %v346 = vadd.f32 0.0, %v345
  %v347 = vpop.f32.mrb[0].mxu0
  %348 = vmatprep.mubr.f32.mxu0 0.0
  %349 = vmatmul.mubr.f32.gmra.mrb[0].mxu0 %v140
  %v350 = vpop.f32.mrb[0].mxu0
  %v351 = vadd.f32 0.0, %v350
  %v352 = vpop.f32.mrb[0].mxu0
  %353 = vmatprep.mubr.f32.mxu0 0.0
  %354 = vmatmul.mubr.f32.gmra.mrb[0].mxu0 %v143
  %v355 = vpop.f32.mrb[0].mxu0
  %v356 = vadd.f32 0.0, %v355
  %v357 = vpop.f32.mrb[0].mxu0
  %358 = vmatprep.mubr.f32.mxu0 0.0
  %359 = vmatmul.mubr.f32.gmra.mrb[0].mxu0 %v146
  %v360 = vpop.f32.mrb[0].mxu0
  %v361 = vadd.f32 0.0, %v360
  %v362 = vpop.f32.mrb[0].mxu0
  %363 = vmatprep.mubr.f32.mxu0 0.0
  %364 = vmatmul.mubr.f32.gmra.mrb[0].mxu0 %v149
  %v365 = vpop.f32.mrb[0].mxu0
  %v366 = vadd.f32 0.0, %v365
  %v367 = vpop.f32.mrb[0].mxu0
  %368 = vmatprep.mubr.f32.mxu0 0.0
  %369 = vmatmul.mubr.f32.gmra.mrb[0].mxu0 %v152
  %v370 = vpop.f32.mrb[0].mxu0
  %v371 = vadd.f32 0.0, %v370
  %v372 = vpop.f32.mrb[0].mxu0
  %373 = vdwg.mxu0
  %v374 = vsel %vm60, %v221, 0.0
  %v375 = vsel %vm60, %v226, 0.0
  %v376 = vadd.f32 %v374, %v375
  %v377 = vsel %vm60, %v231, 0.0
  %v378 = vadd.f32 %v376, %v377
  %v379 = vsel %vm60, %v236, 0.0
  %v380 = vadd.f32 %v378, %v379
  %v381 = vsel %vm60, %v241, 0.0
  %v382 = vadd.f32 %v380, %v381
  %v383 = vsel %vm60, %v246, 0.0
  %v384 = vadd.f32 %v382, %v383
  %v385 = vsel %vm60, %v251, 0.0
  %v386 = vadd.f32 %v384, %v385
  %v387 = vsel %vm60, %v256, 0.0
  %v388 = vadd.f32 %v386, %v387
  %v389 = vsel %vm60, %v261, 0.0
  %v390 = vadd.f32 %v388, %v389
  %v391 = vsel %vm60, %v266, 0.0
  %v392 = vadd.f32 %v390, %v391
  %v393 = vsel %vm60, %v271, 0.0
  %v394 = vadd.f32 %v392, %v393
  %v395 = vsel %vm60, %v276, 0.0
  %v396 = vadd.f32 %v394, %v395
  %v397 = vsel %vm60, %v281, 0.0
  %v398 = vadd.f32 %v396, %v397
  %v399 = vsel %vm60, %v286, 0.0
  %v400 = vadd.f32 %v398, %v399
  %v401 = vsel %vm60, %v291, 0.0
  %v402 = vadd.f32 %v400, %v401
  %v403 = vsel %vm60, %v296, 0.0
  %v404 = vadd.f32 %v402, %v403
  %v405 = vsel %vm60, %v301, 0.0
  %v406 = vadd.f32 %v404, %v405
  %v407 = vsel %vm60, %v306, 0.0
  %v408 = vadd.f32 %v406, %v407
  %v409 = vsel %vm60, %v311, 0.0
  %v410 = vadd.f32 %v408, %v409
  %v411 = vsel %vm60, %v316, 0.0
  %v412 = vadd.f32 %v410, %v411
  %v413 = vsel %vm60, %v321, 0.0
  %v414 = vadd.f32 %v412, %v413
  %v415 = vsel %vm60, %v326, 0.0
  %v416 = vadd.f32 %v414, %v415
  %v417 = vsel %vm60, %v331, 0.0
  %v418 = vadd.f32 %v416, %v417
  %v419 = vsel %vm60, %v336, 0.0
  %v420 = vadd.f32 %v418, %v419
  %v421 = vsel %vm60, %v341, 0.0
  %v422 = vadd.f32 %v420, %v421
  %v423 = vsel %vm60, %v346, 0.0
  %v424 = vadd.f32 %v422, %v423
  %v425 = vsel %vm60, %v351, 0.0
  %v426 = vadd.f32 %v424, %v425
  %v427 = vsel %vm60, %v356, 0.0
  %v428 = vadd.f32 %v426, %v427
  %v429 = vsel %vm60, %v361, 0.0
  %v430 = vadd.f32 %v428, %v429
  %v431 = vsel %vm60, %v366, 0.0
  %v432 = vadd.f32 %v430, %v431
  %vm433 = vcmask 517120
  %v434 = vsel %vm433, %v371, 0.0
  %v435 = vadd.f32 %v432, %v434
  %v436 = vrot.slane %v435, 4
  %v437 = vadd.f32 %v435, %v436
  %v438 = vrot.slane %v437, 2
  %v439 = vadd.f32 %v437, %v438
  %v440 = vrot.slane %v439, 1
  %v441 = vadd.f32 %v439, %v440
  %v442 = vmul.f32 %v441, 0.004132231
  %v443 = vsub.f32 %v221, %v442
  %v444 = vsub.f32 %v226, %v442
  %v445 = vsub.f32 %v231, %v442
  %v446 = vsub.f32 %v236, %v442
  %v447 = vsub.f32 %v241, %v442
  %v448 = vsub.f32 %v246, %v442
  %v449 = vsub.f32 %v251, %v442
  %v450 = vsub.f32 %v256, %v442
  %v451 = vsub.f32 %v261, %v442
  %v452 = vsub.f32 %v266, %v442
  %v453 = vsub.f32 %v271, %v442
  %v454 = vsub.f32 %v276, %v442
  %v455 = vsub.f32 %v281, %v442
  %v456 = vsub.f32 %v286, %v442
  %v457 = vsub.f32 %v291, %v442
  %v458 = vsub.f32 %v296, %v442
  %v459 = vsub.f32 %v301, %v442
  %v460 = vsub.f32 %v306, %v442
  %v461 = vsub.f32 %v311, %v442
  %v462 = vsub.f32 %v316, %v442
  %v463 = vsub.f32 %v321, %v442
  %v464 = vsub.f32 %v326, %v442
  %v465 = vsub.f32 %v331, %v442
  %v466 = vsub.f32 %v336, %v442
  %v467 = vsub.f32 %v341, %v442
  %v468 = vsub.f32 %v346, %v442
  %v469 = vsub.f32 %v351, %v442
  %v470 = vsub.f32 %v356, %v442
  %v471 = vsub.f32 %v361, %v442
  %v472 = vsub.f32 %v366, %v442
  %v473 = vsub.f32 %v371, %v442
  %v474 = vmul.f32 %v443, %v443
  %v475 = vmul.f32 %v444, %v444
  %v476 = vmul.f32 %v445, %v445
  %v477 = vmul.f32 %v446, %v446
  %v478 = vmul.f32 %v447, %v447
  %v479 = vmul.f32 %v448, %v448
  %v480 = vmul.f32 %v449, %v449
  %v481 = vmul.f32 %v450, %v450
  %v482 = vmul.f32 %v451, %v451
  %v483 = vmul.f32 %v452, %v452
  %v484 = vmul.f32 %v453, %v453
  %v485 = vmul.f32 %v454, %v454
  %v486 = vmul.f32 %v455, %v455
  %v487 = vmul.f32 %v456, %v456
  %v488 = vmul.f32 %v457, %v457
  %v489 = vmul.f32 %v458, %v458
  %v490 = vmul.f32 %v459, %v459
  %v491 = vmul.f32 %v460, %v460
  %v492 = vmul.f32 %v461, %v461
  %v493 = vmul.f32 %v462, %v462
  %v494 = vmul.f32 %v463, %v463
  %v495 = vmul.f32 %v464, %v464
  %v496 = vmul.f32 %v465, %v465
  %v497 = vmul.f32 %v466, %v466
  %v498 = vmul.f32 %v467, %v467
  %v499 = vmul.f32 %v468, %v468
  %v500 = vmul.f32 %v469, %v469
  %v501 = vmul.f32 %v470, %v470
  %v502 = vmul.f32 %v471, %v471
  %v503 = vmul.f32 %v472, %v472
  %v504 = vmul.f32 %v473, %v473
  %v505 = vsel %vm60, %v474, 0.0
  %v506 = vsel %vm60, %v475, 0.0
  %v507 = vadd.f32 %v505, %v506
  %v508 = vsel %vm60, %v476, 0.0
  %v509 = vadd.f32 %v507, %v508
  %v510 = vsel %vm60, %v477, 0.0
  %v511 = vadd.f32 %v509, %v510
  %v512 = vsel %vm60, %v478, 0.0
  %v513 = vadd.f32 %v511, %v512
  %v514 = vsel %vm60, %v479, 0.0
  %v515 = vadd.f32 %v513, %v514
  %v516 = vsel %vm60, %v480, 0.0
  %v517 = vadd.f32 %v515, %v516
  %v518 = vsel %vm60, %v481, 0.0
  %v519 = vadd.f32 %v517, %v518
  %v520 = vsel %vm60, %v482, 0.0
  %v521 = vadd.f32 %v519, %v520
  %v522 = vsel %vm60, %v483, 0.0
  %v523 = vadd.f32 %v521, %v522
  %v524 = vsel %vm60, %v484, 0.0
  %v525 = vadd.f32 %v523, %v524
  %v526 = vsel %vm60, %v485, 0.0
  %v527 = vadd.f32 %v525, %v526
  %v528 = vsel %vm60, %v486, 0.0
  %v529 = vadd.f32 %v527, %v528
  %v530 = vsel %vm60, %v487, 0.0
  %v531 = vadd.f32 %v529, %v530
  %v532 = vsel %vm60, %v488, 0.0
  %v533 = vadd.f32 %v531, %v532
  %v534 = vsel %vm60, %v489, 0.0
  %v535 = vadd.f32 %v533, %v534
  %v536 = vsel %vm60, %v490, 0.0
  %v537 = vadd.f32 %v535, %v536
  %v538 = vsel %vm60, %v491, 0.0
  %v539 = vadd.f32 %v537, %v538
  %v540 = vsel %vm60, %v492, 0.0
  %v541 = vadd.f32 %v539, %v540
  %v542 = vsel %vm60, %v493, 0.0
  %v543 = vadd.f32 %v541, %v542
  %v544 = vsel %vm60, %v494, 0.0
  %v545 = vadd.f32 %v543, %v544
  %v546 = vsel %vm60, %v495, 0.0
  %v547 = vadd.f32 %v545, %v546
  %v548 = vsel %vm60, %v496, 0.0
  %v549 = vadd.f32 %v547, %v548
  %v550 = vsel %vm60, %v497, 0.0
  %v551 = vadd.f32 %v549, %v550
  %v552 = vsel %vm60, %v498, 0.0
  %v553 = vadd.f32 %v551, %v552
  %v554 = vsel %vm60, %v499, 0.0
  %v555 = vadd.f32 %v553, %v554
  %v556 = vsel %vm60, %v500, 0.0
  %v557 = vadd.f32 %v555, %v556
  %v558 = vsel %vm60, %v501, 0.0
  %v559 = vadd.f32 %v557, %v558
  %v560 = vsel %vm60, %v502, 0.0
  %v561 = vadd.f32 %v559, %v560
  %v562 = vsel %vm60, %v503, 0.0
  %v563 = vadd.f32 %v561, %v562
  %v564 = vsel %vm433, %v504, 0.0
  %v565 = vadd.f32 %v563, %v564
  %v566 = vrot.slane %v565, 4
  %v567 = vadd.f32 %v565, %v566
  %v568 = vrot.slane %v567, 2
  %v569 = vadd.f32 %v567, %v568
  %v570 = vrot.slane %v569, 1
  %v571 = vadd.f32 %v569, %v570
  %v572 = vmul.f32 %v571, 0.004132231
  %v573 = vadd.f32 %v572, 1e-05
  %v574 = vrsqrt.pop %v573
  %v575 = vmul.f32 %v20, %v574
  %v576 = vlaneseq
  %v577 = vshrl.u32 %v576, 7
  %v578 = vsub.s32 0, %v577
  %v579 = vrot.slane %v575, %v578
  %v580 = vmul.f32 %v443, %v579
  %v581 = vmul.f32 %v444, %v579
  %v582 = vmul.f32 %v445, %v579
  %v583 = vmul.f32 %v446, %v579
  %v584 = vmul.f32 %v447, %v579
  %v585 = vmul.f32 %v448, %v579
  %v586 = vmul.f32 %v449, %v579
  %v587 = vmul.f32 %v450, %v579
  %v588 = vmul.f32 %v451, %v579
  %v589 = vmul.f32 %v452, %v579
  %v590 = vmul.f32 %v453, %v579
  %v591 = vmul.f32 %v454, %v579
  %v592 = vmul.f32 %v455, %v579
  %v593 = vmul.f32 %v456, %v579
  %v594 = vmul.f32 %v457, %v579
  %v595 = vmul.f32 %v458, %v579
  %v596 = vmul.f32 %v459, %v579
  %v597 = vmul.f32 %v460, %v579
  %v598 = vmul.f32 %v461, %v579
  %v599 = vmul.f32 %v462, %v579
  %v600 = vmul.f32 %v463, %v579
  %v601 = vmul.f32 %v464, %v579
  %v602 = vmul.f32 %v465, %v579
  %v603 = vmul.f32 %v466, %v579
  %v604 = vmul.f32 %v467, %v579
  %v605 = vmul.f32 %v468, %v579
  %v606 = vmul.f32 %v469, %v579
  %v607 = vmul.f32 %v470, %v579
  %v608 = vmul.f32 %v471, %v579
  %v609 = vmul.f32 %v472, %v579
  %v610 = vmul.f32 %v473, %v579
  %v611 = vlaneseq
  %v612 = vshrl.u32 %v611, 7
  %v613 = vsub.s32 0, %v612
  %v614 = vrot.slane %v20, %v613
  %616 = vrot.lane.b32.xlu0 %v614, 64
  %v617 = vpop.permute.xlu0 %616
  %v619 = vadd.f32 %v580, %v617
  %v620 = vadd.f32 %v581, %v617
  %v621 = vadd.f32 %v582, %v617
  %v622 = vadd.f32 %v583, %v617
  %v623 = vadd.f32 %v584, %v617
  %v624 = vadd.f32 %v585, %v617
  %v625 = vadd.f32 %v586, %v617
  %v626 = vadd.f32 %v587, %v617
  %v627 = vadd.f32 %v588, %v617
  %v628 = vadd.f32 %v589, %v617
  %v629 = vadd.f32 %v590, %v617
  %v630 = vadd.f32 %v591, %v617
  %v631 = vadd.f32 %v592, %v617
  %v632 = vadd.f32 %v593, %v617
  %v633 = vadd.f32 %v594, %v617
  %v634 = vadd.f32 %v595, %v617
  %v635 = vadd.f32 %v596, %v617
  %v636 = vadd.f32 %v597, %v617
  %v637 = vadd.f32 %v598, %v617
  %v638 = vadd.f32 %v599, %v617
  %v639 = vadd.f32 %v600, %v617
  %v640 = vadd.f32 %v601, %v617
  %v641 = vadd.f32 %v602, %v617
  %v642 = vadd.f32 %v603, %v617
  %v643 = vadd.f32 %v604, %v617
  %v644 = vadd.f32 %v605, %v617
  %v645 = vadd.f32 %v606, %v617
  %v646 = vadd.f32 %v607, %v617
  %v647 = vadd.f32 %v608, %v617
  %v648 = vadd.f32 %v609, %v617
  %v649 = vadd.f32 %v610, %v617
  %v650 = vmax.f32 %v619, 0.0
  %v651 = vmax.f32 %v620, 0.0
  %v652 = vmax.f32 %v621, 0.0
  %v653 = vmax.f32 %v622, 0.0
  %v654 = vmax.f32 %v623, 0.0
  %v655 = vmax.f32 %v624, 0.0
  %v656 = vmax.f32 %v625, 0.0
  %v657 = vmax.f32 %v626, 0.0
  %v658 = vmax.f32 %v627, 0.0
  %v659 = vmax.f32 %v628, 0.0
  %v660 = vmax.f32 %v629, 0.0
  %v661 = vmax.f32 %v630, 0.0
  %v662 = vmax.f32 %v631, 0.0
  %v663 = vmax.f32 %v632, 0.0
  %v664 = vmax.f32 %v633, 0.0
  %v665 = vmax.f32 %v634, 0.0
  %v666 = vmax.f32 %v635, 0.0
  %v667 = vmax.f32 %v636, 0.0
  %v668 = vmax.f32 %v637, 0.0
  %v669 = vmax.f32 %v638, 0.0
  %v670 = vmax.f32 %v639, 0.0
  %v671 = vmax.f32 %v640, 0.0
  %v672 = vmax.f32 %v641, 0.0
  %v673 = vmax.f32 %v642, 0.0
  %v674 = vmax.f32 %v643, 0.0
  %v675 = vmax.f32 %v644, 0.0
  %v676 = vmax.f32 %v645, 0.0
  %v677 = vmax.f32 %v646, 0.0
  %v678 = vmax.f32 %v647, 0.0
  %v679 = vmax.f32 %v648, 0.0
  %v680 = vmax.f32 %v649, 0.0
  %v681 = vlaneseq
  %v682 = vshrl.u32 %v681, 7
  %v683 = vadd.s32 %v682, 8
  %v684 = vadd.s32 %v682, 16
  %v685 = vadd.s32 %v682, 24
  %v686 = vadd.s32 %v682, 32
  %v687 = vadd.s32 %v682, 40
  %v688 = vadd.s32 %v682, 48
  %v689 = vadd.s32 %v682, 56
  %v690 = vadd.s32 %v682, 64
  %v691 = vadd.s32 %v682, 72
  %v692 = vadd.s32 %v682, 80
  %v693 = vadd.s32 %v682, 88
  %v694 = vadd.s32 %v682, 96
  %v695 = vadd.s32 %v682, 104
  %v696 = vadd.s32 %v682, 112
  %v697 = vlaneseq
  %v698 = vand.u32 %v697, 127
  %v699 = vadd.s32 %v698, 128
  %vm700 = vcmp.ge.s32.totalorder %v682, 0
  %vm701 = vcmp.ge.s32.totalorder %v683, 0
  %vm702 = vcmp.ge.s32.totalorder %v684, 0
  %vm703 = vcmp.ge.s32.totalorder %v685, 0
  %vm704 = vcmp.ge.s32.totalorder %v686, 0
  %vm705 = vcmp.ge.s32.totalorder %v687, 0
  %vm706 = vcmp.ge.s32.totalorder %v688, 0
  %vm707 = vcmp.ge.s32.totalorder %v689, 0
  %vm708 = vcmp.ge.s32.totalorder %v690, 0
  %vm709 = vcmp.ge.s32.totalorder %v691, 0
  %vm710 = vcmp.ge.s32.totalorder %v692, 0
  %vm711 = vcmp.ge.s32.totalorder %v693, 0
  %vm712 = vcmp.ge.s32.totalorder %v694, 0
  %vm713 = vcmp.ge.s32.totalorder %v695, 0
  %vm714 = vcmp.ge.s32.totalorder %v696, 0
  %vm715 = vcmp.lt.s32.totalorder %v682, 60
  %vm716 = vcmp.lt.s32.totalorder %v683, 60
  %vm717 = vcmp.lt.s32.totalorder %v684, 60
  %vm718 = vcmp.lt.s32.totalorder %v685, 60
  %vm719 = vcmp.lt.s32.totalorder %v686, 60
  %vm720 = vcmp.lt.s32.totalorder %v687, 60
  %vm721 = vcmp.lt.s32.totalorder %v688, 60
  %vm722 = vcmp.lt.s32.totalorder %v689, 60
  %vm723 = vcmp.lt.s32.totalorder %v690, 60
  %vm724 = vcmp.lt.s32.totalorder %v691, 60
  %vm725 = vcmp.lt.s32.totalorder %v692, 60
  %vm726 = vcmp.lt.s32.totalorder %v693, 60
  %vm727 = vcmp.lt.s32.totalorder %v694, 60
  %vm728 = vcmp.lt.s32.totalorder %v695, 60
  %vm729 = vcmp.lt.s32.totalorder %v696, 60
  %vm730 = vmand %vm700, %vm715
  %vm731 = vmand %vm701, %vm716
  %vm732 = vmand %vm702, %vm717
  %vm733 = vmand %vm703, %vm718
  %vm734 = vmand %vm704, %vm719
  %vm735 = vmand %vm705, %vm720
  %vm736 = vmand %vm706, %vm721
  %vm737 = vmand %vm707, %vm722
  %vm738 = vmand %vm708, %vm723
  %vm739 = vmand %vm709, %vm724
  %vm740 = vmand %vm710, %vm725
  %vm741 = vmand %vm711, %vm726
  %vm742 = vmand %vm712, %vm727
  %vm743 = vmand %vm713, %vm728
  %vm744 = vmand %vm714, %vm729
  %v745 = vmul.u32 %v682, 2
  %v746 = vmul.u32 %v683, 2
  %v747 = vmul.u32 %v684, 2
  %v748 = vmul.u32 %v685, 2
  %v749 = vmul.u32 %v686, 2
  %v750 = vmul.u32 %v687, 2
  %v751 = vmul.u32 %v688, 2
  %v752 = vmul.u32 %v689, 2
  %v753 = vmul.u32 %v690, 2
  %v754 = vmul.u32 %v691, 2
  %v755 = vmul.u32 %v692, 2
  %v756 = vmul.u32 %v693, 2
  %v757 = vmul.u32 %v694, 2
  %v758 = vmul.u32 %v695, 2
  %v759 = vmul.u32 %v696, 2
  %vm760 = vcmp.eq.s32.totalorder %v698, %v745
  %vm761 = vcmp.eq.s32.totalorder %v699, %v745
  %vm762 = vcmp.eq.s32.totalorder %v698, %v746
  %vm763 = vcmp.eq.s32.totalorder %v699, %v746
  %vm764 = vcmp.eq.s32.totalorder %v698, %v747
  %vm765 = vcmp.eq.s32.totalorder %v699, %v747
  %vm766 = vcmp.eq.s32.totalorder %v698, %v748
  %vm767 = vcmp.eq.s32.totalorder %v699, %v748
  %vm768 = vcmp.eq.s32.totalorder %v698, %v749
  %vm769 = vcmp.eq.s32.totalorder %v699, %v749
  %vm770 = vcmp.eq.s32.totalorder %v698, %v750
  %vm771 = vcmp.eq.s32.totalorder %v699, %v750
  %vm772 = vcmp.eq.s32.totalorder %v698, %v751
  %vm773 = vcmp.eq.s32.totalorder %v699, %v751
  %vm774 = vcmp.eq.s32.totalorder %v698, %v752
  %vm775 = vcmp.eq.s32.totalorder %v699, %v752
  %vm776 = vcmp.eq.s32.totalorder %v698, %v753
  %vm777 = vcmp.eq.s32.totalorder %v699, %v753
  %vm778 = vcmp.eq.s32.totalorder %v698, %v754
  %vm779 = vcmp.eq.s32.totalorder %v699, %v754
  %vm780 = vcmp.eq.s32.totalorder %v698, %v755
  %vm781 = vcmp.eq.s32.totalorder %v699, %v755
  %vm782 = vcmp.eq.s32.totalorder %v698, %v756
  %vm783 = vcmp.eq.s32.totalorder %v699, %v756
  %vm784 = vcmp.eq.s32.totalorder %v698, %v757
  %vm785 = vcmp.eq.s32.totalorder %v699, %v757
  %vm786 = vcmp.eq.s32.totalorder %v698, %v758
  %vm787 = vcmp.eq.s32.totalorder %v699, %v758
  %vm788 = vcmp.eq.s32.totalorder %v698, %v759
  %vm789 = vcmp.eq.s32.totalorder %v699, %v759
  %vm790 = vmand %vm730, %vm760
  %vm791 = vmand %vm730, %vm761
  %vm792 = vmand %vm731, %vm762
  %vm793 = vmand %vm731, %vm763
  %vm794 = vmand %vm732, %vm764
  %vm795 = vmand %vm732, %vm765
  %vm796 = vmand %vm733, %vm766
  %vm797 = vmand %vm733, %vm767
  %vm798 = vmand %vm734, %vm768
  %vm799 = vmand %vm734, %vm769
  %vm800 = vmand %vm735, %vm770
  %vm801 = vmand %vm735, %vm771
  %vm802 = vmand %vm736, %vm772
  %vm803 = vmand %vm736, %vm773
  %vm804 = vmand %vm737, %vm774
  %vm805 = vmand %vm737, %vm775
  %vm806 = vmand %vm738, %vm776
  %vm807 = vmand %vm738, %vm777
  %vm808 = vmand %vm739, %vm778
  %vm809 = vmand %vm739, %vm779
  %vm810 = vmand %vm740, %vm780
  %vm811 = vmand %vm740, %vm781
  %vm812 = vmand %vm741, %vm782
  %vm813 = vmand %vm741, %vm783
  %vm814 = vmand %vm742, %vm784
  %vm815 = vmand %vm742, %vm785
  %vm816 = vmand %vm743, %vm786
  %vm817 = vmand %vm743, %vm787
  %vm818 = vmand %vm744, %vm788
  %vm819 = vmand %vm744, %vm789
  %v820 = vsel %vm790, 1.0, 0.0
  %v821 = vsel %vm791, 1.0, 0.0
  %v822 = vsel %vm792, 1.0, 0.0
  %v823 = vsel %vm793, 1.0, 0.0
  %v824 = vsel %vm794, 1.0, 0.0
  %v825 = vsel %vm795, 1.0, 0.0
  %v826 = vsel %vm796, 1.0, 0.0
  %v827 = vsel %vm797, 1.0, 0.0
  %v828 = vsel %vm798, 1.0, 0.0
  %v829 = vsel %vm799, 1.0, 0.0
  %v830 = vsel %vm800, 1.0, 0.0
  %v831 = vsel %vm801, 1.0, 0.0
  %v832 = vsel %vm802, 1.0, 0.0
  %v833 = vsel %vm803, 1.0, 0.0
  %v834 = vsel %vm804, 1.0, 0.0
  %v835 = vsel %vm805, 1.0, 0.0
  %v836 = vsel %vm806, 1.0, 0.0
  %v837 = vsel %vm807, 1.0, 0.0
  %v838 = vsel %vm808, 1.0, 0.0
  %v839 = vsel %vm809, 1.0, 0.0
  %v840 = vsel %vm810, 1.0, 0.0
  %v841 = vsel %vm811, 1.0, 0.0
  %v842 = vsel %vm812, 1.0, 0.0
  %v843 = vsel %vm813, 1.0, 0.0
  %v844 = vsel %vm814, 1.0, 0.0
  %v845 = vsel %vm815, 1.0, 0.0
  %v846 = vsel %vm816, 1.0, 0.0
  %v847 = vsel %vm817, 1.0, 0.0
  %v848 = vsel %vm818, 1.0, 0.0
  %v849 = vsel %vm819, 1.0, 0.0
  %vm850 = vcmp.ge.s32.totalorder %v682, 60
  %vm851 = vcmp.ge.s32.totalorder %v683, 60
  %vm852 = vcmp.ge.s32.totalorder %v684, 60
  %vm853 = vcmp.ge.s32.totalorder %v685, 60
  %vm854 = vcmp.ge.s32.totalorder %v686, 60
  %vm855 = vcmp.ge.s32.totalorder %v687, 60
  %vm856 = vcmp.ge.s32.totalorder %v688, 60
  %vm857 = vcmp.ge.s32.totalorder %v689, 60
  %vm858 = vcmp.ge.s32.totalorder %v690, 60
  %vm859 = vcmp.ge.s32.totalorder %v691, 60
  %vm860 = vcmp.ge.s32.totalorder %v692, 60
  %vm861 = vcmp.ge.s32.totalorder %v693, 60
  %vm862 = vcmp.ge.s32.totalorder %v694, 60
  %vm863 = vcmp.ge.s32.totalorder %v695, 60
  %vm864 = vcmp.ge.s32.totalorder %v696, 60
  %vm865 = vcmp.lt.s32.totalorder %v682, 120
  %vm866 = vcmp.lt.s32.totalorder %v683, 120
  %vm867 = vcmp.lt.s32.totalorder %v684, 120
  %vm868 = vcmp.lt.s32.totalorder %v685, 120
  %vm869 = vcmp.lt.s32.totalorder %v686, 120
  %vm870 = vcmp.lt.s32.totalorder %v687, 120
  %vm871 = vcmp.lt.s32.totalorder %v688, 120
  %vm872 = vcmp.lt.s32.totalorder %v689, 120
  %vm873 = vcmp.lt.s32.totalorder %v690, 120
  %vm874 = vcmp.lt.s32.totalorder %v691, 120
  %vm875 = vcmp.lt.s32.totalorder %v692, 120
  %vm876 = vcmp.lt.s32.totalorder %v693, 120
  %vm877 = vcmp.lt.s32.totalorder %v694, 120
  %vm878 = vcmp.lt.s32.totalorder %v695, 120
  %vm879 = vcmp.lt.s32.totalorder %v696, 120
  %vm880 = vmand %vm850, %vm865
  %vm881 = vmand %vm851, %vm866
  %vm882 = vmand %vm852, %vm867
  %vm883 = vmand %vm853, %vm868
  %vm884 = vmand %vm854, %vm869
  %vm885 = vmand %vm855, %vm870
  %vm886 = vmand %vm856, %vm871
  %vm887 = vmand %vm857, %vm872
  %vm888 = vmand %vm858, %vm873
  %vm889 = vmand %vm859, %vm874
  %vm890 = vmand %vm860, %vm875
  %vm891 = vmand %vm861, %vm876
  %vm892 = vmand %vm862, %vm877
  %vm893 = vmand %vm863, %vm878
  %vm894 = vmand %vm864, %vm879
  %v895 = vadd.s32 %v745, 1
  %v896 = vadd.s32 %v746, 1
  %v897 = vadd.s32 %v747, 1
  %v898 = vadd.s32 %v748, 1
  %v899 = vadd.s32 %v749, 1
  %v900 = vadd.s32 %v750, 1
  %v901 = vadd.s32 %v751, 1
  %v902 = vadd.s32 %v752, 1
  %v903 = vadd.s32 %v753, 1
  %v904 = vadd.s32 %v754, 1
  %v905 = vadd.s32 %v755, 1
  %v906 = vadd.s32 %v756, 1
  %v907 = vadd.s32 %v757, 1
  %v908 = vadd.s32 %v758, 1
  %v909 = vadd.s32 %v759, 1
  %vm910 = vcmp.eq.s32.totalorder %v698, %v895
  %vm911 = vcmp.eq.s32.totalorder %v699, %v895
  %vm912 = vcmp.eq.s32.totalorder %v698, %v896
  %vm913 = vcmp.eq.s32.totalorder %v699, %v896
  %vm914 = vcmp.eq.s32.totalorder %v698, %v897
  %vm915 = vcmp.eq.s32.totalorder %v699, %v897
  %vm916 = vcmp.eq.s32.totalorder %v698, %v898
  %vm917 = vcmp.eq.s32.totalorder %v699, %v898
  %vm918 = vcmp.eq.s32.totalorder %v698, %v899
  %vm919 = vcmp.eq.s32.totalorder %v699, %v899
  %vm920 = vcmp.eq.s32.totalorder %v698, %v900
  %vm921 = vcmp.eq.s32.totalorder %v699, %v900
  %vm922 = vcmp.eq.s32.totalorder %v698, %v901
  %vm923 = vcmp.eq.s32.totalorder %v699, %v901
  %vm924 = vcmp.eq.s32.totalorder %v698, %v902
  %vm925 = vcmp.eq.s32.totalorder %v699, %v902
  %vm926 = vcmp.eq.s32.totalorder %v698, %v903
  %vm927 = vcmp.eq.s32.totalorder %v699, %v903
  %vm928 = vcmp.eq.s32.totalorder %v698, %v904
  %vm929 = vcmp.eq.s32.totalorder %v699, %v904
  %vm930 = vcmp.eq.s32.totalorder %v698, %v905
  %vm931 = vcmp.eq.s32.totalorder %v699, %v905
  %vm932 = vcmp.eq.s32.totalorder %v698, %v906
  %vm933 = vcmp.eq.s32.totalorder %v699, %v906
  %vm934 = vcmp.eq.s32.totalorder %v698, %v907
  %vm935 = vcmp.eq.s32.totalorder %v699, %v907
  %vm936 = vcmp.eq.s32.totalorder %v698, %v908
  %vm937 = vcmp.eq.s32.totalorder %v699, %v908
  %vm938 = vcmp.eq.s32.totalorder %v698, %v909
  %vm939 = vcmp.eq.s32.totalorder %v699, %v909
  %vm940 = vmand %vm880, %vm910
  %vm941 = vmand %vm880, %vm911
  %vm942 = vmand %vm881, %vm912
  %vm943 = vmand %vm881, %vm913
  %vm944 = vmand %vm882, %vm914
  %vm945 = vmand %vm882, %vm915
  %vm946 = vmand %vm883, %vm916
  %vm947 = vmand %vm883, %vm917
  %vm948 = vmand %vm884, %vm918
  %vm949 = vmand %vm884, %vm919
  %vm950 = vmand %vm885, %vm920
  %vm951 = vmand %vm885, %vm921
  %vm952 = vmand %vm886, %vm922
  %vm953 = vmand %vm886, %vm923
  %vm954 = vmand %vm887, %vm924
  %vm955 = vmand %vm887, %vm925
  %vm956 = vmand %vm888, %vm926
  %vm957 = vmand %vm888, %vm927
  %vm958 = vmand %vm889, %vm928
  %vm959 = vmand %vm889, %vm929
  %vm960 = vmand %vm890, %vm930
  %vm961 = vmand %vm890, %vm931
  %vm962 = vmand %vm891, %vm932
  %vm963 = vmand %vm891, %vm933
  %vm964 = vmand %vm892, %vm934
  %vm965 = vmand %vm892, %vm935
  %vm966 = vmand %vm893, %vm936
  %vm967 = vmand %vm893, %vm937
  %vm968 = vmand %vm894, %vm938
  %vm969 = vmand %vm894, %vm939
  %v970 = vsel %vm940, 1.0, %v820
  %v971 = vsel %vm941, 1.0, %v821
  %v972 = vsel %vm942, 1.0, %v822
  %v973 = vsel %vm943, 1.0, %v823
  %v974 = vsel %vm944, 1.0, %v824
  %v975 = vsel %vm945, 1.0, %v825
  %v976 = vsel %vm946, 1.0, %v826
  %v977 = vsel %vm947, 1.0, %v827
  %v978 = vsel %vm948, 1.0, %v828
  %v979 = vsel %vm949, 1.0, %v829
  %v980 = vsel %vm950, 1.0, %v830
  %v981 = vsel %vm951, 1.0, %v831
  %v982 = vsel %vm952, 1.0, %v832
  %v983 = vsel %vm953, 1.0, %v833
  %v984 = vsel %vm954, 1.0, %v834
  %v985 = vsel %vm955, 1.0, %v835
  %v986 = vsel %vm956, 1.0, %v836
  %v987 = vsel %vm957, 1.0, %v837
  %v988 = vsel %vm958, 1.0, %v838
  %v989 = vsel %vm959, 1.0, %v839
  %v990 = vsel %vm960, 1.0, %v840
  %v991 = vsel %vm961, 1.0, %v841
  %v992 = vsel %vm962, 1.0, %v842
  %v993 = vsel %vm963, 1.0, %v843
  %v994 = vsel %vm964, 1.0, %v844
  %v995 = vsel %vm965, 1.0, %v845
  %v996 = vsel %vm966, 1.0, %v846
  %v997 = vsel %vm967, 1.0, %v847
  %v998 = vsel %vm968, 1.0, %v848
  %v999 = vsel %vm969, 1.0, %v849
  %vm1031 = vcmask 1046528
  %v1032 = vrot.slane %v650, 1
  %v1033 = vrot.slane %v651, 1
  %v1034 = vsel %vm1031, %v1032, %v1033
  %v1035 = vrot.slane %v652, 1
  %v1036 = vsel %vm1031, %v1033, %v1035
  %v1037 = vrot.slane %v653, 1
  %v1038 = vsel %vm1031, %v1035, %v1037
  %v1039 = vrot.slane %v654, 1
  %v1040 = vsel %vm1031, %v1037, %v1039
  %v1041 = vrot.slane %v655, 1
  %v1042 = vsel %vm1031, %v1039, %v1041
  %v1043 = vrot.slane %v656, 1
  %v1044 = vsel %vm1031, %v1041, %v1043
  %v1045 = vrot.slane %v657, 1
  %v1046 = vsel %vm1031, %v1043, %v1045
  %v1047 = vrot.slane %v658, 1
  %v1048 = vsel %vm1031, %v1045, %v1047
  %v1049 = vrot.slane %v659, 1
  %v1050 = vsel %vm1031, %v1047, %v1049
  %v1051 = vrot.slane %v660, 1
  %v1052 = vsel %vm1031, %v1049, %v1051
  %v1053 = vrot.slane %v661, 1
  %v1054 = vsel %vm1031, %v1051, %v1053
  %v1055 = vrot.slane %v662, 1
  %v1056 = vsel %vm1031, %v1053, %v1055
  %v1057 = vrot.slane %v663, 1
  %v1058 = vsel %vm1031, %v1055, %v1057
  %v1059 = vrot.slane %v664, 1
  %v1060 = vsel %vm1031, %v1057, %v1059
  %v1061 = vrot.slane %v665, 1
  %v1062 = vsel %vm1031, %v1059, %v1061
  %v1063 = vrot.slane %v666, 1
  %v1064 = vsel %vm1031, %v1061, %v1063
  %v1065 = vrot.slane %v667, 1
  %v1066 = vsel %vm1031, %v1063, %v1065
  %v1067 = vrot.slane %v668, 1
  %v1068 = vsel %vm1031, %v1065, %v1067
  %v1069 = vrot.slane %v669, 1
  %v1070 = vsel %vm1031, %v1067, %v1069
  %v1071 = vrot.slane %v670, 1
  %v1072 = vsel %vm1031, %v1069, %v1071
  %v1073 = vrot.slane %v671, 1
  %v1074 = vsel %vm1031, %v1071, %v1073
  %v1075 = vrot.slane %v672, 1
  %v1076 = vsel %vm1031, %v1073, %v1075
  %v1077 = vrot.slane %v673, 1
  %v1078 = vsel %vm1031, %v1075, %v1077
  %v1079 = vrot.slane %v674, 1
  %v1080 = vsel %vm1031, %v1077, %v1079
  %v1081 = vrot.slane %v675, 1
  %v1082 = vsel %vm1031, %v1079, %v1081
  %v1083 = vrot.slane %v676, 1
  %v1084 = vsel %vm1031, %v1081, %v1083
  %v1085 = vrot.slane %v677, 1
  %v1086 = vsel %vm1031, %v1083, %v1085
  %v1087 = vrot.slane %v678, 1
  %v1088 = vsel %vm1031, %v1085, %v1087
  %v1089 = vrot.slane %v679, 1
  %v1090 = vsel %vm1031, %v1087, %v1089
  %v1091 = vrot.slane %v680, 1
  %v1092 = vsel %vm1031, %v1089, %v1091
  %v1124 = vmax.f32 %v650, %v1034
  %v1125 = vmax.f32 %v651, %v1036
  %v1126 = vmax.f32 %v652, %v1038
  %v1127 = vmax.f32 %v653, %v1040
  %v1128 = vmax.f32 %v654, %v1042
  %v1129 = vmax.f32 %v655, %v1044
  %v1130 = vmax.f32 %v656, %v1046
  %v1131 = vmax.f32 %v657, %v1048
  %v1132 = vmax.f32 %v658, %v1050
  %v1133 = vmax.f32 %v659, %v1052
  %v1134 = vmax.f32 %v660, %v1054
  %v1135 = vmax.f32 %v661, %v1056
  %v1136 = vmax.f32 %v662, %v1058
  %v1137 = vmax.f32 %v663, %v1060
  %v1138 = vmax.f32 %v664, %v1062
  %v1139 = vmax.f32 %v665, %v1064
  %v1140 = vmax.f32 %v666, %v1066
  %v1141 = vmax.f32 %v667, %v1068
  %v1142 = vmax.f32 %v668, %v1070
  %v1143 = vmax.f32 %v669, %v1072
  %v1144 = vmax.f32 %v670, %v1074
  %v1145 = vmax.f32 %v671, %v1076
  %v1146 = vmax.f32 %v672, %v1078
  %v1147 = vmax.f32 %v673, %v1080
  %v1148 = vmax.f32 %v674, %v1082
  %v1149 = vmax.f32 %v675, %v1084
  %v1150 = vmax.f32 %v676, %v1086
  %v1151 = vmax.f32 %v677, %v1088
  %v1152 = vmax.f32 %v678, %v1090
  %v1153 = vmax.f32 %v679, %v1092
  %v1154 = vmax.f32 %v680, %v1091
  %vm1155 = vcmask 924672
  %v1157 = vsel %vm1155, %v971, 0
  %v1160 = vsel %vm1155, %v973, 0
  %v1163 = vsel %vm1155, %v975, 0
  %v1166 = vsel %vm1155, %v977, 0
  %v1169 = vsel %vm1155, %v979, 0
  %v1172 = vsel %vm1155, %v981, 0
  %v1175 = vsel %vm1155, %v983, 0
  %v1178 = vsel %vm1155, %v985, 0
  %v1181 = vsel %vm1155, %v987, 0
  %v1184 = vsel %vm1155, %v989, 0
  %v1187 = vsel %vm1155, %v991, 0
  %v1190 = vsel %vm1155, %v993, 0
  %v1193 = vsel %vm1155, %v995, 0
  %v1196 = vsel %vm1155, %v997, 0
  %v1199 = vsel %vm1155, %v999, 0
  %vm1201 = vcmask 1040384
  %v1203 = vsel %vm1201, %v1154, 0
  %1205 = vmatprep.subr.mxu0 0.0
  %1206 = vmatpush1.msra.mxu0 %v1124
  %1207 = vmatprep.subr.mxu0 0.0
  %1208 = vmatpush1.msra.mxu0 %v1125
  %1209 = vmatprep.subr.mxu0 0.0
  %1210 = vmatpush1.msra.mxu0 %v1126
  %1211 = vmatprep.subr.mxu0 0.0
  %1212 = vmatpush1.msra.mxu0 %v1127
  %1213 = vmatprep.subr.mxu0 0.0
  %1214 = vmatpush1.msra.mxu0 %v1128
  %1215 = vmatprep.subr.mxu0 0.0
  %1216 = vmatpush1.msra.mxu0 %v1129
  %1217 = vmatprep.subr.mxu0 0.0
  %1218 = vmatpush1.msra.mxu0 %v1130
  %1219 = vmatprep.subr.mxu0 0.0
  %1220 = vmatpush1.msra.mxu0 %v1131
  %1221 = vmatprep.subr.mxu0 0.0
  %1222 = vmatpush1.msra.mxu0 %v1132
  %1223 = vmatprep.subr.mxu0 0.0
  %1224 = vmatpush1.msra.mxu0 %v1133
  %1225 = vmatprep.subr.mxu0 0.0
  %1226 = vmatpush1.msra.mxu0 %v1134
  %1227 = vmatprep.subr.mxu0 0.0
  %1228 = vmatpush1.msra.mxu0 %v1135
  %1229 = vmatprep.subr.mxu0 0.0
  %1230 = vmatpush1.msra.mxu0 %v1136
  %1231 = vmatprep.subr.mxu0 0.0
  %1232 = vmatpush1.msra.mxu0 %v1137
  %1233 = vmatprep.subr.mxu0 0.0
  %1234 = vmatpush1.msra.mxu0 %v1138
  %1235 = vmatprep.subr.mxu0 0.0
  %1236 = vmatpush1.msra.mxu0 %v1139
  %1237 = vmatprep.subr.mxu0 0.0
  %1238 = vmatpush1.msra.mxu0 %v1140
  %1239 = vmatprep.subr.mxu0 0.0
  %1240 = vmatpush1.msra.mxu0 %v1141
  %1241 = vmatprep.subr.mxu0 0.0
  %1242 = vmatpush1.msra.mxu0 %v1142
  %1243 = vmatprep.subr.mxu0 0.0
  %1244 = vmatpush1.msra.mxu0 %v1143
  %1245 = vmatprep.subr.mxu0 0.0
  %1246 = vmatpush1.msra.mxu0 %v1144
  %1247 = vmatprep.subr.mxu0 0.0
  %1248 = vmatpush1.msra.mxu0 %v1145
  %1249 = vmatprep.subr.mxu0 0.0
  %1250 = vmatpush1.msra.mxu0 %v1146
  %1251 = vmatprep.subr.mxu0 0.0
  %1252 = vmatpush1.msra.mxu0 %v1147
  %1253 = vmatprep.subr.mxu0 0.0
  %1254 = vmatpush1.msra.mxu0 %v1148
  %1255 = vmatprep.subr.mxu0 0.0
  %1256 = vmatpush1.msra.mxu0 %v1149
  %1257 = vmatprep.subr.mxu0 0.0
  %1258 = vmatpush1.msra.mxu0 %v1150
  %1259 = vmatprep.subr.mxu0 0.0
  %1260 = vmatpush1.msra.mxu0 %v1151
  %1261 = vmatprep.subr.mxu0 0.0
  %1262 = vmatpush1.msra.mxu0 %v1152
  %1263 = vmatprep.subr.mxu0 0.0
  %1264 = vmatpush1.msra.mxu0 %v1153
  %1265 = vmatprep.subr.mxu0 0.0
  %1266 = vmatpush1.msra.mxu0 %v1203
  %1267 = vmatprep.subr.mxu0 0.0
  %1268 = vmatpush1.msra.mxu0 0.0
  %1269 = vmatprep.mubr.f32.mxu0 %v1157
  %1270 = vmatmul.mubr.f32.gmra.mrb[0].mxu0 %v970
  %v1271 = vpop.f32.mrb[0].mxu0
  %v1272 = vadd.f32 0.0, %v1271
  %v1273 = vpop.f32.mrb[0].mxu0
  %1274 = vmatprep.mubr.f32.mxu0 %v1160
  %1275 = vmatmul.mubr.f32.gmra.mrb[0].mxu0 %v972
  %v1276 = vpop.f32.mrb[0].mxu0
  %v1277 = vadd.f32 0.0, %v1276
  %v1278 = vpop.f32.mrb[0].mxu0
  %1279 = vmatprep.mubr.f32.mxu0 %v1163
  %1280 = vmatmul.mubr.f32.gmra.mrb[0].mxu0 %v974
  %v1281 = vpop.f32.mrb[0].mxu0
  %v1282 = vadd.f32 0.0, %v1281
  %v1283 = vpop.f32.mrb[0].mxu0
  %1284 = vmatprep.mubr.f32.mxu0 %v1166
  %1285 = vmatmul.mubr.f32.gmra.mrb[0].mxu0 %v976
  %v1286 = vpop.f32.mrb[0].mxu0
  %v1287 = vadd.f32 0.0, %v1286
  %v1288 = vpop.f32.mrb[0].mxu0
  %1289 = vmatprep.mubr.f32.mxu0 %v1169
  %1290 = vmatmul.mubr.f32.gmra.mrb[0].mxu0 %v978
  %v1291 = vpop.f32.mrb[0].mxu0
  %v1292 = vadd.f32 0.0, %v1291
  %v1293 = vpop.f32.mrb[0].mxu0
  %1294 = vmatprep.mubr.f32.mxu0 %v1172
  %1295 = vmatmul.mubr.f32.gmra.mrb[0].mxu0 %v980
  %v1296 = vpop.f32.mrb[0].mxu0
  %v1297 = vadd.f32 0.0, %v1296
  %v1298 = vpop.f32.mrb[0].mxu0
  %1299 = vmatprep.mubr.f32.mxu0 %v1175
  %1300 = vmatmul.mubr.f32.gmra.mrb[0].mxu0 %v982
  %v1301 = vpop.f32.mrb[0].mxu0
  %v1302 = vadd.f32 0.0, %v1301
  %v1303 = vpop.f32.mrb[0].mxu0
  %1304 = vmatprep.mubr.f32.mxu0 %v1178
  %1305 = vmatmul.mubr.f32.gmra.mrb[0].mxu0 %v984
  %v1306 = vpop.f32.mrb[0].mxu0
  %v1307 = vadd.f32 0.0, %v1306
  %v1308 = vpop.f32.mrb[0].mxu0
  %1309 = vmatprep.mubr.f32.mxu0 %v1181
  %1310 = vmatmul.mubr.f32.gmra.mrb[0].mxu0 %v986
  %v1311 = vpop.f32.mrb[0].mxu0
  %v1312 = vadd.f32 0.0, %v1311
  %v1313 = vpop.f32.mrb[0].mxu0
  %1314 = vmatprep.mubr.f32.mxu0 %v1184
  %1315 = vmatmul.mubr.f32.gmra.mrb[0].mxu0 %v988
  %v1316 = vpop.f32.mrb[0].mxu0
  %v1317 = vadd.f32 0.0, %v1316
  %v1318 = vpop.f32.mrb[0].mxu0
  %1319 = vmatprep.mubr.f32.mxu0 %v1187
  %1320 = vmatmul.mubr.f32.gmra.mrb[0].mxu0 %v990
  %v1321 = vpop.f32.mrb[0].mxu0
  %v1322 = vadd.f32 0.0, %v1321
  %v1323 = vpop.f32.mrb[0].mxu0
  %1324 = vmatprep.mubr.f32.mxu0 %v1190
  %1325 = vmatmul.mubr.f32.gmra.mrb[0].mxu0 %v992
  %v1326 = vpop.f32.mrb[0].mxu0
  %v1327 = vadd.f32 0.0, %v1326
  %v1328 = vpop.f32.mrb[0].mxu0
  %1329 = vmatprep.mubr.f32.mxu0 %v1193
  %1330 = vmatmul.mubr.f32.gmra.mrb[0].mxu0 %v994
  %v1331 = vpop.f32.mrb[0].mxu0
  %v1332 = vadd.f32 0.0, %v1331
  %v1333 = vpop.f32.mrb[0].mxu0
  %1334 = vmatprep.mubr.f32.mxu0 %v1196
  %1335 = vmatmul.mubr.f32.gmra.mrb[0].mxu0 %v996
  %v1336 = vpop.f32.mrb[0].mxu0
  %v1337 = vadd.f32 0.0, %v1336
  %v1338 = vpop.f32.mrb[0].mxu0
  %1339 = vmatprep.mubr.f32.mxu0 %v1199
  %1340 = vmatmul.mubr.f32.gmra.mrb[0].mxu0 %v998
  %v1341 = vpop.f32.mrb[0].mxu0
  %v1342 = vadd.f32 0.0, %v1341
  %v1343 = vpop.f32.mrb[0].mxu0
  %1344 = vdwg.mxu0
  %s1345 = scalar_lea.vmem %s1, 192
  %v1346 = vld [vmem:[%s1345] sm:$0xff]
  %v1347 = vld [vmem:[%s1345 + $0x8] sm:$0xff]
  %v1348 = vld [vmem:[%s1345 + $0x10] sm:$0xff]
  %v1349 = vld [vmem:[%s1345 + $0x18] sm:$0xff]
  %v1350 = vld [vmem:[%s1345 + $0x20] sm:$0xff]
  %v1351 = vld [vmem:[%s1345 + $0x28] sm:$0xff]
  %v1352 = vld [vmem:[%s1345 + $0x30] sm:$0xff]
  %v1353 = vld [vmem:[%s1345 + $0x38] sm:$0xff]
  %v1354 = vld [vmem:[%s1345 + $0x40] sm:$0xff]
  %v1355 = vld [vmem:[%s1345 + $0x48] sm:$0xff]
  %v1356 = vld [vmem:[%s1345 + $0x50] sm:$0xff]
  %v1357 = vld [vmem:[%s1345 + $0x58] sm:$0xff]
  %v1358 = vld [vmem:[%s1345 + $0x60] sm:$0xff]
  %v1359 = vld [vmem:[%s1345 + $0x68] sm:$0xff]
  %v1360 = vld [vmem:[%s1345 + $0x70] sm:$0xff]
  %v1361 = vld [vmem:[%s1345 + $0x78] sm:$0xff]
  %v1362 = vld [vmem:[%s1345 + $0x80] sm:$0xff]
  %v1363 = vld [vmem:[%s1345 + $0x88] sm:$0xff]
  %v1364 = vld [vmem:[%s1345 + $0x90] sm:$0xff]
  %v1365 = vld [vmem:[%s1345 + $0x98] sm:$0xff]
  %v1366 = vld [vmem:[%s1345 + $0xa0] sm:$0xff]
  %v1367 = vld [vmem:[%s1345 + $0xa8] sm:$0xff]
  %v1368 = vld [vmem:[%s1345 + $0xb0] sm:$0xff]
  %v1369 = vld [vmem:[%s1345 + $0xb8] sm:$0xff]
  %v1378 = vrot.slane %v1272, 1
  %v1379 = vrot.slane %v1277, 1
  %v1380 = vsel %vm1031, %v1378, %v1379
  %v1381 = vrot.slane %v1282, 1
  %v1382 = vsel %vm1031, %v1379, %v1381
  %v1383 = vrot.slane %v1287, 1
  %v1384 = vsel %vm1031, %v1381, %v1383
  %v1385 = vrot.slane %v1292, 1
  %v1386 = vsel %vm1031, %v1383, %v1385
  %v1387 = vrot.slane %v1297, 1
  %v1388 = vsel %vm1031, %v1385, %v1387
  %v1389 = vrot.slane %v1302, 1
  %v1390 = vsel %vm1031, %v1387, %v1389
  %v1391 = vrot.slane %v1307, 1
  %v1392 = vsel %vm1031, %v1389, %v1391
  %1393 = vrot.lane.b32.xlu0 %v1380, 64
  %v1394 = vpop.permute.xlu0 %1393
  %1395 = vrot.lane.b32.xlu0 %v1382, 64
  %v1396 = vpop.permute.xlu0 %1395
  %1397 = vrot.lane.b32.xlu0 %v1384, 64
  %v1398 = vpop.permute.xlu0 %1397
  %1399 = vrot.lane.b32.xlu0 %v1386, 64
  %v1400 = vpop.permute.xlu0 %1399
  %1401 = vrot.lane.b32.xlu0 %v1388, 64
  %v1402 = vpop.permute.xlu0 %1401
  %1403 = vrot.lane.b32.xlu0 %v1390, 64
  %v1404 = vpop.permute.xlu0 %1403
  %1405 = vrot.lane.b32.xlu0 %v1392, 64
  %v1406 = vpop.permute.xlu0 %1405
  %1407 = vrot.lane.b32.xlu0 %v1391, 64
  %v1408 = vpop.permute.xlu0 %1407
  %vm1417 = vcmask 1045504
  %v1418 = vrot.slane %v1272, 2
  %v1419 = vrot.slane %v1277, 2
  %v1420 = vsel %vm1417, %v1418, %v1419
  %v1421 = vrot.slane %v1282, 2
  %v1422 = vsel %vm1417, %v1419, %v1421
  %v1423 = vrot.slane %v1287, 2
  %v1424 = vsel %vm1417, %v1421, %v1423
  %v1425 = vrot.slane %v1292, 2
  %v1426 = vsel %vm1417, %v1423, %v1425
  %v1427 = vrot.slane %v1297, 2
  %v1428 = vsel %vm1417, %v1425, %v1427
  %v1429 = vrot.slane %v1302, 2
  %v1430 = vsel %vm1417, %v1427, %v1429
  %v1431 = vrot.slane %v1307, 2
  %v1432 = vsel %vm1417, %v1429, %v1431
  %v1433 = vsel %vm60, %v1272, %v1394
  %v1434 = vsel %vm60, %v1277, %v1396
  %v1435 = vsel %vm60, %v1282, %v1398
  %v1436 = vsel %vm60, %v1287, %v1400
  %v1437 = vsel %vm60, %v1292, %v1402
  %v1438 = vsel %vm60, %v1297, %v1404
  %v1439 = vsel %vm60, %v1302, %v1406
  %v1440 = vsel %vm60, %v1307, %v1408
  %v1441 = vsel %vm60, %v1420, 0
  %v1443 = vsel %vm60, %v1422, 0
  %v1445 = vsel %vm60, %v1424, 0
  %v1447 = vsel %vm60, %v1426, 0
  %v1449 = vsel %vm60, %v1428, 0
  %v1451 = vsel %vm60, %v1430, 0
  %v1453 = vsel %vm60, %v1432, 0
  %v1455 = vsel %vm60, %v1431, 0
  %1457 = vmatprep.subr.mxu0 0.0
  %1458 = vmatpush1.msra.mxu0 %v1346
  %1459 = vmatprep.subr.mxu0 0.0
  %1460 = vmatpush1.msra.mxu0 %v1347
  %1461 = vmatprep.subr.mxu0 0.0
  %1462 = vmatpush1.msra.mxu0 %v1348
  %1463 = vmatprep.subr.mxu0 0.0
  %1464 = vmatpush1.msra.mxu0 %v1349
  %1465 = vmatprep.subr.mxu0 0.0
  %1466 = vmatpush1.msra.mxu0 %v1350
  %1467 = vmatprep.subr.mxu0 0.0
  %1468 = vmatpush1.msra.mxu0 %v1351
  %1469 = vmatprep.subr.mxu0 0.0
  %1470 = vmatpush1.msra.mxu0 %v1352
  %1471 = vmatprep.subr.mxu0 0.0
  %1472 = vmatpush1.msra.mxu0 %v1353
  %1473 = vmatprep.subr.mxu0 0.0
  %1474 = vmatpush1.msra.mxu0 %v1354
  %1475 = vmatprep.subr.mxu0 0.0
  %1476 = vmatpush1.msra.mxu0 %v1355
  %1477 = vmatprep.subr.mxu0 0.0
  %1478 = vmatpush1.msra.mxu0 %v1356
  %1479 = vmatprep.subr.mxu0 0.0
  %1480 = vmatpush1.msra.mxu0 %v1357
  %1481 = vmatprep.subr.mxu0 0.0
  %1482 = vmatpush1.msra.mxu0 %v1358
  %1483 = vmatprep.subr.mxu0 0.0
  %1484 = vmatpush1.msra.mxu0 %v1359
  %1485 = vmatprep.subr.mxu0 0.0
  %1486 = vmatpush1.msra.mxu0 %v1360
  %1487 = vmatprep.subr.mxu0 0.0
  %1488 = vmatpush1.msra.mxu0 %v1361
  %1489 = vmatprep.subr.mxu0 0.0
  %1490 = vmatpush1.msra.mxu0 %v1362
  %1491 = vmatprep.subr.mxu0 0.0
  %1492 = vmatpush1.msra.mxu0 %v1363
  %1493 = vmatprep.subr.mxu0 0.0
  %1494 = vmatpush1.msra.mxu0 %v1364
  %1495 = vmatprep.subr.mxu0 0.0
  %1496 = vmatpush1.msra.mxu0 %v1365
  %1497 = vmatprep.subr.mxu0 0.0
  %1498 = vmatpush1.msra.mxu0 %v1366
  %1499 = vmatprep.subr.mxu0 0.0
  %1500 = vmatpush1.msra.mxu0 %v1367
  %1501 = vmatprep.subr.mxu0 0.0
  %1502 = vmatpush1.msra.mxu0 %v1368
  %1503 = vmatprep.subr.mxu0 0.0
  %1504 = vmatpush1.msra.mxu0 %v1369
  %1505 = vmatprep.subr.mxu0 0.0
  %1506 = vmatpush1.msra.mxu0 0.0
  %1507 = vmatprep.subr.mxu0 0.0
  %1508 = vmatpush1.msra.mxu0 0.0
  %1509 = vmatprep.subr.mxu0 0.0
  %1510 = vmatpush1.msra.mxu0 0.0
  %1511 = vmatprep.subr.mxu0 0.0
  %1512 = vmatpush1.msra.mxu0 0.0
  %1513 = vmatprep.subr.mxu0 0.0
  %1514 = vmatpush1.msra.mxu0 0.0
  %1515 = vmatprep.subr.mxu0 0.0
  %1516 = vmatpush1.msra.mxu0 0.0
  %1517 = vmatprep.subr.mxu0 0.0
  %1518 = vmatpush1.msra.mxu0 0.0
  %1519 = vmatprep.subr.mxu0 0.0
  %1520 = vmatpush1.msra.mxu0 0.0
  %1521 = vmatprep.mubr.f32.mxu0 %v1441
  %1522 = vmatmul.mubr.f32.gmra.mrb[0].mxu0 %v1433
  %v1523 = vpop.f32.mrb[0].mxu0
  %v1524 = vadd.f32 0.0, %v1523
  %v1525 = vpop.f32.mrb[0].mxu0
  %1526 = vmatprep.mubr.f32.mxu0 %v1443
  %1527 = vmatmul.mubr.f32.gmra.mrb[0].mxu0 %v1434
  %v1528 = vpop.f32.mrb[0].mxu0
  %v1529 = vadd.f32 0.0, %v1528
  %v1530 = vpop.f32.mrb[0].mxu0
  %1531 = vmatprep.mubr.f32.mxu0 %v1445
  %1532 = vmatmul.mubr.f32.gmra.mrb[0].mxu0 %v1435
  %v1533 = vpop.f32.mrb[0].mxu0
  %v1534 = vadd.f32 0.0, %v1533
  %v1535 = vpop.f32.mrb[0].mxu0
  %1536 = vmatprep.mubr.f32.mxu0 %v1447
  %1537 = vmatmul.mubr.f32.gmra.mrb[0].mxu0 %v1436
  %v1538 = vpop.f32.mrb[0].mxu0
  %v1539 = vadd.f32 0.0, %v1538
  %v1540 = vpop.f32.mrb[0].mxu0
  %1541 = vmatprep.mubr.f32.mxu0 %v1449
  %1542 = vmatmul.mubr.f32.gmra.mrb[0].mxu0 %v1437
  %v1543 = vpop.f32.mrb[0].mxu0
  %v1544 = vadd.f32 0.0, %v1543
  %v1545 = vpop.f32.mrb[0].mxu0
  %1546 = vmatprep.mubr.f32.mxu0 %v1451
  %1547 = vmatmul.mubr.f32.gmra.mrb[0].mxu0 %v1438
  %v1548 = vpop.f32.mrb[0].mxu0
  %v1549 = vadd.f32 0.0, %v1548
  %v1550 = vpop.f32.mrb[0].mxu0
  %1551 = vmatprep.mubr.f32.mxu0 %v1453
  %1552 = vmatmul.mubr.f32.gmra.mrb[0].mxu0 %v1439
  %v1553 = vpop.f32.mrb[0].mxu0
  %v1554 = vadd.f32 0.0, %v1553
  %v1555 = vpop.f32.mrb[0].mxu0
  %1556 = vmatprep.mubr.f32.mxu0 %v1455
  %1557 = vmatmul.mubr.f32.gmra.mrb[0].mxu0 %v1440
  %v1558 = vpop.f32.mrb[0].mxu0
  %v1559 = vadd.f32 0.0, %v1558
  %v1560 = vpop.f32.mrb[0].mxu0
  %1561 = vdwg.mxu0
  %v1569 = vrot.slane %v1312, 1
  %v1570 = vsel %vm1031, %v1391, %v1569
  %v1571 = vrot.slane %v1317, 1
  %v1572 = vsel %vm1031, %v1569, %v1571
  %v1573 = vrot.slane %v1322, 1
  %v1574 = vsel %vm1031, %v1571, %v1573
  %v1575 = vrot.slane %v1327, 1
  %v1576 = vsel %vm1031, %v1573, %v1575
  %v1577 = vrot.slane %v1332, 1
  %v1578 = vsel %vm1031, %v1575, %v1577
  %v1579 = vrot.slane %v1337, 1
  %v1580 = vsel %vm1031, %v1577, %v1579
  %v1581 = vrot.slane %v1342, 1
  %v1582 = vsel %vm1031, %v1579, %v1581
  %1583 = vrot.lane.b32.xlu0 %v1570, 64
  %v1584 = vpop.permute.xlu0 %1583
  %1585 = vrot.lane.b32.xlu0 %v1572, 64
  %v1586 = vpop.permute.xlu0 %1585
  %1587 = vrot.lane.b32.xlu0 %v1574, 64
  %v1588 = vpop.permute.xlu0 %1587
  %1589 = vrot.lane.b32.xlu0 %v1576, 64
  %v1590 = vpop.permute.xlu0 %1589
  %1591 = vrot.lane.b32.xlu0 %v1578, 64
  %v1592 = vpop.permute.xlu0 %1591
  %1593 = vrot.lane.b32.xlu0 %v1580, 64
  %v1594 = vpop.permute.xlu0 %1593
  %1595 = vrot.lane.b32.xlu0 %v1582, 64
  %v1596 = vpop.permute.xlu0 %1595
  %1597 = vrot.lane.b32.xlu0 %v1581, 64
  %v1598 = vpop.permute.xlu0 %1597
  %v1607 = vrot.slane %v1312, 2
  %v1608 = vsel %vm1417, %v1431, %v1607
  %v1609 = vrot.slane %v1317, 2
  %v1610 = vsel %vm1417, %v1607, %v1609
  %v1611 = vrot.slane %v1322, 2
  %v1612 = vsel %vm1417, %v1609, %v1611
  %v1613 = vrot.slane %v1327, 2
  %v1614 = vsel %vm1417, %v1611, %v1613
  %v1615 = vrot.slane %v1332, 2
  %v1616 = vsel %vm1417, %v1613, %v1615
  %v1617 = vrot.slane %v1337, 2
  %v1618 = vsel %vm1417, %v1615, %v1617
  %v1619 = vrot.slane %v1342, 2
  %v1620 = vsel %vm1417, %v1617, %v1619
  %v1621 = vsel %vm60, %v1307, %v1584
  %v1622 = vsel %vm60, %v1312, %v1586
  %v1623 = vsel %vm60, %v1317, %v1588
  %v1624 = vsel %vm60, %v1322, %v1590
  %v1625 = vsel %vm60, %v1327, %v1592
  %v1626 = vsel %vm60, %v1332, %v1594
  %v1627 = vsel %vm60, %v1337, %v1596
  %v1628 = vsel %vm60, %v1342, %v1598
  %vm1637 = vcmask 1043456
  %v1638 = vrot.slane %v1621, 4
  %v1639 = vrot.slane %v1622, 4
  %v1640 = vsel %vm1637, %v1638, %v1639
  %v1641 = vrot.slane %v1608, 4
  %v1642 = vrot.slane %v1610, 4
  %v1643 = vsel %vm1637, %v1641, %v1642
  %v1644 = vrot.slane %v1623, 4
  %v1645 = vsel %vm1637, %v1639, %v1644
  %v1646 = vrot.slane %v1612, 4
  %v1647 = vsel %vm1637, %v1642, %v1646
  %v1648 = vrot.slane %v1624, 4
  %v1649 = vsel %vm1637, %v1644, %v1648
  %v1650 = vrot.slane %v1614, 4
  %v1651 = vsel %vm1637, %v1646, %v1650
  %v1652 = vrot.slane %v1625, 4
  %v1653 = vsel %vm1637, %v1648, %v1652
  %v1654 = vrot.slane %v1616, 4
  %v1655 = vsel %vm1637, %v1650, %v1654
  %v1656 = vrot.slane %v1626, 4
  %v1657 = vsel %vm1637, %v1652, %v1656
  %v1658 = vrot.slane %v1618, 4
  %v1659 = vsel %vm1637, %v1654, %v1658
  %v1660 = vrot.slane %v1627, 4
  %v1661 = vsel %vm1637, %v1656, %v1660
  %v1662 = vrot.slane %v1620, 4
  %v1663 = vsel %vm1637, %v1658, %v1662
  %v1664 = vrot.slane %v1628, 4
  %v1665 = vsel %vm1637, %v1660, %v1664
  %v1666 = vrot.slane %v1619, 4
  %v1667 = vsel %vm1637, %v1662, %v1666
  %v1676 = vsel %vm60, %v1643, 0
  %v1678 = vsel %vm60, %v1647, 0
  %v1680 = vsel %vm60, %v1651, 0
  %v1682 = vsel %vm60, %v1655, 0
  %v1684 = vsel %vm60, %v1659, 0
  %v1686 = vsel %vm60, %v1663, 0
  %v1688 = vsel %vm60, %v1667, 0
  %v1690 = vsel %vm60, %v1666, 0
  %1692 = vmatprep.subr.mxu0 0.0
  %1693 = vmatpush1.msra.mxu0 %v1346
  %1694 = vmatprep.subr.mxu0 0.0
  %1695 = vmatpush1.msra.mxu0 %v1347
  %1696 = vmatprep.subr.mxu0 0.0
  %1697 = vmatpush1.msra.mxu0 %v1348
  %1698 = vmatprep.subr.mxu0 0.0
  %1699 = vmatpush1.msra.mxu0 %v1349
  %1700 = vmatprep.subr.mxu0 0.0
  %1701 = vmatpush1.msra.mxu0 %v1350
  %1702 = vmatprep.subr.mxu0 0.0
  %1703 = vmatpush1.msra.mxu0 %v1351
  %1704 = vmatprep.subr.mxu0 0.0
  %1705 = vmatpush1.msra.mxu0 %v1352
  %1706 = vmatprep.subr.mxu0 0.0
  %1707 = vmatpush1.msra.mxu0 %v1353
  %1708 = vmatprep.subr.mxu0 0.0
  %1709 = vmatpush1.msra.mxu0 %v1354
  %1710 = vmatprep.subr.mxu0 0.0
  %1711 = vmatpush1.msra.mxu0 %v1355
  %1712 = vmatprep.subr.mxu0 0.0
  %1713 = vmatpush1.msra.mxu0 %v1356
  %1714 = vmatprep.subr.mxu0 0.0
  %1715 = vmatpush1.msra.mxu0 %v1357
  %1716 = vmatprep.subr.mxu0 0.0
  %1717 = vmatpush1.msra.mxu0 %v1358
  %1718 = vmatprep.subr.mxu0 0.0
  %1719 = vmatpush1.msra.mxu0 %v1359
  %1720 = vmatprep.subr.mxu0 0.0
  %1721 = vmatpush1.msra.mxu0 %v1360
  %1722 = vmatprep.subr.mxu0 0.0
  %1723 = vmatpush1.msra.mxu0 %v1361
  %1724 = vmatprep.subr.mxu0 0.0
  %1725 = vmatpush1.msra.mxu0 %v1362
  %1726 = vmatprep.subr.mxu0 0.0
  %1727 = vmatpush1.msra.mxu0 %v1363
  %1728 = vmatprep.subr.mxu0 0.0
  %1729 = vmatpush1.msra.mxu0 %v1364
  %1730 = vmatprep.subr.mxu0 0.0
  %1731 = vmatpush1.msra.mxu0 %v1365
  %1732 = vmatprep.subr.mxu0 0.0
  %1733 = vmatpush1.msra.mxu0 %v1366
  %1734 = vmatprep.subr.mxu0 0.0
  %1735 = vmatpush1.msra.mxu0 %v1367
  %1736 = vmatprep.subr.mxu0 0.0
  %1737 = vmatpush1.msra.mxu0 %v1368
  %1738 = vmatprep.subr.mxu0 0.0
  %1739 = vmatpush1.msra.mxu0 %v1369
  %1740 = vmatprep.subr.mxu0 0.0
  %1741 = vmatpush1.msra.mxu0 0.0
  %1742 = vmatprep.subr.mxu0 0.0
  %1743 = vmatpush1.msra.mxu0 0.0
  %1744 = vmatprep.subr.mxu0 0.0
  %1745 = vmatpush1.msra.mxu0 0.0
  %1746 = vmatprep.subr.mxu0 0.0
  %1747 = vmatpush1.msra.mxu0 0.0
  %1748 = vmatprep.subr.mxu0 0.0
  %1749 = vmatpush1.msra.mxu0 0.0
  %1750 = vmatprep.subr.mxu0 0.0
  %1751 = vmatpush1.msra.mxu0 0.0
  %1752 = vmatprep.subr.mxu0 0.0
  %1753 = vmatpush1.msra.mxu0 0.0
  %1754 = vmatprep.subr.mxu0 0.0
  %1755 = vmatpush1.msra.mxu0 0.0
  %1756 = vmatprep.mubr.f32.mxu0 %v1676
  %1757 = vmatmul.mubr.f32.gmra.mrb[0].mxu0 %v1640
  %v1758 = vpop.f32.mrb[0].mxu0
  %v1759 = vadd.f32 0.0, %v1758
  %v1760 = vpop.f32.mrb[0].mxu0
  %1761 = vmatprep.mubr.f32.mxu0 %v1678
  %1762 = vmatmul.mubr.f32.gmra.mrb[0].mxu0 %v1645
  %v1763 = vpop.f32.mrb[0].mxu0
  %v1764 = vadd.f32 0.0, %v1763
  %v1765 = vpop.f32.mrb[0].mxu0
  %1766 = vmatprep.mubr.f32.mxu0 %v1680
  %1767 = vmatmul.mubr.f32.gmra.mrb[0].mxu0 %v1649
  %v1768 = vpop.f32.mrb[0].mxu0
  %v1769 = vadd.f32 0.0, %v1768
  %v1770 = vpop.f32.mrb[0].mxu0
  %1771 = vmatprep.mubr.f32.mxu0 %v1682
  %1772 = vmatmul.mubr.f32.gmra.mrb[0].mxu0 %v1653
  %v1773 = vpop.f32.mrb[0].mxu0
  %v1774 = vadd.f32 0.0, %v1773
  %v1775 = vpop.f32.mrb[0].mxu0
  %1776 = vmatprep.mubr.f32.mxu0 %v1684
  %1777 = vmatmul.mubr.f32.gmra.mrb[0].mxu0 %v1657
  %v1778 = vpop.f32.mrb[0].mxu0
  %v1779 = vadd.f32 0.0, %v1778
  %v1780 = vpop.f32.mrb[0].mxu0
  %1781 = vmatprep.mubr.f32.mxu0 %v1686
  %1782 = vmatmul.mubr.f32.gmra.mrb[0].mxu0 %v1661
  %v1783 = vpop.f32.mrb[0].mxu0
  %v1784 = vadd.f32 0.0, %v1783
  %v1785 = vpop.f32.mrb[0].mxu0
  %1786 = vmatprep.mubr.f32.mxu0 %v1688
  %1787 = vmatmul.mubr.f32.gmra.mrb[0].mxu0 %v1665
  %v1788 = vpop.f32.mrb[0].mxu0
  %v1789 = vadd.f32 0.0, %v1788
  %v1790 = vpop.f32.mrb[0].mxu0
  %1791 = vmatprep.mubr.f32.mxu0 %v1690
  %1792 = vmatmul.mubr.f32.gmra.mrb[0].mxu0 %v1664
  %v1793 = vpop.f32.mrb[0].mxu0
  %v1794 = vadd.f32 0.0, %v1793
  %v1795 = vpop.f32.mrb[0].mxu0
  %1796 = vdwg.mxu0
  %v1797 = vsel %vm60, %v1524, 0.0
  %v1798 = vsel %vm60, %v1529, 0.0
  %v1799 = vadd.f32 %v1797, %v1798
  %v1800 = vsel %vm60, %v1534, 0.0
  %v1801 = vadd.f32 %v1799, %v1800
  %v1802 = vsel %vm60, %v1539, 0.0
  %v1803 = vadd.f32 %v1801, %v1802
  %v1804 = vsel %vm60, %v1544, 0.0
  %v1805 = vadd.f32 %v1803, %v1804
  %v1806 = vsel %vm60, %v1549, 0.0
  %v1807 = vadd.f32 %v1805, %v1806
  %v1808 = vsel %vm60, %v1554, 0.0
  %v1809 = vadd.f32 %v1807, %v1808
  %v1810 = vsel %vm433, %v1559, 0.0
  %v1811 = vadd.f32 %v1809, %v1810
  %v1812 = vrot.slane %v1811, 4
  %v1813 = vadd.f32 %v1811, %v1812
  %v1814 = vrot.slane %v1813, 2
  %v1815 = vadd.f32 %v1813, %v1814
  %v1816 = vrot.slane %v1815, 1
  %v1817 = vadd.f32 %v1815, %v1816
  %v1818 = vsel %vm60, %v1759, 0.0
  %v1819 = vsel %vm60, %v1764, 0.0
  %v1820 = vadd.f32 %v1818, %v1819
  %v1821 = vsel %vm60, %v1769, 0.0
  %v1822 = vadd.f32 %v1820, %v1821
  %v1823 = vsel %vm60, %v1774, 0.0
  %v1824 = vadd.f32 %v1822, %v1823
  %v1825 = vsel %vm60, %v1779, 0.0
  %v1826 = vadd.f32 %v1824, %v1825
  %v1827 = vsel %vm60, %v1784, 0.0
  %v1828 = vadd.f32 %v1826, %v1827
  %v1829 = vsel %vm60, %v1789, 0.0
  %v1830 = vadd.f32 %v1828, %v1829
  %v1831 = vsel %vm433, %v1794, 0.0
  %v1832 = vadd.f32 %v1830, %v1831
  %v1833 = vrot.slane %v1832, 4
  %v1834 = vadd.f32 %v1832, %v1833
  %v1835 = vrot.slane %v1834, 2
  %v1836 = vadd.f32 %v1834, %v1835
  %v1837 = vrot.slane %v1836, 1
  %v1838 = vadd.f32 %v1836, %v1837
  %v1839 = vadd.f32 %v1817, %v1838
  %v1840 = vmul.f32 %v1839, 0.00862069
  %v1841 = vsub.f32 %v1524, %v1840
  %v1842 = vsub.f32 %v1529, %v1840
  %v1843 = vsub.f32 %v1534, %v1840
  %v1844 = vsub.f32 %v1539, %v1840
  %v1845 = vsub.f32 %v1544, %v1840
  %v1846 = vsub.f32 %v1549, %v1840
  %v1847 = vsub.f32 %v1554, %v1840
  %v1848 = vsub.f32 %v1559, %v1840
  %v1849 = vsub.f32 %v1759, %v1840
  %v1850 = vsub.f32 %v1764, %v1840
  %v1851 = vsub.f32 %v1769, %v1840
  %v1852 = vsub.f32 %v1774, %v1840
  %v1853 = vsub.f32 %v1779, %v1840
  %v1854 = vsub.f32 %v1784, %v1840
  %v1855 = vsub.f32 %v1789, %v1840
  %v1856 = vsub.f32 %v1794, %v1840
  %v1857 = vmul.f32 %v1841, %v1841
  %v1858 = vmul.f32 %v1842, %v1842
  %v1859 = vmul.f32 %v1843, %v1843
  %v1860 = vmul.f32 %v1844, %v1844
  %v1861 = vmul.f32 %v1845, %v1845
  %v1862 = vmul.f32 %v1846, %v1846
  %v1863 = vmul.f32 %v1847, %v1847
  %v1864 = vmul.f32 %v1848, %v1848
  %v1865 = vsel %vm60, %v1857, 0.0
  %v1866 = vsel %vm60, %v1858, 0.0
  %v1867 = vadd.f32 %v1865, %v1866
  %v1868 = vsel %vm60, %v1859, 0.0
  %v1869 = vadd.f32 %v1867, %v1868
  %v1870 = vsel %vm60, %v1860, 0.0
  %v1871 = vadd.f32 %v1869, %v1870
  %v1872 = vsel %vm60, %v1861, 0.0
  %v1873 = vadd.f32 %v1871, %v1872
  %v1874 = vsel %vm60, %v1862, 0.0
  %v1875 = vadd.f32 %v1873, %v1874
  %v1876 = vsel %vm60, %v1863, 0.0
  %v1877 = vadd.f32 %v1875, %v1876
  %v1878 = vsel %vm433, %v1864, 0.0
  %v1879 = vadd.f32 %v1877, %v1878
  %v1880 = vrot.slane %v1879, 4
  %v1881 = vadd.f32 %v1879, %v1880
  %v1882 = vrot.slane %v1881, 2
  %v1883 = vadd.f32 %v1881, %v1882
  %v1884 = vrot.slane %v1883, 1
  %v1885 = vadd.f32 %v1883, %v1884
  %v1886 = vmul.f32 %v1849, %v1849
  %v1887 = vmul.f32 %v1850, %v1850
  %v1888 = vmul.f32 %v1851, %v1851
  %v1889 = vmul.f32 %v1852, %v1852
  %v1890 = vmul.f32 %v1853, %v1853
  %v1891 = vmul.f32 %v1854, %v1854
  %v1892 = vmul.f32 %v1855, %v1855
  %v1893 = vmul.f32 %v1856, %v1856
  %v1894 = vsel %vm60, %v1886, 0.0
  %v1895 = vsel %vm60, %v1887, 0.0
  %v1896 = vadd.f32 %v1894, %v1895
  %v1897 = vsel %vm60, %v1888, 0.0
  %v1898 = vadd.f32 %v1896, %v1897
  %v1899 = vsel %vm60, %v1889, 0.0
  %v1900 = vadd.f32 %v1898, %v1899
  %v1901 = vsel %vm60, %v1890, 0.0
  %v1902 = vadd.f32 %v1900, %v1901
  %v1903 = vsel %vm60, %v1891, 0.0
  %v1904 = vadd.f32 %v1902, %v1903
  %v1905 = vsel %vm60, %v1892, 0.0
  %v1906 = vadd.f32 %v1904, %v1905
  %v1907 = vsel %vm433, %v1893, 0.0
  %v1908 = vadd.f32 %v1906, %v1907
  %v1909 = vrot.slane %v1908, 4
  %v1910 = vadd.f32 %v1908, %v1909
  %v1911 = vrot.slane %v1910, 2
  %v1912 = vadd.f32 %v1910, %v1911
  %v1913 = vrot.slane %v1912, 1
  %v1914 = vadd.f32 %v1912, %v1913
  %v1915 = vadd.f32 %v1885, %v1914
  %v1916 = vmul.f32 %v1915, 0.00862069
  %v1917 = vadd.f32 %v1916, 1e-05
  %v1918 = vrsqrt.pop %v1917
  %v1919 = vmul.f32 %v20, %v1918
  %v1920 = vlaneseq
  %v1921 = vshrl.u32 %v1920, 7
  %v1922 = vsub.s32 1, %v1921
  %v1923 = vrot.slane %v1919, %v1922
  %v1924 = vmul.f32 %v1841, %v1923
  %v1925 = vmul.f32 %v1842, %v1923
  %v1926 = vmul.f32 %v1843, %v1923
  %v1927 = vmul.f32 %v1844, %v1923
  %v1928 = vmul.f32 %v1845, %v1923
  %v1929 = vmul.f32 %v1846, %v1923
  %v1930 = vmul.f32 %v1847, %v1923
  %v1931 = vmul.f32 %v1848, %v1923
  %v1932 = vlaneseq
  %v1933 = vshrl.u32 %v1932, 7
  %v1934 = vsub.s32 1, %v1933
  %v1935 = vrot.slane %v20, %v1934
  %1937 = vrot.lane.b32.xlu0 %v1935, 64
  %v1938 = vpop.permute.xlu0 %1937
  %v1940 = vadd.f32 %v1924, %v1938
  %v1941 = vadd.f32 %v1925, %v1938
  %v1942 = vadd.f32 %v1926, %v1938
  %v1943 = vadd.f32 %v1927, %v1938
  %v1944 = vadd.f32 %v1928, %v1938
  %v1945 = vadd.f32 %v1929, %v1938
  %v1946 = vadd.f32 %v1930, %v1938
  %v1947 = vadd.f32 %v1931, %v1938
  %v1948 = vmax.f32 %v1940, 0.0
  %v1949 = vmax.f32 %v1941, 0.0
  %v1950 = vmax.f32 %v1942, 0.0
  %v1951 = vmax.f32 %v1943, 0.0
  %v1952 = vmax.f32 %v1944, 0.0
  %v1953 = vmax.f32 %v1945, 0.0
  %v1954 = vmax.f32 %v1946, 0.0
  %v1955 = vmax.f32 %v1947, 0.0
  %v1956 = vmul.f32 %v1849, %v1923
  %v1957 = vmul.f32 %v1850, %v1923
  %v1958 = vmul.f32 %v1851, %v1923
  %v1959 = vmul.f32 %v1852, %v1923
  %v1960 = vmul.f32 %v1853, %v1923
  %v1961 = vmul.f32 %v1854, %v1923
  %v1962 = vmul.f32 %v1855, %v1923
  %v1963 = vmul.f32 %v1856, %v1923
  %v1964 = vadd.f32 %v1956, %v1938
  %v1965 = vadd.f32 %v1957, %v1938
  %v1966 = vadd.f32 %v1958, %v1938
  %v1967 = vadd.f32 %v1959, %v1938
  %v1968 = vadd.f32 %v1960, %v1938
  %v1969 = vadd.f32 %v1961, %v1938
  %v1970 = vadd.f32 %v1962, %v1938
  %v1971 = vadd.f32 %v1963, %v1938
  %v1972 = vmax.f32 %v1964, 0.0
  %v1973 = vmax.f32 %v1965, 0.0
  %v1974 = vmax.f32 %v1966, 0.0
  %v1975 = vmax.f32 %v1967, 0.0
  %v1976 = vmax.f32 %v1968, 0.0
  %v1977 = vmax.f32 %v1969, 0.0
  %v1978 = vmax.f32 %v1970, 0.0
  %v1979 = vmax.f32 %v1971, 0.0
  %v1980 = vsel %vm760, 1.0, 0.0
  %v1981 = vsel %vm762, 1.0, 0.0
  %v1982 = vsel %vm764, 1.0, 0.0
  %v1983 = vsel %vm766, 1.0, 0.0
  %v1992 = vrot.slane %v1948, 1
  %v1993 = vrot.slane %v1949, 1
  %v1994 = vsel %vm1031, %v1992, %v1993
  %v1995 = vrot.slane %v1950, 1
  %v1996 = vsel %vm1031, %v1993, %v1995
  %v1997 = vrot.slane %v1951, 1
  %v1998 = vsel %vm1031, %v1995, %v1997
  %v1999 = vrot.slane %v1952, 1
  %v2000 = vsel %vm1031, %v1997, %v1999
  %v2001 = vrot.slane %v1953, 1
  %v2002 = vsel %vm1031, %v1999, %v2001
  %v2003 = vrot.slane %v1954, 1
  %v2004 = vsel %vm1031, %v2001, %v2003
  %v2005 = vrot.slane %v1955, 1
  %v2006 = vsel %vm1031, %v2003, %v2005
  %v2015 = vmax.f32 %v1948, %v1994
  %v2016 = vmax.f32 %v1949, %v1996
  %v2017 = vmax.f32 %v1950, %v1998
  %v2018 = vmax.f32 %v1951, %v2000
  %v2019 = vmax.f32 %v1952, %v2002
  %v2020 = vmax.f32 %v1953, %v2004
  %v2021 = vmax.f32 %v1954, %v2006
  %v2022 = vmax.f32 %v1955, %v2005
  %vm2023 = vcmask 465920
  %v2025 = vsel %vm2023, %v1980, 0
  %v2028 = vsel %vm2023, %v1981, 0
  %v2031 = vsel %vm2023, %v1982, 0
  %v2034 = vsel %vm2023, %v1983, 0
  %v2037 = vsel %vm1201, %v2022, 0
  %2039 = vmatprep.subr.mxu0 0.0
  %2040 = vmatpush1.msra.mxu0 %v2015
  %2041 = vmatprep.subr.mxu0 0.0
  %2042 = vmatpush1.msra.mxu0 %v2016
  %2043 = vmatprep.subr.mxu0 0.0
  %2044 = vmatpush1.msra.mxu0 %v2017
  %2045 = vmatprep.subr.mxu0 0.0
  %2046 = vmatpush1.msra.mxu0 %v2018
  %2047 = vmatprep.subr.mxu0 0.0
  %2048 = vmatpush1.msra.mxu0 %v2019
  %2049 = vmatprep.subr.mxu0 0.0
  %2050 = vmatpush1.msra.mxu0 %v2020
  %2051 = vmatprep.subr.mxu0 0.0
  %2052 = vmatpush1.msra.mxu0 %v2021
  %2053 = vmatprep.subr.mxu0 0.0
  %2054 = vmatpush1.msra.mxu0 %v2037
  %2055 = vmatprep.subr.mxu0 0.0
  %2056 = vmatpush1.msra.mxu0 0.0
  %2057 = vmatprep.subr.mxu0 0.0
  %2058 = vmatpush1.msra.mxu0 0.0
  %2059 = vmatprep.subr.mxu0 0.0
  %2060 = vmatpush1.msra.mxu0 0.0
  %2061 = vmatprep.subr.mxu0 0.0
  %2062 = vmatpush1.msra.mxu0 0.0
  %2063 = vmatprep.subr.mxu0 0.0
  %2064 = vmatpush1.msra.mxu0 0.0
  %2065 = vmatprep.subr.mxu0 0.0
  %2066 = vmatpush1.msra.mxu0 0.0
  %2067 = vmatprep.subr.mxu0 0.0
  %2068 = vmatpush1.msra.mxu0 0.0
  %2069 = vmatprep.subr.mxu0 0.0
  %2070 = vmatpush1.msra.mxu0 0.0
  %2071 = vmatprep.subr.mxu0 0.0
  %2072 = vmatpush1.msra.mxu0 0.0
  %2073 = vmatprep.subr.mxu0 0.0
  %2074 = vmatpush1.msra.mxu0 0.0
  %2075 = vmatprep.subr.mxu0 0.0
  %2076 = vmatpush1.msra.mxu0 0.0
  %2077 = vmatprep.subr.mxu0 0.0
  %2078 = vmatpush1.msra.mxu0 0.0
  %2079 = vmatprep.subr.mxu0 0.0
  %2080 = vmatpush1.msra.mxu0 0.0
  %2081 = vmatprep.subr.mxu0 0.0
  %2082 = vmatpush1.msra.mxu0 0.0
  %2083 = vmatprep.subr.mxu0 0.0
  %2084 = vmatpush1.msra.mxu0 0.0
  %2085 = vmatprep.subr.mxu0 0.0
  %2086 = vmatpush1.msra.mxu0 0.0
  %2087 = vmatprep.subr.mxu0 0.0
  %2088 = vmatpush1.msra.mxu0 0.0
  %2089 = vmatprep.subr.mxu0 0.0
  %2090 = vmatpush1.msra.mxu0 0.0
  %2091 = vmatprep.subr.mxu0 0.0
  %2092 = vmatpush1.msra.mxu0 0.0
  %2093 = vmatprep.subr.mxu0 0.0
  %2094 = vmatpush1.msra.mxu0 0.0
  %2095 = vmatprep.subr.mxu0 0.0
  %2096 = vmatpush1.msra.mxu0 0.0
  %2097 = vmatprep.subr.mxu0 0.0
  %2098 = vmatpush1.msra.mxu0 0.0
  %2099 = vmatprep.subr.mxu0 0.0
  %2100 = vmatpush1.msra.mxu0 0.0
  %2101 = vmatprep.subr.mxu0 0.0
  %2102 = vmatpush1.msra.mxu0 0.0
  %2103 = vmatprep.mubr.f32.mxu0 0.0
  %2104 = vmatmul.mubr.f32.gmra.mrb[0].mxu0 %v2025
  %v2105 = vpop.f32.mrb[0].mxu0
  %v2106 = vadd.f32 0.0, %v2105
  %v2107 = vpop.f32.mrb[0].mxu0
  %2108 = vmatprep.mubr.f32.mxu0 0.0
  %2109 = vmatmul.mubr.f32.gmra.mrb[0].mxu0 %v2028
  %v2110 = vpop.f32.mrb[0].mxu0
  %v2111 = vadd.f32 0.0, %v2110
  %v2112 = vpop.f32.mrb[0].mxu0
  %2113 = vmatprep.mubr.f32.mxu0 0.0
  %2114 = vmatmul.mubr.f32.gmra.mrb[0].mxu0 %v2031
  %v2115 = vpop.f32.mrb[0].mxu0
  %v2116 = vadd.f32 0.0, %v2115
  %v2117 = vpop.f32.mrb[0].mxu0
  %2118 = vmatprep.mubr.f32.mxu0 0.0
  %2119 = vmatmul.mubr.f32.gmra.mrb[0].mxu0 %v2034
  %v2120 = vpop.f32.mrb[0].mxu0
  %v2121 = vadd.f32 0.0, %v2120
  %v2122 = vpop.f32.mrb[0].mxu0
  %2123 = vdwg.mxu0
  %v2132 = vrot.slane %v1972, 1
  %v2133 = vrot.slane %v1973, 1
  %v2134 = vsel %vm1031, %v2132, %v2133
  %v2135 = vrot.slane %v1974, 1
  %v2136 = vsel %vm1031, %v2133, %v2135
  %v2137 = vrot.slane %v1975, 1
  %v2138 = vsel %vm1031, %v2135, %v2137
  %v2139 = vrot.slane %v1976, 1
  %v2140 = vsel %vm1031, %v2137, %v2139
  %v2141 = vrot.slane %v1977, 1
  %v2142 = vsel %vm1031, %v2139, %v2141
  %v2143 = vrot.slane %v1978, 1
  %v2144 = vsel %vm1031, %v2141, %v2143
  %v2145 = vrot.slane %v1979, 1
  %v2146 = vsel %vm1031, %v2143, %v2145
  %v2155 = vmax.f32 %v1972, %v2134
  %v2156 = vmax.f32 %v1973, %v2136
  %v2157 = vmax.f32 %v1974, %v2138
  %v2158 = vmax.f32 %v1975, %v2140
  %v2159 = vmax.f32 %v1976, %v2142
  %v2160 = vmax.f32 %v1977, %v2144
  %v2161 = vmax.f32 %v1978, %v2146
  %v2162 = vmax.f32 %v1979, %v2145
  %v2164 = vsel %vm1201, %v2162, 0
  %2166 = vmatprep.subr.mxu0 0.0
  %2167 = vmatpush1.msra.mxu0 %v2155
  %2168 = vmatprep.subr.mxu0 0.0
  %2169 = vmatpush1.msra.mxu0 %v2156
  %2170 = vmatprep.subr.mxu0 0.0
  %2171 = vmatpush1.msra.mxu0 %v2157
  %2172 = vmatprep.subr.mxu0 0.0
  %2173 = vmatpush1.msra.mxu0 %v2158
  %2174 = vmatprep.subr.mxu0 0.0
  %2175 = vmatpush1.msra.mxu0 %v2159
  %2176 = vmatprep.subr.mxu0 0.0
  %2177 = vmatpush1.msra.mxu0 %v2160
  %2178 = vmatprep.subr.mxu0 0.0
  %2179 = vmatpush1.msra.mxu0 %v2161
  %2180 = vmatprep.subr.mxu0 0.0
  %2181 = vmatpush1.msra.mxu0 %v2164
  %2182 = vmatprep.subr.mxu0 0.0
  %2183 = vmatpush1.msra.mxu0 0.0
  %2184 = vmatprep.subr.mxu0 0.0
  %2185 = vmatpush1.msra.mxu0 0.0
  %2186 = vmatprep.subr.mxu0 0.0
  %2187 = vmatpush1.msra.mxu0 0.0
  %2188 = vmatprep.subr.mxu0 0.0
  %2189 = vmatpush1.msra.mxu0 0.0
  %2190 = vmatprep.subr.mxu0 0.0
  %2191 = vmatpush1.msra.mxu0 0.0
  %2192 = vmatprep.subr.mxu0 0.0
  %2193 = vmatpush1.msra.mxu0 0.0
  %2194 = vmatprep.subr.mxu0 0.0
  %2195 = vmatpush1.msra.mxu0 0.0
  %2196 = vmatprep.subr.mxu0 0.0
  %2197 = vmatpush1.msra.mxu0 0.0
  %2198 = vmatprep.subr.mxu0 0.0
  %2199 = vmatpush1.msra.mxu0 0.0
  %2200 = vmatprep.subr.mxu0 0.0
  %2201 = vmatpush1.msra.mxu0 0.0
  %2202 = vmatprep.subr.mxu0 0.0
  %2203 = vmatpush1.msra.mxu0 0.0
  %2204 = vmatprep.subr.mxu0 0.0
  %2205 = vmatpush1.msra.mxu0 0.0
  %2206 = vmatprep.subr.mxu0 0.0
  %2207 = vmatpush1.msra.mxu0 0.0
  %2208 = vmatprep.subr.mxu0 0.0
  %2209 = vmatpush1.msra.mxu0 0.0
  %2210 = vmatprep.subr.mxu0 0.0
  %2211 = vmatpush1.msra.mxu0 0.0
  %2212 = vmatprep.subr.mxu0 0.0
  %2213 = vmatpush1.msra.mxu0 0.0
  %2214 = vmatprep.subr.mxu0 0.0
  %2215 = vmatpush1.msra.mxu0 0.0
  %2216 = vmatprep.subr.mxu0 0.0
  %2217 = vmatpush1.msra.mxu0 0.0
  %2218 = vmatprep.subr.mxu0 0.0
  %2219 = vmatpush1.msra.mxu0 0.0
  %2220 = vmatprep.subr.mxu0 0.0
  %2221 = vmatpush1.msra.mxu0 0.0
  %2222 = vmatprep.subr.mxu0 0.0
  %2223 = vmatpush1.msra.mxu0 0.0
  %2224 = vmatprep.subr.mxu0 0.0
  %2225 = vmatpush1.msra.mxu0 0.0
  %2226 = vmatprep.subr.mxu0 0.0
  %2227 = vmatpush1.msra.mxu0 0.0
  %2228 = vmatprep.subr.mxu0 0.0
  %2229 = vmatpush1.msra.mxu0 0.0
  %2230 = vmatprep.mubr.f32.mxu0 0.0
  %2231 = vmatmul.mubr.f32.gmra.mrb[0].mxu0 %v2025
  %v2232 = vpop.f32.mrb[0].mxu0
  %v2233 = vadd.f32 0.0, %v2232
  %v2234 = vpop.f32.mrb[0].mxu0
  %2235 = vmatprep.mubr.f32.mxu0 0.0
  %2236 = vmatmul.mubr.f32.gmra.mrb[0].mxu0 %v2028
  %v2237 = vpop.f32.mrb[0].mxu0
  %v2238 = vadd.f32 0.0, %v2237
  %v2239 = vpop.f32.mrb[0].mxu0
  %2240 = vmatprep.mubr.f32.mxu0 0.0
  %2241 = vmatmul.mubr.f32.gmra.mrb[0].mxu0 %v2031
  %v2242 = vpop.f32.mrb[0].mxu0
  %v2243 = vadd.f32 0.0, %v2242
  %v2244 = vpop.f32.mrb[0].mxu0
  %2245 = vmatprep.mubr.f32.mxu0 0.0
  %2246 = vmatmul.mubr.f32.gmra.mrb[0].mxu0 %v2034
  %v2247 = vpop.f32.mrb[0].mxu0
  %v2248 = vadd.f32 0.0, %v2247
  %v2249 = vpop.f32.mrb[0].mxu0
  %2250 = vdwg.mxu0
  %s2251 = scalar_lea.vmem %s1, 384
  %v2252 = vld [vmem:[%s2251] sm:$0xff]
  %v2253 = vld [vmem:[%s2251 + $0x8] sm:$0xff]
  %v2254 = vld [vmem:[%s2251 + $0x10] sm:$0xff]
  %v2255 = vld [vmem:[%s2251 + $0x18] sm:$0xff]
  %v2256 = vld [vmem:[%s2251 + $0x20] sm:$0xff]
  %v2257 = vld [vmem:[%s2251 + $0x28] sm:$0xff]
  %v2258 = vld [vmem:[%s2251 + $0x30] sm:$0xff]
  %v2259 = vld [vmem:[%s2251 + $0x38] sm:$0xff]
  %v2260 = vld [vmem:[%s2251 + $0x40] sm:$0xff]
  %v2261 = vld [vmem:[%s2251 + $0x48] sm:$0xff]
  %v2262 = vld [vmem:[%s2251 + $0x50] sm:$0xff]
  %v2263 = vld [vmem:[%s2251 + $0x58] sm:$0xff]
  %v2264 = vld [vmem:[%s2251 + $0x60] sm:$0xff]
  %v2265 = vld [vmem:[%s2251 + $0x68] sm:$0xff]
  %v2266 = vld [vmem:[%s2251 + $0x70] sm:$0xff]
  %v2267 = vld [vmem:[%s2251 + $0x78] sm:$0xff]
  %v2268 = vld [vmem:[%s2251 + $0x80] sm:$0xff]
  %v2269 = vld [vmem:[%s2251 + $0x88] sm:$0xff]
  %v2270 = vld [vmem:[%s2251 + $0x90] sm:$0xff]
  %v2271 = vld [vmem:[%s2251 + $0x98] sm:$0xff]
  %v2272 = vld [vmem:[%s2251 + $0xa0] sm:$0xff]
  %v2273 = vld [vmem:[%s2251 + $0xa8] sm:$0xff]
  %v2274 = vld [vmem:[%s2251 + $0xb0] sm:$0xff]
  %v2275 = vld [vmem:[%s2251 + $0xb8] sm:$0xff]
  %v2280 = vrot.slane %v2106, 1
  %v2281 = vrot.slane %v2111, 1
  %v2282 = vsel %vm1031, %v2280, %v2281
  %v2283 = vrot.slane %v2116, 1
  %v2284 = vsel %vm1031, %v2281, %v2283
  %v2285 = vrot.slane %v2121, 1
  %v2286 = vsel %vm1031, %v2283, %v2285
  %2287 = vrot.lane.b32.xlu0 %v2282, 64
  %v2288 = vpop.permute.xlu0 %2287
  %2289 = vrot.lane.b32.xlu0 %v2284, 64
  %v2290 = vpop.permute.xlu0 %2289
  %2291 = vrot.lane.b32.xlu0 %v2286, 64
  %v2292 = vpop.permute.xlu0 %2291
  %2293 = vrot.lane.b32.xlu0 %v2285, 64
  %v2294 = vpop.permute.xlu0 %2293
  %v2299 = vrot.slane %v2106, 2
  %v2300 = vrot.slane %v2111, 2
  %v2301 = vsel %vm1417, %v2299, %v2300
  %v2302 = vrot.slane %v2116, 2
  %v2303 = vsel %vm1417, %v2300, %v2302
  %v2304 = vrot.slane %v2121, 2
  %v2305 = vsel %vm1417, %v2302, %v2304
  %v2306 = vsel %vm60, %v2106, %v2288
  %v2307 = vsel %vm60, %v2111, %v2290
  %v2308 = vsel %vm60, %v2116, %v2292
  %v2309 = vsel %vm60, %v2121, %v2294
  %v2310 = vsel %vm60, %v2301, 0
  %v2312 = vsel %vm60, %v2303, 0
  %v2314 = vsel %vm60, %v2305, 0
  %v2316 = vsel %vm60, %v2304, 0
  %2318 = vmatprep.subr.mxu0 0.0
  %2319 = vmatpush1.msra.mxu0 %v2252
  %2320 = vmatprep.subr.mxu0 0.0
  %2321 = vmatpush1.msra.mxu0 %v2253
  %2322 = vmatprep.subr.mxu0 0.0
  %2323 = vmatpush1.msra.mxu0 %v2254
  %2324 = vmatprep.subr.mxu0 0.0
  %2325 = vmatpush1.msra.mxu0 %v2255
  %2326 = vmatprep.subr.mxu0 0.0
  %2327 = vmatpush1.msra.mxu0 %v2256
  %2328 = vmatprep.subr.mxu0 0.0
  %2329 = vmatpush1.msra.mxu0 %v2257
  %2330 = vmatprep.subr.mxu0 0.0
  %2331 = vmatpush1.msra.mxu0 %v2258
  %2332 = vmatprep.subr.mxu0 0.0
  %2333 = vmatpush1.msra.mxu0 %v2259
  %2334 = vmatprep.subr.mxu0 0.0
  %2335 = vmatpush1.msra.mxu0 %v2260
  %2336 = vmatprep.subr.mxu0 0.0
  %2337 = vmatpush1.msra.mxu0 %v2261
  %2338 = vmatprep.subr.mxu0 0.0
  %2339 = vmatpush1.msra.mxu0 %v2262
  %2340 = vmatprep.subr.mxu0 0.0
  %2341 = vmatpush1.msra.mxu0 %v2263
  %2342 = vmatprep.subr.mxu0 0.0
  %2343 = vmatpush1.msra.mxu0 %v2264
  %2344 = vmatprep.subr.mxu0 0.0
  %2345 = vmatpush1.msra.mxu0 %v2265
  %2346 = vmatprep.subr.mxu0 0.0
  %2347 = vmatpush1.msra.mxu0 %v2266
  %2348 = vmatprep.subr.mxu0 0.0
  %2349 = vmatpush1.msra.mxu0 %v2267
  %2350 = vmatprep.subr.mxu0 0.0
  %2351 = vmatpush1.msra.mxu0 %v2268
  %2352 = vmatprep.subr.mxu0 0.0
  %2353 = vmatpush1.msra.mxu0 %v2269
  %2354 = vmatprep.subr.mxu0 0.0
  %2355 = vmatpush1.msra.mxu0 %v2270
  %2356 = vmatprep.subr.mxu0 0.0
  %2357 = vmatpush1.msra.mxu0 %v2271
  %2358 = vmatprep.subr.mxu0 0.0
  %2359 = vmatpush1.msra.mxu0 %v2272
  %2360 = vmatprep.subr.mxu0 0.0
  %2361 = vmatpush1.msra.mxu0 %v2273
  %2362 = vmatprep.subr.mxu0 0.0
  %2363 = vmatpush1.msra.mxu0 %v2274
  %2364 = vmatprep.subr.mxu0 0.0
  %2365 = vmatpush1.msra.mxu0 %v2275
  %2366 = vmatprep.subr.mxu0 0.0
  %2367 = vmatpush1.msra.mxu0 0.0
  %2368 = vmatprep.subr.mxu0 0.0
  %2369 = vmatpush1.msra.mxu0 0.0
  %2370 = vmatprep.subr.mxu0 0.0
  %2371 = vmatpush1.msra.mxu0 0.0
  %2372 = vmatprep.subr.mxu0 0.0
  %2373 = vmatpush1.msra.mxu0 0.0
  %2374 = vmatprep.subr.mxu0 0.0
  %2375 = vmatpush1.msra.mxu0 0.0
  %2376 = vmatprep.subr.mxu0 0.0
  %2377 = vmatpush1.msra.mxu0 0.0
  %2378 = vmatprep.subr.mxu0 0.0
  %2379 = vmatpush1.msra.mxu0 0.0
  %2380 = vmatprep.subr.mxu0 0.0
  %2381 = vmatpush1.msra.mxu0 0.0
  %2382 = vmatprep.mubr.f32.mxu0 %v2310
  %2383 = vmatmul.mubr.f32.gmra.mrb[0].mxu0 %v2306
  %v2384 = vpop.f32.mrb[0].mxu0
  %v2385 = vadd.f32 0.0, %v2384
  %v2386 = vpop.f32.mrb[0].mxu0
  %2387 = vmatprep.mubr.f32.mxu0 %v2312
  %2388 = vmatmul.mubr.f32.gmra.mrb[0].mxu0 %v2307
  %v2389 = vpop.f32.mrb[0].mxu0
  %v2390 = vadd.f32 0.0, %v2389
  %v2391 = vpop.f32.mrb[0].mxu0
  %2392 = vmatprep.mubr.f32.mxu0 %v2314
  %2393 = vmatmul.mubr.f32.gmra.mrb[0].mxu0 %v2308
  %v2394 = vpop.f32.mrb[0].mxu0
  %v2395 = vadd.f32 0.0, %v2394
  %v2396 = vpop.f32.mrb[0].mxu0
  %2397 = vmatprep.mubr.f32.mxu0 %v2316
  %2398 = vmatmul.mubr.f32.gmra.mrb[0].mxu0 %v2309
  %v2399 = vpop.f32.mrb[0].mxu0
  %v2400 = vadd.f32 0.0, %v2399
  %v2401 = vpop.f32.mrb[0].mxu0
  %2402 = vdwg.mxu0
  %v2407 = vrot.slane %v2233, 1
  %v2408 = vrot.slane %v2238, 1
  %v2409 = vsel %vm1031, %v2407, %v2408
  %v2410 = vrot.slane %v2243, 1
  %v2411 = vsel %vm1031, %v2408, %v2410
  %v2412 = vrot.slane %v2248, 1
  %v2413 = vsel %vm1031, %v2410, %v2412
  %2414 = vrot.lane.b32.xlu0 %v2409, 64
  %v2415 = vpop.permute.xlu0 %2414
  %2416 = vrot.lane.b32.xlu0 %v2411, 64
  %v2417 = vpop.permute.xlu0 %2416
  %2418 = vrot.lane.b32.xlu0 %v2413, 64
  %v2419 = vpop.permute.xlu0 %2418
  %2420 = vrot.lane.b32.xlu0 %v2412, 64
  %v2421 = vpop.permute.xlu0 %2420
  %v2426 = vrot.slane %v2233, 2
  %v2427 = vrot.slane %v2238, 2
  %v2428 = vsel %vm1417, %v2426, %v2427
  %v2429 = vrot.slane %v2243, 2
  %v2430 = vsel %vm1417, %v2427, %v2429
  %v2431 = vrot.slane %v2248, 2
  %v2432 = vsel %vm1417, %v2429, %v2431
  %v2433 = vsel %vm60, %v2233, %v2415
  %v2434 = vsel %vm60, %v2238, %v2417
  %v2435 = vsel %vm60, %v2243, %v2419
  %v2436 = vsel %vm60, %v2248, %v2421
  %v2437 = vsel %vm60, %v2428, 0
  %v2439 = vsel %vm60, %v2430, 0
  %v2441 = vsel %vm60, %v2432, 0
  %v2443 = vsel %vm60, %v2431, 0
  %2445 = vmatprep.subr.mxu0 0.0
  %2446 = vmatpush1.msra.mxu0 %v2252
  %2447 = vmatprep.subr.mxu0 0.0
  %2448 = vmatpush1.msra.mxu0 %v2253
  %2449 = vmatprep.subr.mxu0 0.0
  %2450 = vmatpush1.msra.mxu0 %v2254
  %2451 = vmatprep.subr.mxu0 0.0
  %2452 = vmatpush1.msra.mxu0 %v2255
  %2453 = vmatprep.subr.mxu0 0.0
  %2454 = vmatpush1.msra.mxu0 %v2256
  %2455 = vmatprep.subr.mxu0 0.0
  %2456 = vmatpush1.msra.mxu0 %v2257
  %2457 = vmatprep.subr.mxu0 0.0
  %2458 = vmatpush1.msra.mxu0 %v2258
  %2459 = vmatprep.subr.mxu0 0.0
  %2460 = vmatpush1.msra.mxu0 %v2259
  %2461 = vmatprep.subr.mxu0 0.0
  %2462 = vmatpush1.msra.mxu0 %v2260
  %2463 = vmatprep.subr.mxu0 0.0
  %2464 = vmatpush1.msra.mxu0 %v2261
  %2465 = vmatprep.subr.mxu0 0.0
  %2466 = vmatpush1.msra.mxu0 %v2262
  %2467 = vmatprep.subr.mxu0 0.0
  %2468 = vmatpush1.msra.mxu0 %v2263
  %2469 = vmatprep.subr.mxu0 0.0
  %2470 = vmatpush1.msra.mxu0 %v2264
  %2471 = vmatprep.subr.mxu0 0.0
  %2472 = vmatpush1.msra.mxu0 %v2265
  %2473 = vmatprep.subr.mxu0 0.0
  %2474 = vmatpush1.msra.mxu0 %v2266
  %2475 = vmatprep.subr.mxu0 0.0
  %2476 = vmatpush1.msra.mxu0 %v2267
  %2477 = vmatprep.subr.mxu0 0.0
  %2478 = vmatpush1.msra.mxu0 %v2268
  %2479 = vmatprep.subr.mxu0 0.0
  %2480 = vmatpush1.msra.mxu0 %v2269
  %2481 = vmatprep.subr.mxu0 0.0
  %2482 = vmatpush1.msra.mxu0 %v2270
  %2483 = vmatprep.subr.mxu0 0.0
  %2484 = vmatpush1.msra.mxu0 %v2271
  %2485 = vmatprep.subr.mxu0 0.0
  %2486 = vmatpush1.msra.mxu0 %v2272
  %2487 = vmatprep.subr.mxu0 0.0
  %2488 = vmatpush1.msra.mxu0 %v2273
  %2489 = vmatprep.subr.mxu0 0.0
  %2490 = vmatpush1.msra.mxu0 %v2274
  %2491 = vmatprep.subr.mxu0 0.0
  %2492 = vmatpush1.msra.mxu0 %v2275
  %2493 = vmatprep.subr.mxu0 0.0
  %2494 = vmatpush1.msra.mxu0 0.0
  %2495 = vmatprep.subr.mxu0 0.0
  %2496 = vmatpush1.msra.mxu0 0.0
  %2497 = vmatprep.subr.mxu0 0.0
  %2498 = vmatpush1.msra.mxu0 0.0
  %2499 = vmatprep.subr.mxu0 0.0
  %2500 = vmatpush1.msra.mxu0 0.0
  %2501 = vmatprep.subr.mxu0 0.0
  %2502 = vmatpush1.msra.mxu0 0.0
  %2503 = vmatprep.subr.mxu0 0.0
  %2504 = vmatpush1.msra.mxu0 0.0
  %2505 = vmatprep.subr.mxu0 0.0
  %2506 = vmatpush1.msra.mxu0 0.0
  %2507 = vmatprep.subr.mxu0 0.0
  %2508 = vmatpush1.msra.mxu0 0.0
  %2509 = vmatprep.mubr.f32.mxu0 %v2437
  %2510 = vmatmul.mubr.f32.gmra.mrb[0].mxu0 %v2433
  %v2511 = vpop.f32.mrb[0].mxu0
  %v2512 = vadd.f32 0.0, %v2511
  %v2513 = vpop.f32.mrb[0].mxu0
  %2514 = vmatprep.mubr.f32.mxu0 %v2439
  %2515 = vmatmul.mubr.f32.gmra.mrb[0].mxu0 %v2434
  %v2516 = vpop.f32.mrb[0].mxu0
  %v2517 = vadd.f32 0.0, %v2516
  %v2518 = vpop.f32.mrb[0].mxu0
  %2519 = vmatprep.mubr.f32.mxu0 %v2441
  %2520 = vmatmul.mubr.f32.gmra.mrb[0].mxu0 %v2435
  %v2521 = vpop.f32.mrb[0].mxu0
  %v2522 = vadd.f32 0.0, %v2521
  %v2523 = vpop.f32.mrb[0].mxu0
  %2524 = vmatprep.mubr.f32.mxu0 %v2443
  %2525 = vmatmul.mubr.f32.gmra.mrb[0].mxu0 %v2436
  %v2526 = vpop.f32.mrb[0].mxu0
  %v2527 = vadd.f32 0.0, %v2526
  %v2528 = vpop.f32.mrb[0].mxu0
  %2529 = vdwg.mxu0
  %v2530 = vsel %vm60, %v2385, 0.0
  %v2531 = vsel %vm60, %v2390, 0.0
  %v2532 = vadd.f32 %v2530, %v2531
  %v2533 = vsel %vm60, %v2395, 0.0
  %v2534 = vadd.f32 %v2532, %v2533
  %vm2535 = vcmask 518144
  %v2536 = vsel %vm2535, %v2400, 0.0
  %v2537 = vadd.f32 %v2534, %v2536
  %v2538 = vrot.slane %v2537, 4
  %v2539 = vadd.f32 %v2537, %v2538
  %v2540 = vrot.slane %v2539, 2
  %v2541 = vadd.f32 %v2539, %v2540
  %v2542 = vrot.slane %v2541, 1
  %v2543 = vadd.f32 %v2541, %v2542
  %v2544 = vsel %vm60, %v2512, 0.0
  %v2545 = vsel %vm60, %v2517, 0.0
  %v2546 = vadd.f32 %v2544, %v2545
  %v2547 = vsel %vm60, %v2522, 0.0
  %v2548 = vadd.f32 %v2546, %v2547
  %v2549 = vsel %vm2535, %v2527, 0.0
  %v2550 = vadd.f32 %v2548, %v2549
  %v2551 = vrot.slane %v2550, 4
  %v2552 = vadd.f32 %v2550, %v2551
  %v2553 = vrot.slane %v2552, 2
  %v2554 = vadd.f32 %v2552, %v2553
  %v2555 = vrot.slane %v2554, 1
  %v2556 = vadd.f32 %v2554, %v2555
  %v2557 = vadd.f32 %v2543, %v2556
  %v2558 = vmul.f32 %v2557, 0.018518519
  %v2559 = vsub.f32 %v2385, %v2558
  %v2560 = vsub.f32 %v2390, %v2558
  %v2561 = vsub.f32 %v2395, %v2558
  %v2562 = vsub.f32 %v2400, %v2558
  %v2563 = vsub.f32 %v2512, %v2558
  %v2564 = vsub.f32 %v2517, %v2558
  %v2565 = vsub.f32 %v2522, %v2558
  %v2566 = vsub.f32 %v2527, %v2558
  %v2567 = vmul.f32 %v2559, %v2559
  %v2568 = vmul.f32 %v2560, %v2560
  %v2569 = vmul.f32 %v2561, %v2561
  %v2570 = vmul.f32 %v2562, %v2562
  %v2571 = vsel %vm60, %v2567, 0.0
  %v2572 = vsel %vm60, %v2568, 0.0
  %v2573 = vadd.f32 %v2571, %v2572
  %v2574 = vsel %vm60, %v2569, 0.0
  %v2575 = vadd.f32 %v2573, %v2574
  %v2576 = vsel %vm2535, %v2570, 0.0
  %v2577 = vadd.f32 %v2575, %v2576
  %v2578 = vrot.slane %v2577, 4
  %v2579 = vadd.f32 %v2577, %v2578
  %v2580 = vrot.slane %v2579, 2
  %v2581 = vadd.f32 %v2579, %v2580
  %v2582 = vrot.slane %v2581, 1
  %v2583 = vadd.f32 %v2581, %v2582
  %v2584 = vmul.f32 %v2563, %v2563
  %v2585 = vmul.f32 %v2564, %v2564
  %v2586 = vmul.f32 %v2565, %v2565
  %v2587 = vmul.f32 %v2566, %v2566
  %v2588 = vsel %vm60, %v2584, 0.0
  %v2589 = vsel %vm60, %v2585, 0.0
  %v2590 = vadd.f32 %v2588, %v2589
  %v2591 = vsel %vm60, %v2586, 0.0
  %v2592 = vadd.f32 %v2590, %v2591
  %v2593 = vsel %vm2535, %v2587, 0.0
  %v2594 = vadd.f32 %v2592, %v2593
  %v2595 = vrot.slane %v2594, 4
  %v2596 = vadd.f32 %v2594, %v2595
  %v2597 = vrot.slane %v2596, 2
  %v2598 = vadd.f32 %v2596, %v2597
  %v2599 = vrot.slane %v2598, 1
  %v2600 = vadd.f32 %v2598, %v2599
  %v2601 = vadd.f32 %v2583, %v2600
  %v2602 = vmul.f32 %v2601, 0.018518519
  %v2603 = vadd.f32 %v2602, 1e-05
  %v2604 = vrsqrt.pop %v2603
  %v2605 = vmul.f32 %v20, %v2604
  %v2606 = vlaneseq
  %v2607 = vshrl.u32 %v2606, 7
  %v2608 = vsub.s32 2, %v2607
  %v2609 = vrot.slane %v2605, %v2608
  %v2610 = vmul.f32 %v2559, %v2609
  %v2611 = vmul.f32 %v2560, %v2609
  %v2612 = vmul.f32 %v2561, %v2609
  %v2613 = vmul.f32 %v2562, %v2609
  %v2614 = vlaneseq
  %v2615 = vshrl.u32 %v2614, 7
  %v2616 = vsub.s32 2, %v2615
  %v2617 = vrot.slane %v20, %v2616
  %2619 = vrot.lane.b32.xlu0 %v2617, 64
  %v2620 = vpop.permute.xlu0 %2619
  %v2622 = vadd.f32 %v2610, %v2620
  %v2623 = vadd.f32 %v2611, %v2620
  %v2624 = vadd.f32 %v2612, %v2620
  %v2625 = vadd.f32 %v2613, %v2620
  %v2626 = vmax.f32 %v2622, 0.0
  %v2627 = vmax.f32 %v2623, 0.0
  %v2628 = vmax.f32 %v2624, 0.0
  %v2629 = vmax.f32 %v2625, 0.0
  %v2630 = vmul.f32 %v2563, %v2609
  %v2631 = vmul.f32 %v2564, %v2609
  %v2632 = vmul.f32 %v2565, %v2609
  %v2633 = vmul.f32 %v2566, %v2609
  %v2634 = vadd.f32 %v2630, %v2620
  %v2635 = vadd.f32 %v2631, %v2620
  %v2636 = vadd.f32 %v2632, %v2620
  %v2637 = vadd.f32 %v2633, %v2620
  %v2638 = vmax.f32 %v2634, 0.0
  %v2639 = vmax.f32 %v2635, 0.0
  %v2640 = vmax.f32 %v2636, 0.0
  %v2641 = vmax.f32 %v2637, 0.0
  %v2646 = vrot.slane %v2626, 1
  %v2647 = vrot.slane %v2627, 1
  %v2648 = vsel %vm1031, %v2646, %v2647
  %v2649 = vrot.slane %v2628, 1
  %v2650 = vsel %vm1031, %v2647, %v2649
  %v2651 = vrot.slane %v2629, 1
  %v2652 = vsel %vm1031, %v2649, %v2651
  %v2657 = vmax.f32 %v2626, %v2648
  %v2658 = vmax.f32 %v2627, %v2650
  %v2659 = vmax.f32 %v2628, %v2652
  %v2660 = vmax.f32 %v2629, %v2651
  %vm2661 = vcmask 211968
  %v2662 = vsel %vm2661, %v1980, 0
  %v2664 = vsel %vm2661, %v1981, 0
  %vm2666 = vcmask 1041408
  %v2668 = vsel %vm2666, %v2660, 0
  %2670 = vmatprep.subr.mxu0 0.0
  %2671 = vmatpush1.msra.mxu0 %v2657
  %2672 = vmatprep.subr.mxu0 0.0
  %2673 = vmatpush1.msra.mxu0 %v2658
  %2674 = vmatprep.subr.mxu0 0.0
  %2675 = vmatpush1.msra.mxu0 %v2659
  %2676 = vmatprep.subr.mxu0 0.0
  %2677 = vmatpush1.msra.mxu0 %v2668
  %2678 = vmatprep.subr.mxu0 0.0
  %2679 = vmatpush1.msra.mxu0 0.0
  %2680 = vmatprep.subr.mxu0 0.0
  %2681 = vmatpush1.msra.mxu0 0.0
  %2682 = vmatprep.subr.mxu0 0.0
  %2683 = vmatpush1.msra.mxu0 0.0
  %2684 = vmatprep.subr.mxu0 0.0
  %2685 = vmatpush1.msra.mxu0 0.0
  %2686 = vmatprep.subr.mxu0 0.0
  %2687 = vmatpush1.msra.mxu0 0.0
  %2688 = vmatprep.subr.mxu0 0.0
  %2689 = vmatpush1.msra.mxu0 0.0
  %2690 = vmatprep.subr.mxu0 0.0
  %2691 = vmatpush1.msra.mxu0 0.0
  %2692 = vmatprep.subr.mxu0 0.0
  %2693 = vmatpush1.msra.mxu0 0.0
  %2694 = vmatprep.subr.mxu0 0.0
  %2695 = vmatpush1.msra.mxu0 0.0
  %2696 = vmatprep.subr.mxu0 0.0
  %2697 = vmatpush1.msra.mxu0 0.0
  %2698 = vmatprep.subr.mxu0 0.0
  %2699 = vmatpush1.msra.mxu0 0.0
  %2700 = vmatprep.subr.mxu0 0.0
  %2701 = vmatpush1.msra.mxu0 0.0
  %2702 = vmatprep.subr.mxu0 0.0
  %2703 = vmatpush1.msra.mxu0 0.0
  %2704 = vmatprep.subr.mxu0 0.0
  %2705 = vmatpush1.msra.mxu0 0.0
  %2706 = vmatprep.subr.mxu0 0.0
  %2707 = vmatpush1.msra.mxu0 0.0
  %2708 = vmatprep.subr.mxu0 0.0
  %2709 = vmatpush1.msra.mxu0 0.0
  %2710 = vmatprep.subr.mxu0 0.0
  %2711 = vmatpush1.msra.mxu0 0.0
  %2712 = vmatprep.subr.mxu0 0.0
  %2713 = vmatpush1.msra.mxu0 0.0
  %2714 = vmatprep.subr.mxu0 0.0
  %2715 = vmatpush1.msra.mxu0 0.0
  %2716 = vmatprep.subr.mxu0 0.0
  %2717 = vmatpush1.msra.mxu0 0.0
  %2718 = vmatprep.subr.mxu0 0.0
  %2719 = vmatpush1.msra.mxu0 0.0
  %2720 = vmatprep.subr.mxu0 0.0
  %2721 = vmatpush1.msra.mxu0 0.0
  %2722 = vmatprep.subr.mxu0 0.0
  %2723 = vmatpush1.msra.mxu0 0.0
  %2724 = vmatprep.subr.mxu0 0.0
  %2725 = vmatpush1.msra.mxu0 0.0
  %2726 = vmatprep.subr.mxu0 0.0
  %2727 = vmatpush1.msra.mxu0 0.0
  %2728 = vmatprep.subr.mxu0 0.0
  %2729 = vmatpush1.msra.mxu0 0.0
  %2730 = vmatprep.subr.mxu0 0.0
  %2731 = vmatpush1.msra.mxu0 0.0
  %2732 = vmatprep.subr.mxu0 0.0
  %2733 = vmatpush1.msra.mxu0 0.0
  %2734 = vmatprep.mubr.f32.mxu0 0.0
  %2735 = vmatmul.mubr.f32.gmra.mrb[0].mxu0 %v2662
  %v2736 = vpop.f32.mrb[0].mxu0
  %v2737 = vadd.f32 0.0, %v2736
  %v2738 = vpop.f32.mrb[0].mxu0
  %2739 = vmatprep.mubr.f32.mxu0 0.0
  %2740 = vmatmul.mubr.f32.gmra.mrb[0].mxu0 %v2664
  %v2741 = vpop.f32.mrb[0].mxu0
  %v2742 = vadd.f32 0.0, %v2741
  %v2743 = vpop.f32.mrb[0].mxu0
  %2744 = vdwg.mxu0
  %v2749 = vrot.slane %v2638, 1
  %v2750 = vrot.slane %v2639, 1
  %v2751 = vsel %vm1031, %v2749, %v2750
  %v2752 = vrot.slane %v2640, 1
  %v2753 = vsel %vm1031, %v2750, %v2752
  %v2754 = vrot.slane %v2641, 1
  %v2755 = vsel %vm1031, %v2752, %v2754
  %v2760 = vmax.f32 %v2638, %v2751
  %v2761 = vmax.f32 %v2639, %v2753
  %v2762 = vmax.f32 %v2640, %v2755
  %v2763 = vmax.f32 %v2641, %v2754
  %v2765 = vsel %vm2666, %v2763, 0
  %2767 = vmatprep.subr.mxu0 0.0
  %2768 = vmatpush1.msra.mxu0 %v2760
  %2769 = vmatprep.subr.mxu0 0.0
  %2770 = vmatpush1.msra.mxu0 %v2761
  %2771 = vmatprep.subr.mxu0 0.0
  %2772 = vmatpush1.msra.mxu0 %v2762
  %2773 = vmatprep.subr.mxu0 0.0
  %2774 = vmatpush1.msra.mxu0 %v2765
  %2775 = vmatprep.subr.mxu0 0.0
  %2776 = vmatpush1.msra.mxu0 0.0
  %2777 = vmatprep.subr.mxu0 0.0
  %2778 = vmatpush1.msra.mxu0 0.0
  %2779 = vmatprep.subr.mxu0 0.0
  %2780 = vmatpush1.msra.mxu0 0.0
  %2781 = vmatprep.subr.mxu0 0.0
  %2782 = vmatpush1.msra.mxu0 0.0
  %2783 = vmatprep.subr.mxu0 0.0
  %2784 = vmatpush1.msra.mxu0 0.0
  %2785 = vmatprep.subr.mxu0 0.0
  %2786 = vmatpush1.msra.mxu0 0.0
  %2787 = vmatprep.subr.mxu0 0.0
  %2788 = vmatpush1.msra.mxu0 0.0
  %2789 = vmatprep.subr.mxu0 0.0
  %2790 = vmatpush1.msra.mxu0 0.0
  %2791 = vmatprep.subr.mxu0 0.0
  %2792 = vmatpush1.msra.mxu0 0.0
  %2793 = vmatprep.subr.mxu0 0.0
  %2794 = vmatpush1.msra.mxu0 0.0
  %2795 = vmatprep.subr.mxu0 0.0
  %2796 = vmatpush1.msra.mxu0 0.0
  %2797 = vmatprep.subr.mxu0 0.0
  %2798 = vmatpush1.msra.mxu0 0.0
  %2799 = vmatprep.subr.mxu0 0.0
  %2800 = vmatpush1.msra.mxu0 0.0
  %2801 = vmatprep.subr.mxu0 0.0
  %2802 = vmatpush1.msra.mxu0 0.0
  %2803 = vmatprep.subr.mxu0 0.0
  %2804 = vmatpush1.msra.mxu0 0.0
  %2805 = vmatprep.subr.mxu0 0.0
  %2806 = vmatpush1.msra.mxu0 0.0
  %2807 = vmatprep.subr.mxu0 0.0
  %2808 = vmatpush1.msra.mxu0 0.0
  %2809 = vmatprep.subr.mxu0 0.0
  %2810 = vmatpush1.msra.mxu0 0.0
  %2811 = vmatprep.subr.mxu0 0.0
  %2812 = vmatpush1.msra.mxu0 0.0
  %2813 = vmatprep.subr.mxu0 0.0
  %2814 = vmatpush1.msra.mxu0 0.0
  %2815 = vmatprep.subr.mxu0 0.0
  %2816 = vmatpush1.msra.mxu0 0.0
  %2817 = vmatprep.subr.mxu0 0.0
  %2818 = vmatpush1.msra.mxu0 0.0
  %2819 = vmatprep.subr.mxu0 0.0
  %2820 = vmatpush1.msra.mxu0 0.0
  %2821 = vmatprep.subr.mxu0 0.0
  %2822 = vmatpush1.msra.mxu0 0.0
  %2823 = vmatprep.subr.mxu0 0.0
  %2824 = vmatpush1.msra.mxu0 0.0
  %2825 = vmatprep.subr.mxu0 0.0
  %2826 = vmatpush1.msra.mxu0 0.0
  %2827 = vmatprep.subr.mxu0 0.0
  %2828 = vmatpush1.msra.mxu0 0.0
  %2829 = vmatprep.subr.mxu0 0.0
  %2830 = vmatpush1.msra.mxu0 0.0
  %2831 = vmatprep.mubr.f32.mxu0 0.0
  %2832 = vmatmul.mubr.f32.gmra.mrb[0].mxu0 %v2662
  %v2833 = vpop.f32.mrb[0].mxu0
  %v2834 = vadd.f32 0.0, %v2833
  %v2835 = vpop.f32.mrb[0].mxu0
  %2836 = vmatprep.mubr.f32.mxu0 0.0
  %2837 = vmatmul.mubr.f32.gmra.mrb[0].mxu0 %v2664
  %v2838 = vpop.f32.mrb[0].mxu0
  %v2839 = vadd.f32 0.0, %v2838
  %v2840 = vpop.f32.mrb[0].mxu0
  %2841 = vdwg.mxu0
  %s2842 = scalar_lea.vmem %s1, 576
  %v2843 = vld [vmem:[%s2842] sm:$0xff]
  %v2844 = vld [vmem:[%s2842 + $0x8] sm:$0xff]
  %v2845 = vld [vmem:[%s2842 + $0x10] sm:$0xff]
  %v2846 = vld [vmem:[%s2842 + $0x18] sm:$0xff]
  %v2847 = vld [vmem:[%s2842 + $0x20] sm:$0xff]
  %v2848 = vld [vmem:[%s2842 + $0x28] sm:$0xff]
  %v2849 = vld [vmem:[%s2842 + $0x30] sm:$0xff]
  %v2850 = vld [vmem:[%s2842 + $0x38] sm:$0xff]
  %v2851 = vld [vmem:[%s2842 + $0x40] sm:$0xff]
  %v2852 = vld [vmem:[%s2842 + $0x48] sm:$0xff]
  %v2853 = vld [vmem:[%s2842 + $0x50] sm:$0xff]
  %v2854 = vld [vmem:[%s2842 + $0x58] sm:$0xff]
  %v2855 = vld [vmem:[%s2842 + $0x60] sm:$0xff]
  %v2856 = vld [vmem:[%s2842 + $0x68] sm:$0xff]
  %v2857 = vld [vmem:[%s2842 + $0x70] sm:$0xff]
  %v2858 = vld [vmem:[%s2842 + $0x78] sm:$0xff]
  %v2859 = vld [vmem:[%s2842 + $0x80] sm:$0xff]
  %v2860 = vld [vmem:[%s2842 + $0x88] sm:$0xff]
  %v2861 = vld [vmem:[%s2842 + $0x90] sm:$0xff]
  %v2862 = vld [vmem:[%s2842 + $0x98] sm:$0xff]
  %v2863 = vld [vmem:[%s2842 + $0xa0] sm:$0xff]
  %v2864 = vld [vmem:[%s2842 + $0xa8] sm:$0xff]
  %v2865 = vld [vmem:[%s2842 + $0xb0] sm:$0xff]
  %v2866 = vld [vmem:[%s2842 + $0xb8] sm:$0xff]
  %v2869 = vrot.slane %v2737, 1
  %v2870 = vrot.slane %v2742, 1
  %v2871 = vsel %vm1031, %v2869, %v2870
  %2872 = vrot.lane.b32.xlu0 %v2871, 64
  %v2873 = vpop.permute.xlu0 %2872
  %2874 = vrot.lane.b32.xlu0 %v2870, 64
  %v2875 = vpop.permute.xlu0 %2874
  %v2878 = vrot.slane %v2737, 2
  %v2879 = vrot.slane %v2742, 2
  %v2880 = vsel %vm1417, %v2878, %v2879
  %v2881 = vsel %vm60, %v2737, %v2873
  %v2882 = vsel %vm60, %v2742, %v2875
  %v2883 = vsel %vm60, %v2880, 0
  %v2885 = vsel %vm60, %v2879, 0
  %2887 = vmatprep.subr.mxu0 0.0
  %2888 = vmatpush1.msra.mxu0 %v2843
  %2889 = vmatprep.subr.mxu0 0.0
  %2890 = vmatpush1.msra.mxu0 %v2844
  %2891 = vmatprep.subr.mxu0 0.0
  %2892 = vmatpush1.msra.mxu0 %v2845
  %2893 = vmatprep.subr.mxu0 0.0
  %2894 = vmatpush1.msra.mxu0 %v2846
  %2895 = vmatprep.subr.mxu0 0.0
  %2896 = vmatpush1.msra.mxu0 %v2847
  %2897 = vmatprep.subr.mxu0 0.0
  %2898 = vmatpush1.msra.mxu0 %v2848
  %2899 = vmatprep.subr.mxu0 0.0
  %2900 = vmatpush1.msra.mxu0 %v2849
  %2901 = vmatprep.subr.mxu0 0.0
  %2902 = vmatpush1.msra.mxu0 %v2850
  %2903 = vmatprep.subr.mxu0 0.0
  %2904 = vmatpush1.msra.mxu0 %v2851
  %2905 = vmatprep.subr.mxu0 0.0
  %2906 = vmatpush1.msra.mxu0 %v2852
  %2907 = vmatprep.subr.mxu0 0.0
  %2908 = vmatpush1.msra.mxu0 %v2853
  %2909 = vmatprep.subr.mxu0 0.0
  %2910 = vmatpush1.msra.mxu0 %v2854
  %2911 = vmatprep.subr.mxu0 0.0
  %2912 = vmatpush1.msra.mxu0 %v2855
  %2913 = vmatprep.subr.mxu0 0.0
  %2914 = vmatpush1.msra.mxu0 %v2856
  %2915 = vmatprep.subr.mxu0 0.0
  %2916 = vmatpush1.msra.mxu0 %v2857
  %2917 = vmatprep.subr.mxu0 0.0
  %2918 = vmatpush1.msra.mxu0 %v2858
  %2919 = vmatprep.subr.mxu0 0.0
  %2920 = vmatpush1.msra.mxu0 %v2859
  %2921 = vmatprep.subr.mxu0 0.0
  %2922 = vmatpush1.msra.mxu0 %v2860
  %2923 = vmatprep.subr.mxu0 0.0
  %2924 = vmatpush1.msra.mxu0 %v2861
  %2925 = vmatprep.subr.mxu0 0.0
  %2926 = vmatpush1.msra.mxu0 %v2862
  %2927 = vmatprep.subr.mxu0 0.0
  %2928 = vmatpush1.msra.mxu0 %v2863
  %2929 = vmatprep.subr.mxu0 0.0
  %2930 = vmatpush1.msra.mxu0 %v2864
  %2931 = vmatprep.subr.mxu0 0.0
  %2932 = vmatpush1.msra.mxu0 %v2865
  %2933 = vmatprep.subr.mxu0 0.0
  %2934 = vmatpush1.msra.mxu0 %v2866
  %2935 = vmatprep.subr.mxu0 0.0
  %2936 = vmatpush1.msra.mxu0 0.0
  %2937 = vmatprep.subr.mxu0 0.0
  %2938 = vmatpush1.msra.mxu0 0.0
  %2939 = vmatprep.subr.mxu0 0.0
  %2940 = vmatpush1.msra.mxu0 0.0
  %2941 = vmatprep.subr.mxu0 0.0
  %2942 = vmatpush1.msra.mxu0 0.0
  %2943 = vmatprep.subr.mxu0 0.0
  %2944 = vmatpush1.msra.mxu0 0.0
  %2945 = vmatprep.subr.mxu0 0.0
  %2946 = vmatpush1.msra.mxu0 0.0
  %2947 = vmatprep.subr.mxu0 0.0
  %2948 = vmatpush1.msra.mxu0 0.0
  %2949 = vmatprep.subr.mxu0 0.0
  %2950 = vmatpush1.msra.mxu0 0.0
  %2951 = vmatprep.mubr.f32.mxu0 %v2883
  %2952 = vmatmul.mubr.f32.gmra.mrb[0].mxu0 %v2881
  %v2953 = vpop.f32.mrb[0].mxu0
  %v2954 = vadd.f32 0.0, %v2953
  %v2955 = vpop.f32.mrb[0].mxu0
  %2956 = vmatprep.mubr.f32.mxu0 %v2885
  %2957 = vmatmul.mubr.f32.gmra.mrb[0].mxu0 %v2882
  %v2958 = vpop.f32.mrb[0].mxu0
  %v2959 = vadd.f32 0.0, %v2958
  %v2960 = vpop.f32.mrb[0].mxu0
  %2961 = vdwg.mxu0
  %v2964 = vrot.slane %v2834, 1
  %v2965 = vrot.slane %v2839, 1
  %v2966 = vsel %vm1031, %v2964, %v2965
  %2967 = vrot.lane.b32.xlu0 %v2966, 64
  %v2968 = vpop.permute.xlu0 %2967
  %2969 = vrot.lane.b32.xlu0 %v2965, 64
  %v2970 = vpop.permute.xlu0 %2969
  %v2973 = vrot.slane %v2834, 2
  %v2974 = vrot.slane %v2839, 2
  %v2975 = vsel %vm1417, %v2973, %v2974
  %v2976 = vsel %vm60, %v2834, %v2968
  %v2977 = vsel %vm60, %v2839, %v2970
  %v2978 = vsel %vm60, %v2975, 0
  %v2980 = vsel %vm60, %v2974, 0
  %2982 = vmatprep.subr.mxu0 0.0
  %2983 = vmatpush1.msra.mxu0 %v2843
  %2984 = vmatprep.subr.mxu0 0.0
  %2985 = vmatpush1.msra.mxu0 %v2844
  %2986 = vmatprep.subr.mxu0 0.0
  %2987 = vmatpush1.msra.mxu0 %v2845
  %2988 = vmatprep.subr.mxu0 0.0
  %2989 = vmatpush1.msra.mxu0 %v2846
  %2990 = vmatprep.subr.mxu0 0.0
  %2991 = vmatpush1.msra.mxu0 %v2847
  %2992 = vmatprep.subr.mxu0 0.0
  %2993 = vmatpush1.msra.mxu0 %v2848
  %2994 = vmatprep.subr.mxu0 0.0
  %2995 = vmatpush1.msra.mxu0 %v2849
  %2996 = vmatprep.subr.mxu0 0.0
  %2997 = vmatpush1.msra.mxu0 %v2850
  %2998 = vmatprep.subr.mxu0 0.0
  %2999 = vmatpush1.msra.mxu0 %v2851
  %3000 = vmatprep.subr.mxu0 0.0
  %3001 = vmatpush1.msra.mxu0 %v2852
  %3002 = vmatprep.subr.mxu0 0.0
  %3003 = vmatpush1.msra.mxu0 %v2853
  %3004 = vmatprep.subr.mxu0 0.0
  %3005 = vmatpush1.msra.mxu0 %v2854
  %3006 = vmatprep.subr.mxu0 0.0
  %3007 = vmatpush1.msra.mxu0 %v2855
  %3008 = vmatprep.subr.mxu0 0.0
  %3009 = vmatpush1.msra.mxu0 %v2856
  %3010 = vmatprep.subr.mxu0 0.0
  %3011 = vmatpush1.msra.mxu0 %v2857
  %3012 = vmatprep.subr.mxu0 0.0
  %3013 = vmatpush1.msra.mxu0 %v2858
  %3014 = vmatprep.subr.mxu0 0.0
  %3015 = vmatpush1.msra.mxu0 %v2859
  %3016 = vmatprep.subr.mxu0 0.0
  %3017 = vmatpush1.msra.mxu0 %v2860
  %3018 = vmatprep.subr.mxu0 0.0
  %3019 = vmatpush1.msra.mxu0 %v2861
  %3020 = vmatprep.subr.mxu0 0.0
  %3021 = vmatpush1.msra.mxu0 %v2862
  %3022 = vmatprep.subr.mxu0 0.0
  %3023 = vmatpush1.msra.mxu0 %v2863
  %3024 = vmatprep.subr.mxu0 0.0
  %3025 = vmatpush1.msra.mxu0 %v2864
  %3026 = vmatprep.subr.mxu0 0.0
  %3027 = vmatpush1.msra.mxu0 %v2865
  %3028 = vmatprep.subr.mxu0 0.0
  %3029 = vmatpush1.msra.mxu0 %v2866
  %3030 = vmatprep.subr.mxu0 0.0
  %3031 = vmatpush1.msra.mxu0 0.0
  %3032 = vmatprep.subr.mxu0 0.0
  %3033 = vmatpush1.msra.mxu0 0.0
  %3034 = vmatprep.subr.mxu0 0.0
  %3035 = vmatpush1.msra.mxu0 0.0
  %3036 = vmatprep.subr.mxu0 0.0
  %3037 = vmatpush1.msra.mxu0 0.0
  %3038 = vmatprep.subr.mxu0 0.0
  %3039 = vmatpush1.msra.mxu0 0.0
  %3040 = vmatprep.subr.mxu0 0.0
  %3041 = vmatpush1.msra.mxu0 0.0
  %3042 = vmatprep.subr.mxu0 0.0
  %3043 = vmatpush1.msra.mxu0 0.0
  %3044 = vmatprep.subr.mxu0 0.0
  %3045 = vmatpush1.msra.mxu0 0.0
  %3046 = vmatprep.mubr.f32.mxu0 %v2978
  %3047 = vmatmul.mubr.f32.gmra.mrb[0].mxu0 %v2976
  %v3048 = vpop.f32.mrb[0].mxu0
  %v3049 = vadd.f32 0.0, %v3048
  %v3050 = vpop.f32.mrb[0].mxu0
  %3051 = vmatprep.mubr.f32.mxu0 %v2980
  %3052 = vmatmul.mubr.f32.gmra.mrb[0].mxu0 %v2977
  %v3053 = vpop.f32.mrb[0].mxu0
  %v3054 = vadd.f32 0.0, %v3053
  %v3055 = vpop.f32.mrb[0].mxu0
  %3056 = vdwg.mxu0
  %v3057 = vsel %vm60, %v2954, 0.0
  %v3058 = vsel %vm2535, %v2959, 0.0
  %v3059 = vadd.f32 %v3057, %v3058
  %v3060 = vrot.slane %v3059, 4
  %v3061 = vadd.f32 %v3059, %v3060
  %v3062 = vrot.slane %v3061, 2
  %v3063 = vadd.f32 %v3061, %v3062
  %v3064 = vrot.slane %v3063, 1
  %v3065 = vadd.f32 %v3063, %v3064
  %v3066 = vsel %vm60, %v3049, 0.0
  %v3067 = vsel %vm2535, %v3054, 0.0
  %v3068 = vadd.f32 %v3066, %v3067
  %v3069 = vrot.slane %v3068, 4
  %v3070 = vadd.f32 %v3068, %v3069
  %v3071 = vrot.slane %v3070, 2
  %v3072 = vadd.f32 %v3070, %v3071
  %v3073 = vrot.slane %v3072, 1
  %v3074 = vadd.f32 %v3072, %v3073
  %v3075 = vadd.f32 %v3065, %v3074
  %v3076 = vmul.f32 %v3075, 0.045454547
  %v3077 = vsub.f32 %v2954, %v3076
  %v3078 = vsub.f32 %v2959, %v3076
  %v3079 = vsub.f32 %v3049, %v3076
  %v3080 = vsub.f32 %v3054, %v3076
  %v3081 = vmul.f32 %v3077, %v3077
  %v3082 = vmul.f32 %v3078, %v3078
  %v3083 = vsel %vm60, %v3081, 0.0
  %v3084 = vsel %vm2535, %v3082, 0.0
  %v3085 = vadd.f32 %v3083, %v3084
  %v3086 = vrot.slane %v3085, 4
  %v3087 = vadd.f32 %v3085, %v3086
  %v3088 = vrot.slane %v3087, 2
  %v3089 = vadd.f32 %v3087, %v3088
  %v3090 = vrot.slane %v3089, 1
  %v3091 = vadd.f32 %v3089, %v3090
  %v3092 = vmul.f32 %v3079, %v3079
  %v3093 = vmul.f32 %v3080, %v3080
  %v3094 = vsel %vm60, %v3092, 0.0
  %v3095 = vsel %vm2535, %v3093, 0.0
  %v3096 = vadd.f32 %v3094, %v3095
  %v3097 = vrot.slane %v3096, 4
  %v3098 = vadd.f32 %v3096, %v3097
  %v3099 = vrot.slane %v3098, 2
  %v3100 = vadd.f32 %v3098, %v3099
  %v3101 = vrot.slane %v3100, 1
  %v3102 = vadd.f32 %v3100, %v3101
  %v3103 = vadd.f32 %v3091, %v3102
  %v3104 = vmul.f32 %v3103, 0.045454547
  %v3105 = vadd.f32 %v3104, 1e-05
  %v3106 = vrsqrt.pop %v3105
  %v3107 = vmul.f32 %v20, %v3106
  %v3108 = vlaneseq
  %v3109 = vshrl.u32 %v3108, 7
  %v3110 = vsub.s32 3, %v3109
  %v3111 = vrot.slane %v3107, %v3110
  %v3112 = vmul.f32 %v3077, %v3111
  %v3113 = vmul.f32 %v3078, %v3111
  %v3114 = vlaneseq
  %v3115 = vshrl.u32 %v3114, 7
  %v3116 = vsub.s32 3, %v3115
  %v3117 = vrot.slane %v20, %v3116
  %3119 = vrot.lane.b32.xlu0 %v3117, 64
  %v3120 = vpop.permute.xlu0 %3119
  %v3122 = vadd.f32 %v3112, %v3120
  %v3123 = vadd.f32 %v3113, %v3120
  %v3124 = vmax.f32 %v3122, 0.0
  %v3125 = vmax.f32 %v3123, 0.0
  %v3126 = vmul.f32 %v3079, %v3111
  %v3127 = vmul.f32 %v3080, %v3111
  %v3128 = vadd.f32 %v3126, %v3120
  %v3129 = vadd.f32 %v3127, %v3120
  %v3130 = vmax.f32 %v3128, 0.0
  %v3131 = vmax.f32 %v3129, 0.0
  %v3134 = vrot.slane %v3124, 1
  %v3135 = vrot.slane %v3125, 1
  %v3136 = vsel %vm1031, %v3134, %v3135
  %v3139 = vmax.f32 %v3124, %v3136
  %v3140 = vmax.f32 %v3125, %v3135
  %vm3141 = vcmask 80896
  %v3142 = vsel %vm3141, %v1980, 0
  %v3145 = vsel %vm2666, %v3140, 0
  %3147 = vmatprep.subr.mxu0 0.0
  %3148 = vmatpush1.msra.mxu0 %v3139
  %3149 = vmatprep.subr.mxu0 0.0
  %3150 = vmatpush1.msra.mxu0 %v3145
  %3151 = vmatprep.subr.mxu0 0.0
  %3152 = vmatpush1.msra.mxu0 0.0
  %3153 = vmatprep.subr.mxu0 0.0
  %3154 = vmatpush1.msra.mxu0 0.0
  %3155 = vmatprep.subr.mxu0 0.0
  %3156 = vmatpush1.msra.mxu0 0.0
  %3157 = vmatprep.subr.mxu0 0.0
  %3158 = vmatpush1.msra.mxu0 0.0
  %3159 = vmatprep.subr.mxu0 0.0
  %3160 = vmatpush1.msra.mxu0 0.0
  %3161 = vmatprep.subr.mxu0 0.0
  %3162 = vmatpush1.msra.mxu0 0.0
  %3163 = vmatprep.subr.mxu0 0.0
  %3164 = vmatpush1.msra.mxu0 0.0
  %3165 = vmatprep.subr.mxu0 0.0
  %3166 = vmatpush1.msra.mxu0 0.0
  %3167 = vmatprep.subr.mxu0 0.0
  %3168 = vmatpush1.msra.mxu0 0.0
  %3169 = vmatprep.subr.mxu0 0.0
  %3170 = vmatpush1.msra.mxu0 0.0
  %3171 = vmatprep.subr.mxu0 0.0
  %3172 = vmatpush1.msra.mxu0 0.0
  %3173 = vmatprep.subr.mxu0 0.0
  %3174 = vmatpush1.msra.mxu0 0.0
  %3175 = vmatprep.subr.mxu0 0.0
  %3176 = vmatpush1.msra.mxu0 0.0
  %3177 = vmatprep.subr.mxu0 0.0
  %3178 = vmatpush1.msra.mxu0 0.0
  %3179 = vmatprep.subr.mxu0 0.0
  %3180 = vmatpush1.msra.mxu0 0.0
  %3181 = vmatprep.subr.mxu0 0.0
  %3182 = vmatpush1.msra.mxu0 0.0
  %3183 = vmatprep.subr.mxu0 0.0
  %3184 = vmatpush1.msra.mxu0 0.0
  %3185 = vmatprep.subr.mxu0 0.0
  %3186 = vmatpush1.msra.mxu0 0.0
  %3187 = vmatprep.subr.mxu0 0.0
  %3188 = vmatpush1.msra.mxu0 0.0
  %3189 = vmatprep.subr.mxu0 0.0
  %3190 = vmatpush1.msra.mxu0 0.0
  %3191 = vmatprep.subr.mxu0 0.0
  %3192 = vmatpush1.msra.mxu0 0.0
  %3193 = vmatprep.subr.mxu0 0.0
  %3194 = vmatpush1.msra.mxu0 0.0
  %3195 = vmatprep.subr.mxu0 0.0
  %3196 = vmatpush1.msra.mxu0 0.0
  %3197 = vmatprep.subr.mxu0 0.0
  %3198 = vmatpush1.msra.mxu0 0.0
  %3199 = vmatprep.subr.mxu0 0.0
  %3200 = vmatpush1.msra.mxu0 0.0
  %3201 = vmatprep.subr.mxu0 0.0
  %3202 = vmatpush1.msra.mxu0 0.0
  %3203 = vmatprep.subr.mxu0 0.0
  %3204 = vmatpush1.msra.mxu0 0.0
  %3205 = vmatprep.subr.mxu0 0.0
  %3206 = vmatpush1.msra.mxu0 0.0
  %3207 = vmatprep.subr.mxu0 0.0
  %3208 = vmatpush1.msra.mxu0 0.0
  %3209 = vmatprep.subr.mxu0 0.0
  %3210 = vmatpush1.msra.mxu0 0.0
  %3211 = vmatprep.mubr.f32.mxu0 0.0
  %3212 = vmatmul.mubr.f32.gmra.mrb[0].mxu0 %v3142
  %v3213 = vpop.f32.mrb[0].mxu0
  %v3214 = vadd.f32 0.0, %v3213
  %v3215 = vpop.f32.mrb[0].mxu0
  %3216 = vdwg.mxu0
  %v3219 = vrot.slane %v3130, 1
  %v3220 = vrot.slane %v3131, 1
  %v3221 = vsel %vm1031, %v3219, %v3220
  %v3224 = vmax.f32 %v3130, %v3221
  %v3225 = vmax.f32 %v3131, %v3220
  %v3227 = vsel %vm2666, %v3225, 0
  %3229 = vmatprep.subr.mxu0 0.0
  %3230 = vmatpush1.msra.mxu0 %v3224
  %3231 = vmatprep.subr.mxu0 0.0
  %3232 = vmatpush1.msra.mxu0 %v3227
  %3233 = vmatprep.subr.mxu0 0.0
  %3234 = vmatpush1.msra.mxu0 0.0
  %3235 = vmatprep.subr.mxu0 0.0
  %3236 = vmatpush1.msra.mxu0 0.0
  %3237 = vmatprep.subr.mxu0 0.0
  %3238 = vmatpush1.msra.mxu0 0.0
  %3239 = vmatprep.subr.mxu0 0.0
  %3240 = vmatpush1.msra.mxu0 0.0
  %3241 = vmatprep.subr.mxu0 0.0
  %3242 = vmatpush1.msra.mxu0 0.0
  %3243 = vmatprep.subr.mxu0 0.0
  %3244 = vmatpush1.msra.mxu0 0.0
  %3245 = vmatprep.subr.mxu0 0.0
  %3246 = vmatpush1.msra.mxu0 0.0
  %3247 = vmatprep.subr.mxu0 0.0
  %3248 = vmatpush1.msra.mxu0 0.0
  %3249 = vmatprep.subr.mxu0 0.0
  %3250 = vmatpush1.msra.mxu0 0.0
  %3251 = vmatprep.subr.mxu0 0.0
  %3252 = vmatpush1.msra.mxu0 0.0
  %3253 = vmatprep.subr.mxu0 0.0
  %3254 = vmatpush1.msra.mxu0 0.0
  %3255 = vmatprep.subr.mxu0 0.0
  %3256 = vmatpush1.msra.mxu0 0.0
  %3257 = vmatprep.subr.mxu0 0.0
  %3258 = vmatpush1.msra.mxu0 0.0
  %3259 = vmatprep.subr.mxu0 0.0
  %3260 = vmatpush1.msra.mxu0 0.0
  %3261 = vmatprep.subr.mxu0 0.0
  %3262 = vmatpush1.msra.mxu0 0.0
  %3263 = vmatprep.subr.mxu0 0.0
  %3264 = vmatpush1.msra.mxu0 0.0
  %3265 = vmatprep.subr.mxu0 0.0
  %3266 = vmatpush1.msra.mxu0 0.0
  %3267 = vmatprep.subr.mxu0 0.0
  %3268 = vmatpush1.msra.mxu0 0.0
  %3269 = vmatprep.subr.mxu0 0.0
  %3270 = vmatpush1.msra.mxu0 0.0
  %3271 = vmatprep.subr.mxu0 0.0
  %3272 = vmatpush1.msra.mxu0 0.0
  %3273 = vmatprep.subr.mxu0 0.0
  %3274 = vmatpush1.msra.mxu0 0.0
  %3275 = vmatprep.subr.mxu0 0.0
  %3276 = vmatpush1.msra.mxu0 0.0
  %3277 = vmatprep.subr.mxu0 0.0
  %3278 = vmatpush1.msra.mxu0 0.0
  %3279 = vmatprep.subr.mxu0 0.0
  %3280 = vmatpush1.msra.mxu0 0.0
  %3281 = vmatprep.subr.mxu0 0.0
  %3282 = vmatpush1.msra.mxu0 0.0
  %3283 = vmatprep.subr.mxu0 0.0
  %3284 = vmatpush1.msra.mxu0 0.0
  %3285 = vmatprep.subr.mxu0 0.0
  %3286 = vmatpush1.msra.mxu0 0.0
  %3287 = vmatprep.subr.mxu0 0.0
  %3288 = vmatpush1.msra.mxu0 0.0
  %3289 = vmatprep.subr.mxu0 0.0
  %3290 = vmatpush1.msra.mxu0 0.0
  %3291 = vmatprep.subr.mxu0 0.0
  %3292 = vmatpush1.msra.mxu0 0.0
  %3293 = vmatprep.mubr.f32.mxu0 0.0
  %3294 = vmatmul.mubr.f32.gmra.mrb[0].mxu0 %v3142
  %v3295 = vpop.f32.mrb[0].mxu0
  %v3296 = vadd.f32 0.0, %v3295
  %v3297 = vpop.f32.mrb[0].mxu0
  %3298 = vdwg.mxu0
  %s3299 = scalar_lea.vmem %s1, 768
  %v3300 = vld [vmem:[%s3299] sm:$0xff]
  %v3301 = vld [vmem:[%s3299 + $0x8] sm:$0xff]
  %v3302 = vld [vmem:[%s3299 + $0x10] sm:$0xff]
  %v3303 = vld [vmem:[%s3299 + $0x18] sm:$0xff]
  %v3304 = vld [vmem:[%s3299 + $0x20] sm:$0xff]
  %v3305 = vld [vmem:[%s3299 + $0x28] sm:$0xff]
  %v3306 = vld [vmem:[%s3299 + $0x30] sm:$0xff]
  %v3307 = vld [vmem:[%s3299 + $0x38] sm:$0xff]
  %v3308 = vld [vmem:[%s3299 + $0x40] sm:$0xff]
  %v3309 = vld [vmem:[%s3299 + $0x48] sm:$0xff]
  %v3310 = vld [vmem:[%s3299 + $0x50] sm:$0xff]
  %v3311 = vld [vmem:[%s3299 + $0x58] sm:$0xff]
  %v3312 = vld [vmem:[%s3299 + $0x60] sm:$0xff]
  %v3313 = vld [vmem:[%s3299 + $0x68] sm:$0xff]
  %v3314 = vld [vmem:[%s3299 + $0x70] sm:$0xff]
  %v3315 = vld [vmem:[%s3299 + $0x78] sm:$0xff]
  %v3316 = vld [vmem:[%s3299 + $0x80] sm:$0xff]
  %v3317 = vld [vmem:[%s3299 + $0x88] sm:$0xff]
  %v3318 = vld [vmem:[%s3299 + $0x90] sm:$0xff]
  %v3319 = vld [vmem:[%s3299 + $0x98] sm:$0xff]
  %v3320 = vld [vmem:[%s3299 + $0xa0] sm:$0xff]
  %v3321 = vld [vmem:[%s3299 + $0xa8] sm:$0xff]
  %v3322 = vld [vmem:[%s3299 + $0xb0] sm:$0xff]
  %v3323 = vld [vmem:[%s3299 + $0xb8] sm:$0xff]
  %v3325 = vrot.slane %v3214, 1
  %3326 = vrot.lane.b32.xlu0 %v3325, 64
  %v3327 = vpop.permute.xlu0 %3326
  %v3329 = vrot.slane %v3214, 2
  %v3330 = vsel %vm60, %v3214, %v3327
  %v3331 = vsel %vm60, %v3329, 0
  %3333 = vmatprep.subr.mxu0 0.0
  %3334 = vmatpush1.msra.mxu0 %v3300
  %3335 = vmatprep.subr.mxu0 0.0
  %3336 = vmatpush1.msra.mxu0 %v3301
  %3337 = vmatprep.subr.mxu0 0.0
  %3338 = vmatpush1.msra.mxu0 %v3302
  %3339 = vmatprep.subr.mxu0 0.0
  %3340 = vmatpush1.msra.mxu0 %v3303
  %3341 = vmatprep.subr.mxu0 0.0
  %3342 = vmatpush1.msra.mxu0 %v3304
  %3343 = vmatprep.subr.mxu0 0.0
  %3344 = vmatpush1.msra.mxu0 %v3305
  %3345 = vmatprep.subr.mxu0 0.0
  %3346 = vmatpush1.msra.mxu0 %v3306
  %3347 = vmatprep.subr.mxu0 0.0
  %3348 = vmatpush1.msra.mxu0 %v3307
  %3349 = vmatprep.subr.mxu0 0.0
  %3350 = vmatpush1.msra.mxu0 %v3308
  %3351 = vmatprep.subr.mxu0 0.0
  %3352 = vmatpush1.msra.mxu0 %v3309
  %3353 = vmatprep.subr.mxu0 0.0
  %3354 = vmatpush1.msra.mxu0 %v3310
  %3355 = vmatprep.subr.mxu0 0.0
  %3356 = vmatpush1.msra.mxu0 %v3311
  %3357 = vmatprep.subr.mxu0 0.0
  %3358 = vmatpush1.msra.mxu0 %v3312
  %3359 = vmatprep.subr.mxu0 0.0
  %3360 = vmatpush1.msra.mxu0 %v3313
  %3361 = vmatprep.subr.mxu0 0.0
  %3362 = vmatpush1.msra.mxu0 %v3314
  %3363 = vmatprep.subr.mxu0 0.0
  %3364 = vmatpush1.msra.mxu0 %v3315
  %3365 = vmatprep.subr.mxu0 0.0
  %3366 = vmatpush1.msra.mxu0 %v3316
  %3367 = vmatprep.subr.mxu0 0.0
  %3368 = vmatpush1.msra.mxu0 %v3317
  %3369 = vmatprep.subr.mxu0 0.0
  %3370 = vmatpush1.msra.mxu0 %v3318
  %3371 = vmatprep.subr.mxu0 0.0
  %3372 = vmatpush1.msra.mxu0 %v3319
  %3373 = vmatprep.subr.mxu0 0.0
  %3374 = vmatpush1.msra.mxu0 %v3320
  %3375 = vmatprep.subr.mxu0 0.0
  %3376 = vmatpush1.msra.mxu0 %v3321
  %3377 = vmatprep.subr.mxu0 0.0
  %3378 = vmatpush1.msra.mxu0 %v3322
  %3379 = vmatprep.subr.mxu0 0.0
  %3380 = vmatpush1.msra.mxu0 %v3323
  %3381 = vmatprep.subr.mxu0 0.0
  %3382 = vmatpush1.msra.mxu0 0.0
  %3383 = vmatprep.subr.mxu0 0.0
  %3384 = vmatpush1.msra.mxu0 0.0
  %3385 = vmatprep.subr.mxu0 0.0
  %3386 = vmatpush1.msra.mxu0 0.0
  %3387 = vmatprep.subr.mxu0 0.0
  %3388 = vmatpush1.msra.mxu0 0.0
  %3389 = vmatprep.subr.mxu0 0.0
  %3390 = vmatpush1.msra.mxu0 0.0
  %3391 = vmatprep.subr.mxu0 0.0
  %3392 = vmatpush1.msra.mxu0 0.0
  %3393 = vmatprep.subr.mxu0 0.0
  %3394 = vmatpush1.msra.mxu0 0.0
  %3395 = vmatprep.subr.mxu0 0.0
  %3396 = vmatpush1.msra.mxu0 0.0
  %3397 = vmatprep.mubr.f32.mxu0 %v3331
  %3398 = vmatmul.mubr.f32.gmra.mrb[0].mxu0 %v3330
  %v3399 = vpop.f32.mrb[0].mxu0
  %v3400 = vadd.f32 0.0, %v3399
  %v3401 = vpop.f32.mrb[0].mxu0
  %3402 = vdwg.mxu0
  %v3404 = vrot.slane %v3296, 1
  %3405 = vrot.lane.b32.xlu0 %v3404, 64
  %v3406 = vpop.permute.xlu0 %3405
  %v3408 = vrot.slane %v3296, 2
  %v3409 = vsel %vm60, %v3296, %v3406
  %v3410 = vsel %vm60, %v3408, 0
  %3412 = vmatprep.subr.mxu0 0.0
  %3413 = vmatpush1.msra.mxu0 %v3300
  %3414 = vmatprep.subr.mxu0 0.0
  %3415 = vmatpush1.msra.mxu0 %v3301
  %3416 = vmatprep.subr.mxu0 0.0
  %3417 = vmatpush1.msra.mxu0 %v3302
  %3418 = vmatprep.subr.mxu0 0.0
  %3419 = vmatpush1.msra.mxu0 %v3303
  %3420 = vmatprep.subr.mxu0 0.0
  %3421 = vmatpush1.msra.mxu0 %v3304
  %3422 = vmatprep.subr.mxu0 0.0
  %3423 = vmatpush1.msra.mxu0 %v3305
  %3424 = vmatprep.subr.mxu0 0.0
  %3425 = vmatpush1.msra.mxu0 %v3306
  %3426 = vmatprep.subr.mxu0 0.0
  %3427 = vmatpush1.msra.mxu0 %v3307
  %3428 = vmatprep.subr.mxu0 0.0
  %3429 = vmatpush1.msra.mxu0 %v3308
  %3430 = vmatprep.subr.mxu0 0.0
  %3431 = vmatpush1.msra.mxu0 %v3309
  %3432 = vmatprep.subr.mxu0 0.0
  %3433 = vmatpush1.msra.mxu0 %v3310
  %3434 = vmatprep.subr.mxu0 0.0
  %3435 = vmatpush1.msra.mxu0 %v3311
  %3436 = vmatprep.subr.mxu0 0.0
  %3437 = vmatpush1.msra.mxu0 %v3312
  %3438 = vmatprep.subr.mxu0 0.0
  %3439 = vmatpush1.msra.mxu0 %v3313
  %3440 = vmatprep.subr.mxu0 0.0
  %3441 = vmatpush1.msra.mxu0 %v3314
  %3442 = vmatprep.subr.mxu0 0.0
  %3443 = vmatpush1.msra.mxu0 %v3315
  %3444 = vmatprep.subr.mxu0 0.0
  %3445 = vmatpush1.msra.mxu0 %v3316
  %3446 = vmatprep.subr.mxu0 0.0
  %3447 = vmatpush1.msra.mxu0 %v3317
  %3448 = vmatprep.subr.mxu0 0.0
  %3449 = vmatpush1.msra.mxu0 %v3318
  %3450 = vmatprep.subr.mxu0 0.0
  %3451 = vmatpush1.msra.mxu0 %v3319
  %3452 = vmatprep.subr.mxu0 0.0
  %3453 = vmatpush1.msra.mxu0 %v3320
  %3454 = vmatprep.subr.mxu0 0.0
  %3455 = vmatpush1.msra.mxu0 %v3321
  %3456 = vmatprep.subr.mxu0 0.0
  %3457 = vmatpush1.msra.mxu0 %v3322
  %3458 = vmatprep.subr.mxu0 0.0
  %3459 = vmatpush1.msra.mxu0 %v3323
  %3460 = vmatprep.subr.mxu0 0.0
  %3461 = vmatpush1.msra.mxu0 0.0
  %3462 = vmatprep.subr.mxu0 0.0
  %3463 = vmatpush1.msra.mxu0 0.0
  %3464 = vmatprep.subr.mxu0 0.0
  %3465 = vmatpush1.msra.mxu0 0.0
  %3466 = vmatprep.subr.mxu0 0.0
  %3467 = vmatpush1.msra.mxu0 0.0
  %3468 = vmatprep.subr.mxu0 0.0
  %3469 = vmatpush1.msra.mxu0 0.0
  %3470 = vmatprep.subr.mxu0 0.0
  %3471 = vmatpush1.msra.mxu0 0.0
  %3472 = vmatprep.subr.mxu0 0.0
  %3473 = vmatpush1.msra.mxu0 0.0
  %3474 = vmatprep.subr.mxu0 0.0
  %3475 = vmatpush1.msra.mxu0 0.0
  %3476 = vmatprep.mubr.f32.mxu0 %v3410
  %3477 = vmatmul.mubr.f32.gmra.mrb[0].mxu0 %v3409
  %v3478 = vpop.f32.mrb[0].mxu0
  %v3479 = vadd.f32 0.0, %v3478
  %v3480 = vpop.f32.mrb[0].mxu0
  %3481 = vdwg.mxu0
  %v3482 = vsel %vm2535, %v3400, 0.0
  %v3483 = vrot.slane %v3482, 4
  %v3484 = vadd.f32 %v3482, %v3483
  %v3485 = vrot.slane %v3484, 2
  %v3486 = vadd.f32 %v3484, %v3485
  %v3487 = vrot.slane %v3486, 1
  %v3488 = vadd.f32 %v3486, %v3487
  %v3489 = vsel %vm2535, %v3479, 0.0
  %v3490 = vrot.slane %v3489, 4
  %v3491 = vadd.f32 %v3489, %v3490
  %v3492 = vrot.slane %v3491, 2
  %v3493 = vadd.f32 %v3491, %v3492
  %v3494 = vrot.slane %v3493, 1
  %v3495 = vadd.f32 %v3493, %v3494
  %v3496 = vadd.f32 %v3488, %v3495
  %v3497 = vmul.f32 %v3496, 0.16666667
  %v3498 = vsub.f32 %v3400, %v3497
  %v3499 = vsub.f32 %v3479, %v3497
  %v3500 = vmul.f32 %v3498, %v3498
  %v3501 = vsel %vm2535, %v3500, 0.0
  %v3502 = vrot.slane %v3501, 4
  %v3503 = vadd.f32 %v3501, %v3502
  %v3504 = vrot.slane %v3503, 2
  %v3505 = vadd.f32 %v3503, %v3504
  %v3506 = vrot.slane %v3505, 1
  %v3507 = vadd.f32 %v3505, %v3506
  %v3508 = vmul.f32 %v3499, %v3499
  %v3509 = vsel %vm2535, %v3508, 0.0
  %v3510 = vrot.slane %v3509, 4
  %v3511 = vadd.f32 %v3509, %v3510
  %v3512 = vrot.slane %v3511, 2
  %v3513 = vadd.f32 %v3511, %v3512
  %v3514 = vrot.slane %v3513, 1
  %v3515 = vadd.f32 %v3513, %v3514
  %v3516 = vadd.f32 %v3507, %v3515
  %v3517 = vmul.f32 %v3516, 0.16666667
  %v3518 = vadd.f32 %v3517, 1e-05
  %v3519 = vrsqrt.pop %v3518
  %v3520 = vmul.f32 %v20, %v3519
  %v3521 = vlaneseq
  %v3522 = vshrl.u32 %v3521, 7
  %v3523 = vsub.s32 4, %v3522
  %v3524 = vrot.slane %v3520, %v3523
  %v3525 = vmul.f32 %v3498, %v3524
  %v3526 = vlaneseq
  %v3527 = vshrl.u32 %v3526, 7
  %v3528 = vsub.s32 4, %v3527
  %v3529 = vrot.slane %v20, %v3528
  %3531 = vrot.lane.b32.xlu0 %v3529, 64
  %v3532 = vpop.permute.xlu0 %3531
  %v3534 = vadd.f32 %v3525, %v3532
  %v3535 = vmax.f32 %v3534, 0.0
  %v3536 = vmul.f32 %v3499, %v3524
  %v3537 = vadd.f32 %v3536, %v3532
  %v3538 = vmax.f32 %v3537, 0.0
  %v3540 = vrot.slane %v3535, 1
  %v3542 = vmax.f32 %v3535, %v3540
  %vm3543 = vcmask 15360
  %v3544 = vsel %vm3543, %v1980, 0
  %v3547 = vsel %vm2666, %v3542, 0
  %3549 = vmatprep.subr.mxu0 0.0
  %3550 = vmatpush1.msra.mxu0 %v3547
  %3551 = vmatprep.subr.mxu0 0.0
  %3552 = vmatpush1.msra.mxu0 0.0
  %3553 = vmatprep.subr.mxu0 0.0
  %3554 = vmatpush1.msra.mxu0 0.0
  %3555 = vmatprep.subr.mxu0 0.0
  %3556 = vmatpush1.msra.mxu0 0.0
  %3557 = vmatprep.subr.mxu0 0.0
  %3558 = vmatpush1.msra.mxu0 0.0
  %3559 = vmatprep.subr.mxu0 0.0
  %3560 = vmatpush1.msra.mxu0 0.0
  %3561 = vmatprep.subr.mxu0 0.0
  %3562 = vmatpush1.msra.mxu0 0.0
  %3563 = vmatprep.subr.mxu0 0.0
  %3564 = vmatpush1.msra.mxu0 0.0
  %3565 = vmatprep.subr.mxu0 0.0
  %3566 = vmatpush1.msra.mxu0 0.0
  %3567 = vmatprep.subr.mxu0 0.0
  %3568 = vmatpush1.msra.mxu0 0.0
  %3569 = vmatprep.subr.mxu0 0.0
  %3570 = vmatpush1.msra.mxu0 0.0
  %3571 = vmatprep.subr.mxu0 0.0
  %3572 = vmatpush1.msra.mxu0 0.0
  %3573 = vmatprep.subr.mxu0 0.0
  %3574 = vmatpush1.msra.mxu0 0.0
  %3575 = vmatprep.subr.mxu0 0.0
  %3576 = vmatpush1.msra.mxu0 0.0
  %3577 = vmatprep.subr.mxu0 0.0
  %3578 = vmatpush1.msra.mxu0 0.0
  %3579 = vmatprep.subr.mxu0 0.0
  %3580 = vmatpush1.msra.mxu0 0.0
  %3581 = vmatprep.subr.mxu0 0.0
  %3582 = vmatpush1.msra.mxu0 0.0
  %3583 = vmatprep.subr.mxu0 0.0
  %3584 = vmatpush1.msra.mxu0 0.0
  %3585 = vmatprep.subr.mxu0 0.0
  %3586 = vmatpush1.msra.mxu0 0.0
  %3587 = vmatprep.subr.mxu0 0.0
  %3588 = vmatpush1.msra.mxu0 0.0
  %3589 = vmatprep.subr.mxu0 0.0
  %3590 = vmatpush1.msra.mxu0 0.0
  %3591 = vmatprep.subr.mxu0 0.0
  %3592 = vmatpush1.msra.mxu0 0.0
  %3593 = vmatprep.subr.mxu0 0.0
  %3594 = vmatpush1.msra.mxu0 0.0
  %3595 = vmatprep.subr.mxu0 0.0
  %3596 = vmatpush1.msra.mxu0 0.0
  %3597 = vmatprep.subr.mxu0 0.0
  %3598 = vmatpush1.msra.mxu0 0.0
  %3599 = vmatprep.subr.mxu0 0.0
  %3600 = vmatpush1.msra.mxu0 0.0
  %3601 = vmatprep.subr.mxu0 0.0
  %3602 = vmatpush1.msra.mxu0 0.0
  %3603 = vmatprep.subr.mxu0 0.0
  %3604 = vmatpush1.msra.mxu0 0.0
  %3605 = vmatprep.subr.mxu0 0.0
  %3606 = vmatpush1.msra.mxu0 0.0
  %3607 = vmatprep.subr.mxu0 0.0
  %3608 = vmatpush1.msra.mxu0 0.0
  %3609 = vmatprep.subr.mxu0 0.0
  %3610 = vmatpush1.msra.mxu0 0.0
  %3611 = vmatprep.subr.mxu0 0.0
  %3612 = vmatpush1.msra.mxu0 0.0
  %3613 = vmatprep.mubr.f32.mxu0 0.0
  %3614 = vmatmul.mubr.f32.gmra.mrb[0].mxu0 %v3544
  %v3615 = vpop.f32.mrb[0].mxu0
  %v3616 = vadd.f32 0.0, %v3615
  %v3617 = vpop.f32.mrb[0].mxu0
  %3618 = vdwg.mxu0
  %v3620 = vrot.slane %v3538, 1
  %v3622 = vmax.f32 %v3538, %v3620
  %v3624 = vsel %vm2666, %v3622, 0
  %3626 = vmatprep.subr.mxu0 0.0
  %3627 = vmatpush1.msra.mxu0 %v3624
  %3628 = vmatprep.subr.mxu0 0.0
  %3629 = vmatpush1.msra.mxu0 0.0
  %3630 = vmatprep.subr.mxu0 0.0
  %3631 = vmatpush1.msra.mxu0 0.0
  %3632 = vmatprep.subr.mxu0 0.0
  %3633 = vmatpush1.msra.mxu0 0.0
  %3634 = vmatprep.subr.mxu0 0.0
  %3635 = vmatpush1.msra.mxu0 0.0
  %3636 = vmatprep.subr.mxu0 0.0
  %3637 = vmatpush1.msra.mxu0 0.0
  %3638 = vmatprep.subr.mxu0 0.0
  %3639 = vmatpush1.msra.mxu0 0.0
  %3640 = vmatprep.subr.mxu0 0.0
  %3641 = vmatpush1.msra.mxu0 0.0
  %3642 = vmatprep.subr.mxu0 0.0
  %3643 = vmatpush1.msra.mxu0 0.0
  %3644 = vmatprep.subr.mxu0 0.0
  %3645 = vmatpush1.msra.mxu0 0.0
  %3646 = vmatprep.subr.mxu0 0.0
  %3647 = vmatpush1.msra.mxu0 0.0
  %3648 = vmatprep.subr.mxu0 0.0
  %3649 = vmatpush1.msra.mxu0 0.0
  %3650 = vmatprep.subr.mxu0 0.0
  %3651 = vmatpush1.msra.mxu0 0.0
  %3652 = vmatprep.subr.mxu0 0.0
  %3653 = vmatpush1.msra.mxu0 0.0
  %3654 = vmatprep.subr.mxu0 0.0
  %3655 = vmatpush1.msra.mxu0 0.0
  %3656 = vmatprep.subr.mxu0 0.0
  %3657 = vmatpush1.msra.mxu0 0.0
  %3658 = vmatprep.subr.mxu0 0.0
  %3659 = vmatpush1.msra.mxu0 0.0
  %3660 = vmatprep.subr.mxu0 0.0
  %3661 = vmatpush1.msra.mxu0 0.0
  %3662 = vmatprep.subr.mxu0 0.0
  %3663 = vmatpush1.msra.mxu0 0.0
  %3664 = vmatprep.subr.mxu0 0.0
  %3665 = vmatpush1.msra.mxu0 0.0
  %3666 = vmatprep.subr.mxu0 0.0
  %3667 = vmatpush1.msra.mxu0 0.0
  %3668 = vmatprep.subr.mxu0 0.0
  %3669 = vmatpush1.msra.mxu0 0.0
  %3670 = vmatprep.subr.mxu0 0.0
  %3671 = vmatpush1.msra.mxu0 0.0
  %3672 = vmatprep.subr.mxu0 0.0
  %3673 = vmatpush1.msra.mxu0 0.0
  %3674 = vmatprep.subr.mxu0 0.0
  %3675 = vmatpush1.msra.mxu0 0.0
  %3676 = vmatprep.subr.mxu0 0.0
  %3677 = vmatpush1.msra.mxu0 0.0
  %3678 = vmatprep.subr.mxu0 0.0
  %3679 = vmatpush1.msra.mxu0 0.0
  %3680 = vmatprep.subr.mxu0 0.0
  %3681 = vmatpush1.msra.mxu0 0.0
  %3682 = vmatprep.subr.mxu0 0.0
  %3683 = vmatpush1.msra.mxu0 0.0
  %3684 = vmatprep.subr.mxu0 0.0
  %3685 = vmatpush1.msra.mxu0 0.0
  %3686 = vmatprep.subr.mxu0 0.0
  %3687 = vmatpush1.msra.mxu0 0.0
  %3688 = vmatprep.subr.mxu0 0.0
  %3689 = vmatpush1.msra.mxu0 0.0
  %3690 = vmatprep.mubr.f32.mxu0 0.0
  %3691 = vmatmul.mubr.f32.gmra.mrb[0].mxu0 %v3544
  %v3692 = vpop.f32.mrb[0].mxu0
  %v3693 = vadd.f32 0.0, %v3692
  %v3694 = vpop.f32.mrb[0].mxu0
  %3695 = vdwg.mxu0
  %v3696 = vld [vmem:[%s3] sm:$0xff]
  %v3697 = vld [vmem:[%s3 + $0x8] sm:$0xff]
  %v3698 = vld [vmem:[%s3 + $0x10] sm:$0xff]
  %v3699 = vld [vmem:[%s3 + $0x18] sm:$0xff]
  %v3700 = vld [vmem:[%s3 + $0x20] sm:$0xff]
  %v3701 = vld [vmem:[%s3 + $0x28] sm:$0xff]
  %v3702 = vld [vmem:[%s3 + $0x30] sm:$0xff]
  %v3703 = vld [vmem:[%s3 + $0x38] sm:$0xff]
  %v3704 = vld [vmem:[%s3 + $0x40] sm:$0xff]
  %v3705 = vld [vmem:[%s3 + $0x48] sm:$0xff]
  %v3706 = vld [vmem:[%s3 + $0x50] sm:$0xff]
  %v3707 = vld [vmem:[%s3 + $0x58] sm:$0xff]
  %v3708 = vld [vmem:[%s3 + $0x60] sm:$0xff]
  %v3709 = vld [vmem:[%s3 + $0x68] sm:$0xff]
  %v3710 = vld [vmem:[%s3 + $0x70] sm:$0xff]
  %v3711 = vld [vmem:[%s3 + $0x78] sm:$0xff]
  %v3712 = vld [vmem:[%s3 + $0x80] sm:$0xff]
  %v3713 = vld [vmem:[%s3 + $0x88] sm:$0xff]
  %v3714 = vld [vmem:[%s3 + $0x90] sm:$0xff]
  %v3715 = vld [vmem:[%s3 + $0x98] sm:$0xff]
  %v3716 = vld [vmem:[%s3 + $0xa0] sm:$0xff]
  %v3717 = vld [vmem:[%s3 + $0xa8] sm:$0xff]
  %v3718 = vld [vmem:[%s3 + $0xb0] sm:$0xff]
  %v3719 = vld [vmem:[%s3 + $0xb8] sm:$0xff]
  %v3720 = vld [vmem:[%s4] sm:$0x3]
  %v3722 = vsel %vm60, %v3616, 0
  %3724 = vmatprep.subr.mxu0 0.0
  %3725 = vmatpush1.msra.mxu0 %v3696
  %3726 = vmatprep.subr.mxu0 0.0
  %3727 = vmatpush1.msra.mxu0 %v3697
  %3728 = vmatprep.subr.mxu0 0.0
  %3729 = vmatpush1.msra.mxu0 %v3698
  %3730 = vmatprep.subr.mxu0 0.0
  %3731 = vmatpush1.msra.mxu0 %v3699
  %3732 = vmatprep.subr.mxu0 0.0
  %3733 = vmatpush1.msra.mxu0 %v3700
  %3734 = vmatprep.subr.mxu0 0.0
  %3735 = vmatpush1.msra.mxu0 %v3701
  %3736 = vmatprep.subr.mxu0 0.0
  %3737 = vmatpush1.msra.mxu0 %v3702
  %3738 = vmatprep.subr.mxu0 0.0
  %3739 = vmatpush1.msra.mxu0 %v3703
  %3740 = vmatprep.subr.mxu0 0.0
  %3741 = vmatpush1.msra.mxu0 0.0
  %3742 = vmatprep.subr.mxu0 0.0
  %3743 = vmatpush1.msra.mxu0 0.0
  %3744 = vmatprep.subr.mxu0 0.0
  %3745 = vmatpush1.msra.mxu0 0.0
  %3746 = vmatprep.subr.mxu0 0.0
  %3747 = vmatpush1.msra.mxu0 0.0
  %3748 = vmatprep.subr.mxu0 0.0
  %3749 = vmatpush1.msra.mxu0 0.0
  %3750 = vmatprep.subr.mxu0 0.0
  %3751 = vmatpush1.msra.mxu0 0.0
  %3752 = vmatprep.subr.mxu0 0.0
  %3753 = vmatpush1.msra.mxu0 0.0
  %3754 = vmatprep.subr.mxu0 0.0
  %3755 = vmatpush1.msra.mxu0 0.0
  %3756 = vmatprep.subr.mxu0 0.0
  %3757 = vmatpush1.msra.mxu0 0.0
  %3758 = vmatprep.subr.mxu0 0.0
  %3759 = vmatpush1.msra.mxu0 0.0
  %3760 = vmatprep.subr.mxu0 0.0
  %3761 = vmatpush1.msra.mxu0 0.0
  %3762 = vmatprep.subr.mxu0 0.0
  %3763 = vmatpush1.msra.mxu0 0.0
  %3764 = vmatprep.subr.mxu0 0.0
  %3765 = vmatpush1.msra.mxu0 0.0
  %3766 = vmatprep.subr.mxu0 0.0
  %3767 = vmatpush1.msra.mxu0 0.0
  %3768 = vmatprep.subr.mxu0 0.0
  %3769 = vmatpush1.msra.mxu0 0.0
  %3770 = vmatprep.subr.mxu0 0.0
  %3771 = vmatpush1.msra.mxu0 0.0
  %3772 = vmatprep.subr.mxu0 0.0
  %3773 = vmatpush1.msra.mxu0 0.0
  %3774 = vmatprep.subr.mxu0 0.0
  %3775 = vmatpush1.msra.mxu0 0.0
  %3776 = vmatprep.subr.mxu0 0.0
  %3777 = vmatpush1.msra.mxu0 0.0
  %3778 = vmatprep.subr.mxu0 0.0
  %3779 = vmatpush1.msra.mxu0 0.0
  %3780 = vmatprep.subr.mxu0 0.0
  %3781 = vmatpush1.msra.mxu0 0.0
  %3782 = vmatprep.subr.mxu0 0.0
  %3783 = vmatpush1.msra.mxu0 0.0
  %3784 = vmatprep.subr.mxu0 0.0
  %3785 = vmatpush1.msra.mxu0 0.0
  %3786 = vmatprep.subr.mxu0 0.0
  %3787 = vmatpush1.msra.mxu0 0.0
  %3788 = vmatprep.mubr.f32.mxu0 0.0
  %3789 = vmatmul.mubr.f32.gmra.mrb[0].mxu0 %v3722
  %v3790 = vpop.f32.mrb[0].mxu0
  %v3791 = vadd.f32 %v3720, %v3790
  %v3792 = vpop.f32.mrb[0].mxu0
  %3793 = vdwg.mxu0
  %v3794 = vmax.f32 %v3791, 0.0
  %v3796 = vrot.slane %v3720, 1
  %3798 = vmatprep.subr.mxu0 0.0
  %3799 = vmatpush1.msra.mxu0 %v3704
  %3800 = vmatprep.subr.mxu0 0.0
  %3801 = vmatpush1.msra.mxu0 %v3705
  %3802 = vmatprep.subr.mxu0 0.0
  %3803 = vmatpush1.msra.mxu0 %v3706
  %3804 = vmatprep.subr.mxu0 0.0
  %3805 = vmatpush1.msra.mxu0 %v3707
  %3806 = vmatprep.subr.mxu0 0.0
  %3807 = vmatpush1.msra.mxu0 %v3708
  %3808 = vmatprep.subr.mxu0 0.0
  %3809 = vmatpush1.msra.mxu0 %v3709
  %3810 = vmatprep.subr.mxu0 0.0
  %3811 = vmatpush1.msra.mxu0 %v3710
  %3812 = vmatprep.subr.mxu0 0.0
  %3813 = vmatpush1.msra.mxu0 %v3711
  %3814 = vmatprep.subr.mxu0 0.0
  %3815 = vmatpush1.msra.mxu0 %v3712
  %3816 = vmatprep.subr.mxu0 0.0
  %3817 = vmatpush1.msra.mxu0 %v3713
  %3818 = vmatprep.subr.mxu0 0.0
  %3819 = vmatpush1.msra.mxu0 %v3714
  %3820 = vmatprep.subr.mxu0 0.0
  %3821 = vmatpush1.msra.mxu0 %v3715
  %3822 = vmatprep.subr.mxu0 0.0
  %3823 = vmatpush1.msra.mxu0 %v3716
  %3824 = vmatprep.subr.mxu0 0.0
  %3825 = vmatpush1.msra.mxu0 %v3717
  %3826 = vmatprep.subr.mxu0 0.0
  %3827 = vmatpush1.msra.mxu0 %v3718
  %3828 = vmatprep.subr.mxu0 0.0
  %3829 = vmatpush1.msra.mxu0 %v3719
  %3830 = vmatprep.subr.mxu0 0.0
  %3831 = vmatpush1.msra.mxu0 0.0
  %3832 = vmatprep.subr.mxu0 0.0
  %3833 = vmatpush1.msra.mxu0 0.0
  %3834 = vmatprep.subr.mxu0 0.0
  %3835 = vmatpush1.msra.mxu0 0.0
  %3836 = vmatprep.subr.mxu0 0.0
  %3837 = vmatpush1.msra.mxu0 0.0
  %3838 = vmatprep.subr.mxu0 0.0
  %3839 = vmatpush1.msra.mxu0 0.0
  %3840 = vmatprep.subr.mxu0 0.0
  %3841 = vmatpush1.msra.mxu0 0.0
  %3842 = vmatprep.subr.mxu0 0.0
  %3843 = vmatpush1.msra.mxu0 0.0
  %3844 = vmatprep.subr.mxu0 0.0
  %3845 = vmatpush1.msra.mxu0 0.0
  %3846 = vmatprep.subr.mxu0 0.0
  %3847 = vmatpush1.msra.mxu0 0.0
  %3848 = vmatprep.subr.mxu0 0.0
  %3849 = vmatpush1.msra.mxu0 0.0
  %3850 = vmatprep.subr.mxu0 0.0
  %3851 = vmatpush1.msra.mxu0 0.0
  %3852 = vmatprep.subr.mxu0 0.0
  %3853 = vmatpush1.msra.mxu0 0.0
  %3854 = vmatprep.subr.mxu0 0.0
  %3855 = vmatpush1.msra.mxu0 0.0
  %3856 = vmatprep.subr.mxu0 0.0
  %3857 = vmatpush1.msra.mxu0 0.0
  %3858 = vmatprep.subr.mxu0 0.0
  %3859 = vmatpush1.msra.mxu0 0.0
  %3860 = vmatprep.subr.mxu0 0.0
  %3861 = vmatpush1.msra.mxu0 0.0
  %3862 = vmatprep.mubr.f32.mxu0 0.0
  %3863 = vmatmul.mubr.f32.gmra.mrb[0].mxu0 %v3794
  %v3864 = vpop.f32.mrb[0].mxu0
  %v3865 = vadd.f32 %v3796, %v3864
  %v3866 = vpop.f32.mrb[0].mxu0
  %3867 = vdwg.mxu0
  %3869 = vrot.lane.b32.xlu0 %v3865, 64
  %v3870 = vpop.permute.xlu0 %3869
  %v3872 = vsel %vm60, %v3616, %v3870
  %3873 = vst [vmem:[%s5] sm:$0x1] %v3872
  %v3875 = vsel %vm60, %v3693, 0
  %3877 = vmatprep.subr.mxu0 0.0
  %3878 = vmatpush1.msra.mxu0 %v3696
  %3879 = vmatprep.subr.mxu0 0.0
  %3880 = vmatpush1.msra.mxu0 %v3697
  %3881 = vmatprep.subr.mxu0 0.0
  %3882 = vmatpush1.msra.mxu0 %v3698
  %3883 = vmatprep.subr.mxu0 0.0
  %3884 = vmatpush1.msra.mxu0 %v3699
  %3885 = vmatprep.subr.mxu0 0.0
  %3886 = vmatpush1.msra.mxu0 %v3700
  %3887 = vmatprep.subr.mxu0 0.0
  %3888 = vmatpush1.msra.mxu0 %v3701
  %3889 = vmatprep.subr.mxu0 0.0
  %3890 = vmatpush1.msra.mxu0 %v3702
  %3891 = vmatprep.subr.mxu0 0.0
  %3892 = vmatpush1.msra.mxu0 %v3703
  %3893 = vmatprep.subr.mxu0 0.0
  %3894 = vmatpush1.msra.mxu0 0.0
  %3895 = vmatprep.subr.mxu0 0.0
  %3896 = vmatpush1.msra.mxu0 0.0
  %3897 = vmatprep.subr.mxu0 0.0
  %3898 = vmatpush1.msra.mxu0 0.0
  %3899 = vmatprep.subr.mxu0 0.0
  %3900 = vmatpush1.msra.mxu0 0.0
  %3901 = vmatprep.subr.mxu0 0.0
  %3902 = vmatpush1.msra.mxu0 0.0
  %3903 = vmatprep.subr.mxu0 0.0
  %3904 = vmatpush1.msra.mxu0 0.0
  %3905 = vmatprep.subr.mxu0 0.0
  %3906 = vmatpush1.msra.mxu0 0.0
  %3907 = vmatprep.subr.mxu0 0.0
  %3908 = vmatpush1.msra.mxu0 0.0
  %3909 = vmatprep.subr.mxu0 0.0
  %3910 = vmatpush1.msra.mxu0 0.0
  %3911 = vmatprep.subr.mxu0 0.0
  %3912 = vmatpush1.msra.mxu0 0.0
  %3913 = vmatprep.subr.mxu0 0.0
  %3914 = vmatpush1.msra.mxu0 0.0
  %3915 = vmatprep.subr.mxu0 0.0
  %3916 = vmatpush1.msra.mxu0 0.0
  %3917 = vmatprep.subr.mxu0 0.0
  %3918 = vmatpush1.msra.mxu0 0.0
  %3919 = vmatprep.subr.mxu0 0.0
  %3920 = vmatpush1.msra.mxu0 0.0
  %3921 = vmatprep.subr.mxu0 0.0
  %3922 = vmatpush1.msra.mxu0 0.0
  %3923 = vmatprep.subr.mxu0 0.0
  %3924 = vmatpush1.msra.mxu0 0.0
  %3925 = vmatprep.subr.mxu0 0.0
  %3926 = vmatpush1.msra.mxu0 0.0
  %3927 = vmatprep.subr.mxu0 0.0
  %3928 = vmatpush1.msra.mxu0 0.0
  %3929 = vmatprep.subr.mxu0 0.0
  %3930 = vmatpush1.msra.mxu0 0.0
  %3931 = vmatprep.subr.mxu0 0.0
  %3932 = vmatpush1.msra.mxu0 0.0
  %3933 = vmatprep.subr.mxu0 0.0
  %3934 = vmatpush1.msra.mxu0 0.0
  %3935 = vmatprep.subr.mxu0 0.0
  %3936 = vmatpush1.msra.mxu0 0.0
  %3937 = vmatprep.subr.mxu0 0.0
  %3938 = vmatpush1.msra.mxu0 0.0
  %3939 = vmatprep.subr.mxu0 0.0
  %3940 = vmatpush1.msra.mxu0 0.0
  %3941 = vmatprep.mubr.f32.mxu0 0.0
  %3942 = vmatmul.mubr.f32.gmra.mrb[0].mxu0 %v3875
  %v3943 = vpop.f32.mrb[0].mxu0
  %v3944 = vadd.f32 %v3720, %v3943
  %v3945 = vpop.f32.mrb[0].mxu0
  %3946 = vdwg.mxu0
  %v3947 = vmax.f32 %v3944, 0.0
  %3948 = vmatprep.subr.mxu0 0.0
  %3949 = vmatpush1.msra.mxu0 %v3704
  %3950 = vmatprep.subr.mxu0 0.0
  %3951 = vmatpush1.msra.mxu0 %v3705
  %3952 = vmatprep.subr.mxu0 0.0
  %3953 = vmatpush1.msra.mxu0 %v3706
  %3954 = vmatprep.subr.mxu0 0.0
  %3955 = vmatpush1.msra.mxu0 %v3707
  %3956 = vmatprep.subr.mxu0 0.0
  %3957 = vmatpush1.msra.mxu0 %v3708
  %3958 = vmatprep.subr.mxu0 0.0
  %3959 = vmatpush1.msra.mxu0 %v3709
  %3960 = vmatprep.subr.mxu0 0.0
  %3961 = vmatpush1.msra.mxu0 %v3710
  %3962 = vmatprep.subr.mxu0 0.0
  %3963 = vmatpush1.msra.mxu0 %v3711
  %3964 = vmatprep.subr.mxu0 0.0
  %3965 = vmatpush1.msra.mxu0 %v3712
  %3966 = vmatprep.subr.mxu0 0.0
  %3967 = vmatpush1.msra.mxu0 %v3713
  %3968 = vmatprep.subr.mxu0 0.0
  %3969 = vmatpush1.msra.mxu0 %v3714
  %3970 = vmatprep.subr.mxu0 0.0
  %3971 = vmatpush1.msra.mxu0 %v3715
  %3972 = vmatprep.subr.mxu0 0.0
  %3973 = vmatpush1.msra.mxu0 %v3716
  %3974 = vmatprep.subr.mxu0 0.0
  %3975 = vmatpush1.msra.mxu0 %v3717
  %3976 = vmatprep.subr.mxu0 0.0
  %3977 = vmatpush1.msra.mxu0 %v3718
  %3978 = vmatprep.subr.mxu0 0.0
  %3979 = vmatpush1.msra.mxu0 %v3719
  %3980 = vmatprep.subr.mxu0 0.0
  %3981 = vmatpush1.msra.mxu0 0.0
  %3982 = vmatprep.subr.mxu0 0.0
  %3983 = vmatpush1.msra.mxu0 0.0
  %3984 = vmatprep.subr.mxu0 0.0
  %3985 = vmatpush1.msra.mxu0 0.0
  %3986 = vmatprep.subr.mxu0 0.0
  %3987 = vmatpush1.msra.mxu0 0.0
  %3988 = vmatprep.subr.mxu0 0.0
  %3989 = vmatpush1.msra.mxu0 0.0
  %3990 = vmatprep.subr.mxu0 0.0
  %3991 = vmatpush1.msra.mxu0 0.0
  %3992 = vmatprep.subr.mxu0 0.0
  %3993 = vmatpush1.msra.mxu0 0.0
  %3994 = vmatprep.subr.mxu0 0.0
  %3995 = vmatpush1.msra.mxu0 0.0
  %3996 = vmatprep.subr.mxu0 0.0
  %3997 = vmatpush1.msra.mxu0 0.0
  %3998 = vmatprep.subr.mxu0 0.0
  %3999 = vmatpush1.msra.mxu0 0.0
  %4000 = vmatprep.subr.mxu0 0.0
  %4001 = vmatpush1.msra.mxu0 0.0
  %4002 = vmatprep.subr.mxu0 0.0
  %4003 = vmatpush1.msra.mxu0 0.0
  %4004 = vmatprep.subr.mxu0 0.0
  %4005 = vmatpush1.msra.mxu0 0.0
  %4006 = vmatprep.subr.mxu0 0.0
  %4007 = vmatpush1.msra.mxu0 0.0
  %4008 = vmatprep.subr.mxu0 0.0
  %4009 = vmatpush1.msra.mxu0 0.0
  %4010 = vmatprep.subr.mxu0 0.0
  %4011 = vmatpush1.msra.mxu0 0.0
  %4012 = vmatprep.mubr.f32.mxu0 0.0
  %4013 = vmatmul.mubr.f32.gmra.mrb[0].mxu0 %v3947
  %v4014 = vpop.f32.mrb[0].mxu0
  %v4015 = vadd.f32 %v3796, %v4014
  %v4016 = vpop.f32.mrb[0].mxu0
  %4017 = vdwg.mxu0
  %4019 = vrot.lane.b32.xlu0 %v4015, 64
  %v4020 = vpop.permute.xlu0 %4019
  %v4022 = vsel %vm60, %v3693, %v4020
  %4023 = vst [vmem:[%s5 + $0x1] sm:$0x1] %v4022
  // Predicated region
  $region22: #{mscnn2_forward.1} parent=0 // pred_check
    _
  $region23: #{mscnn2_forward.1} parent=0 // pred_check_branch
    %4025 = sbr.rel (0) target = $region25
  $region24: #{mscnn2_forward.1} parent=0 // pred_region
    _
  $region25: #{mscnn2_forward.1} parent=0 // pred_fallthru
    _
  // Predicated region
  $region26: #{mscnn2_forward.1} parent=0 // pred_check
    _
  $region27: #{mscnn2_forward.1} parent=0 // pred_check_branch
    %4027 = sbr.rel (0) target = $region29
  $region28: #{mscnn2_forward.1} parent=0 // pred_region
    _
  $region29: #{mscnn2_forward.1} parent=0 // pred_fallthru
    _

</llo_original>
